<compile_context>
chip_gen: v7x
topology: tpu7x:2x2x1
jax: 0.10.0
libtpu: 0.0.40
codegen_flags: <defaults>
</compile_context>

<pallas_src>
import functools

import jax
import jax.numpy as jnp
from jax import lax
from jax.experimental import pallas as pl
from jax.experimental.pallas import tpu as pltpu

OUTPUT_DIM = 4  # number of Q-values (actions)

# Static geometry implied by fc = 32*9*9 (84 -> 20 -> 9).
H_IN = 84
K1, S1, C1_OUT = 8, 4, 16
K2, S2, C2_OUT = 4, 2, 32
OH1 = (H_IN - K1) // S1 + 1          # 20
OH2 = (OH1 - K2) // S2 + 1           # 9
HP = OH1 // 2                        # 10 (stride-2 parity half-width)
N1 = OH1 * OH1                       # 400 conv1 output positions
NTAP1 = K1 * K1                      # 64 conv1 taps (C_in == 1)
K2TOT = K2 * K2 * C1_OUT             # 256 conv2 reduction depth
ACC_ROWS = OH2 * HP - 1              # 89: conv2 positions j = oy2*10 + ox2


# ----------------------------------------------------------------------------
# Fused kernel: conv1 -> conv2 (one deep GEMM) -> fc, for a block of BB
# batch elements per grid step.  All activations stay in vregs/VMEM.
# ----------------------------------------------------------------------------
def _fused_kernel(p_ref, w1_ref, b1_ref, w2_ref, b2_ref, wfc_ref, bfc_ref,
                  out_ref, *, bb, nout):
    lane = lax.broadcasted_iota(jnp.int32, (1, nout), 1)   # hoisted (no CSE)

    rows = []
    for b in range(bb):                      # unrolled; per-element MXU work is tiny
        # ---- conv1 (transposed): (16,64)@(64,400) + bias + ReLU ------------
        y1t = jnp.dot(w1_ref[...], p_ref[b],
                      preferred_element_type=jnp.float32)   # (16, 400)
        y1t = jnp.maximum(y1t + b1_ref[...], 0.0)

        # ---- conv2 patch matrix (256, 89) -----------------------------------
        # y1t columns are parity ordered:
        #   pos = (oy%2)*200 + (ox%2)*100 + (oy//2)*10 + (ox//2)
        # so for kernel offset (ky, kx) the 89 needed positions are ONE
        # contiguous lane run starting at `base` (column j = oy2*10 + ox2;
        # every j%10 == 9 slot is junk and zero-weighted in the fc).
        slabs = []
        for ky in range(K2):
            for kx in range(K2):
                base = ((ky % 2) * (2 * HP * HP) + (kx % 2) * (HP * HP)
                        + (ky // 2) * HP + (kx // 2))
                slabs.append(y1t[:, base:base + ACC_ROWS])   # (16, 89)
        p2t = jnp.concatenate(slabs, axis=0)                 # (256, 89), rows (ky,kx,ci)

        # ---- conv2: single deep-K GEMM (32,256)@(256,89) + bias + ReLU ------
        y2t = jnp.dot(w2_ref[...], p2t,
                      preferred_element_type=jnp.float32)    # (32, 89)
        y2t = jnp.maximum(y2t + b2_ref[...], 0.0)

        # ---- fc: one fused multiply + sublane reduce, then nout lane reduces
        prod = wfc_ref[...] * y2t[None, :, :]                # (nout, 32, 89)
        part = jnp.sum(prod, axis=1)                         # (nout, 89)
        row = jnp.zeros((1, nout), jnp.float32)
        for n in range(nout):
            row = row + jnp.where(lane == n, jnp.sum(part[n:n + 1, :]), 0.0)
        rows.append(row)                                     # (1, nout)

    # One lane-aligned (bb, nout) store per grid step.
    out_ref[0] = jnp.concatenate(rows, axis=0) + bfc_ref[...]


def _pick_block_batch(batch, bb_max=8):
    """Block-batch size: amortize step overhead, keep >=2 parallel steps."""
    if batch <= 1:
        return 1
    bb = min(bb_max, batch)
    if pl.cdiv(batch, bb) < 2:        # v7x has 2 TCs -> keep >=2 grid steps
        bb = pl.cdiv(batch, 2)
    return bb


def fused_forward(kp, p):
    """p: (B, 64, 400) tap-major, parity-ordered conv1 patches -> (B, nout)."""
    B = p.shape[0]
    nout = kp["bfc"].shape[1]
    bb = _pick_block_batch(B)
    g = pl.cdiv(B, bb)
    b_pad = g * bb
    if b_pad != B:
        p = jnp.pad(p, ((0, b_pad - B), (0, 0), (0, 0)))

    kernel = functools.partial(_fused_kernel, bb=bb, nout=nout)

    flops = 2 * b_pad * (C1_OUT * NTAP1 * N1
                         + C2_OUT * K2TOT * ACC_ROWS
                         + nout * C2_OUT * ACC_ROWS)
    bytes_acc = (b_pad * NTAP1 * N1 * 4 + b_pad * nout * 4
                 + 4 * (C1_OUT * NTAP1 + C1_OUT + C2_OUT * K2TOT + C2_OUT
                        + nout * C2_OUT * ACC_ROWS + nout))

    out = pl.pallas_call(
        kernel,
        out_shape=jax.ShapeDtypeStruct((g, bb, nout), jnp.float32),
        grid=(g,),
        in_specs=[
            pl.BlockSpec((bb, NTAP1, N1), lambda i: (i, 0, 0)),           # patches
            pl.BlockSpec((C1_OUT, NTAP1), lambda i: (0, 0)),              # w1  (16,64)
            pl.BlockSpec((C1_OUT, 1), lambda i: (0, 0)),                  # b1  (16,1)
            pl.BlockSpec((C2_OUT, K2TOT), lambda i: (0, 0)),              # w2  (32,256)
            pl.BlockSpec((C2_OUT, 1), lambda i: (0, 0)),                  # b2  (32,1)
            pl.BlockSpec((nout, C2_OUT, ACC_ROWS), lambda i: (0, 0, 0)),  # wfc (n,32,89)
            pl.BlockSpec((1, nout), lambda i: (0, 0)),                    # bfc (1,n)
        ],
        out_specs=pl.BlockSpec((1, bb, nout), lambda i: (i, 0, 0)),
        compiler_params=pltpu.CompilerParams(
            dimension_semantics=("parallel",),
            vmem_limit_bytes=32 * 1024 * 1024),
        cost_estimate=pl.CostEstimate(
            flops=flops, transcendentals=0, bytes_accessed=bytes_acc),
    )(p, kp["w1"], kp["b1"], kp["w2"], kp["b2"], kp["wfc"], kp["bfc"])
    return out.reshape(b_pad, nout)[:B]


# ----------------------------------------------------------------------------
# Wrapper-side im2col: PURE data movement (no identity conv / HIGHEST).
# Emits tap-major (B, 64, 400) with parity-ordered positions.
# ----------------------------------------------------------------------------
def _im2col_parity(x):
    """x: (B, 1, 84, 84) -> (B, 64, 400).

    win[b, oy, ky, ox, kx] == x[b, 0, 4*oy+ky, 4*ox+kx], then positions are
    reordered to pos = (oy%2)*200 + (ox%2)*100 + (oy//2)*10 + (ox//2) so that
    every conv2 patch is a contiguous static lane slice inside the kernel.
    """
    B = x.shape[0]
    xs = x.reshape(B, H_IN, H_IN)
    # rows: window rows [4*oy, 4*oy+8) = cells (oy, oy+1) of a (21, 4) split.
    xr = xs.reshape(B, H_IN // S1, S1, H_IN)                          # (B,21,4,84)
    rw = jnp.concatenate([xr[:, :OH1], xr[:, 1:OH1 + 1]], axis=2)     # (B,20,8,84)
    # cols: same trick on the last axis.
    rc = rw.reshape(B, OH1, K1, H_IN // S1, S1)                       # (B,20,8,21,4)
    win = jnp.concatenate([rc[:, :, :, :OH1], rc[:, :, :, 1:OH1 + 1]],
                          axis=4)                                     # (B,20,8,20,8)
    # (B, oy, ky, ox, kx) -> (B, ky, kx, oy%2, ox%2, oy//2, ox//2)
    win = win.reshape(B, HP, 2, K1, HP, 2, K1)
    win = win.transpose(0, 3, 6, 2, 5, 1, 4)
    return win.reshape(B, NTAP1, N1)


def conv_net_forward(kp, x):
    """x: (B, 1, 84, 84) float32 -> (B, output_dim)."""
    return fused_forward(kp, _im2col_parity(x))


# ----------------------------------------------------------------------------
# One-time weight re-layout (hoisted out of the forward pass).
# ----------------------------------------------------------------------------
def prepare_params(params):
    nout = params["wfc"].shape[0]
    # conv1 weight -> (16, 64), columns ordered (ky, kx) [C_in == 1].
    w1m = params["w1"].reshape(C1_OUT, NTAP1)
    # conv2 weight -> (32, 256), columns ordered (ky, kx, ci).
    w2m = jnp.transpose(params["w2"], (0, 2, 3, 1)).reshape(C2_OUT, K2TOT)
    # fc weight: torch flatten is (c, h, w); fold to the kernel's
    # (channel, column = h*10 + w) layout with zero columns at the junk w==9.
    wfc = params["wfc"].reshape(nout, C2_OUT, OH2, OH2)
    wfc = jnp.pad(wfc, ((0, 0), (0, 0), (0, 0), (0, 1)))      # (n, 32, 9, 10)
    wfc = wfc.reshape(nout, C2_OUT, OH2 * HP)[:, :, :ACC_ROWS]  # (n, 32, 89)
    return {
        "w1": w1m, "b1": params["b1"].reshape(C1_OUT, 1),
        "w2": w2m, "b2": params["b2"].reshape(C2_OUT, 1),
        "wfc": wfc, "bfc": params["bfc"].reshape(1, nout),
    }


# ----------------------------------------------------------------------------
# Deterministic synthetic parameters (PyTorch-convention shapes).
# ----------------------------------------------------------------------------
def init_params(key, output_dim):
    k1, k2, k3, k4, k5, k6 = jax.random.split(key, 6)
    s = 0.05
    return {
        "w1": jax.random.normal(k1, (16, 1, 8, 8), jnp.float32) * s,
        "b1": jax.random.normal(k2, (16,), jnp.float32) * s,
        "w2": jax.random.normal(k3, (32, 16, 4, 4), jnp.float32) * s,
        "b2": jax.random.normal(k4, (32,), jnp.float32) * s,
        "wfc": jax.random.normal(k5, (output_dim, 32 * 9 * 9), jnp.float32) * s,
        "bfc": jax.random.normal(k6, (output_dim,), jnp.float32) * s,
    }


# Pure-JAX reference (lax conv, NCHW) for a correctness cross-check.
def reference_forward(params, x):
    dn = ("NCHW", "OIHW", "NCHW")
    y = lax.conv_general_dilated(x, params["w1"], (4, 4), "VALID",
                                 dimension_numbers=dn)
    y = jax.nn.relu(y + params["b1"][None, :, None, None])
    y = lax.conv_general_dilated(y, params["w2"], (2, 2), "VALID",
                                 dimension_numbers=dn)
    y = jax.nn.relu(y + params["b2"][None, :, None, None])
    y = y.reshape(y.shape[0], -1)
    return y @ params["wfc"].T + params["bfc"]


if __name__ == "__main__":
    key = jax.random.PRNGKey(0)
    pkey, xkey = jax.random.split(key)
    params = init_params(pkey, OUTPUT_DIM)
    kparams = prepare_params(params)          # one-time layout, outside the step

    # Input consistent with fc = 32*9*9  =>  84x84 single-channel frames.
    # B = 8 -> block-batch 4, 2 "parallel" grid steps (v7x megacore friendly).
    x = jax.random.normal(xkey, (8, 1, 84, 84), jnp.float32)

    fwd = jax.jit(conv_net_forward)
    out = jax.block_until_ready(fwd(kparams, x))
    assert out.shape == (8, OUTPUT_DIM), out.shape

    ref = jax.block_until_ready(reference_forward(params, x))
    assert jnp.allclose(out, ref, rtol=1e-4, atol=1e-4), (
        float(jnp.max(jnp.abs(out - ref))))

    print("KERNEL_OK")
</pallas_src>

<mosaic_0001>
module attributes {stable_mosaic.version = 11 : i64} {
  func.func @_fused_kernel(%arg0: i32, %arg1: memref<4x64x400xf32, #tpu.memory_space<vmem>>, %arg2: memref<16x64xf32, #tpu.memory_space<vmem>>, %arg3: memref<16x1xf32, #tpu.memory_space<vmem>>, %arg4: memref<32x256xf32, #tpu.memory_space<vmem>>, %arg5: memref<32x1xf32, #tpu.memory_space<vmem>>, %arg6: memref<4x32x89xf32, #tpu.memory_space<vmem>>, %arg7: memref<1x4xf32, #tpu.memory_space<vmem>>, %arg8: memref<1x4x4xf32, #tpu.memory_space<vmem>>) attributes {dimension_semantics = [#tpu.dimension_semantics<parallel>], iteration_bounds = array<i64: 2>, scalar_prefetch = 0 : i64, scratch_operands = 0 : i64, tpu.core_type = #tpu.core_type<tc>, window_params = [{transform_indices = @transform_0, window_bounds = array<i64: 4, 64, 400>}, {pipeline_mode = #tpu.pipeline_mode<synchronous>, transform_indices = @transform_1, window_bounds = array<i64: 16, 64>}, {pipeline_mode = #tpu.pipeline_mode<synchronous>, transform_indices = @transform_2, window_bounds = array<i64: 16, 1>}, {pipeline_mode = #tpu.pipeline_mode<synchronous>, transform_indices = @transform_3, window_bounds = array<i64: 32, 256>}, {pipeline_mode = #tpu.pipeline_mode<synchronous>, transform_indices = @transform_4, window_bounds = array<i64: 32, 1>}, {pipeline_mode = #tpu.pipeline_mode<synchronous>, transform_indices = @transform_5, window_bounds = array<i64: 4, 32, 89>}, {pipeline_mode = #tpu.pipeline_mode<synchronous>, transform_indices = @transform_6, window_bounds = array<i64: 1, 4>}, {transform_indices = @transform_7, window_bounds = array<i64: 1, 4, 4>}]} {
    %0 = tpu.iota {dimensions = array<i32: 1>} : vector<1x4xi32>
    %c0 = arith.constant 0 : index
    %c0_0 = arith.constant 0 : index
    %1 = vector.load %arg2[%c0, %c0_0] : memref<16x64xf32, #tpu.memory_space<vmem>>, vector<16x64xf32>
    %c0_1 = arith.constant 0 : index
    %c0_2 = arith.constant 0 : index
    %c0_3 = arith.constant 0 : index
    %2 = vector.load %arg1[%c0_1, %c0_2, %c0_3] : memref<4x64x400xf32, #tpu.memory_space<vmem>>, vector<1x64x400xf32>
    %3 = vector.shape_cast %2 : vector<1x64x400xf32> to vector<64x400xf32>
    %cst = arith.constant dense<0.000000e+00> : vector<16x400xf32>
    %4 = tpu.matmul %1, %3, %cst {dimension_numbers = #tpu.dot_dimension_numbers<[1], [0], [0], [1], [0, 0, 1, 1], [], []>} : vector<16x64xf32>, vector<64x400xf32>, vector<16x400xf32> -> vector<16x400xf32>
    %c0_4 = arith.constant 0 : index
    %c0_5 = arith.constant 0 : index
    %5 = vector.load %arg3[%c0_4, %c0_5] : memref<16x1xf32, #tpu.memory_space<vmem>>, vector<16x1xf32>
    %6 = vector.broadcast %5 : vector<16x1xf32> to vector<16x400xf32>
    %7 = arith.addf %4, %6 : vector<16x400xf32>
    %cst_6 = arith.constant 0.000000e+00 : f32
    %8 = vector.broadcast %cst_6 : f32 to vector<16x400xf32>
    %9 = arith.maximumf %7, %8 : vector<16x400xf32>
    %10 = vector.extract_strided_slice %9 {offsets = [0, 0], sizes = [16, 89], strides = [1, 1]} : vector<16x400xf32> to vector<16x89xf32>
    %11 = vector.extract_strided_slice %9 {offsets = [0, 100], sizes = [16, 89], strides = [1, 1]} : vector<16x400xf32> to vector<16x89xf32>
    %12 = vector.extract_strided_slice %9 {offsets = [0, 1], sizes = [16, 89], strides = [1, 1]} : vector<16x400xf32> to vector<16x89xf32>
    %13 = vector.extract_strided_slice %9 {offsets = [0, 101], sizes = [16, 89], strides = [1, 1]} : vector<16x400xf32> to vector<16x89xf32>
    %14 = vector.extract_strided_slice %9 {offsets = [0, 200], sizes = [16, 89], strides = [1, 1]} : vector<16x400xf32> to vector<16x89xf32>
    %15 = vector.extract_strided_slice %9 {offsets = [0, 300], sizes = [16, 89], strides = [1, 1]} : vector<16x400xf32> to vector<16x89xf32>
    %16 = vector.extract_strided_slice %9 {offsets = [0, 201], sizes = [16, 89], strides = [1, 1]} : vector<16x400xf32> to vector<16x89xf32>
    %17 = vector.extract_strided_slice %9 {offsets = [0, 301], sizes = [16, 89], strides = [1, 1]} : vector<16x400xf32> to vector<16x89xf32>
    %18 = vector.extract_strided_slice %9 {offsets = [0, 10], sizes = [16, 89], strides = [1, 1]} : vector<16x400xf32> to vector<16x89xf32>
    %19 = vector.extract_strided_slice %9 {offsets = [0, 110], sizes = [16, 89], strides = [1, 1]} : vector<16x400xf32> to vector<16x89xf32>
    %20 = vector.extract_strided_slice %9 {offsets = [0, 11], sizes = [16, 89], strides = [1, 1]} : vector<16x400xf32> to vector<16x89xf32>
    %21 = vector.extract_strided_slice %9 {offsets = [0, 111], sizes = [16, 89], strides = [1, 1]} : vector<16x400xf32> to vector<16x89xf32>
    %22 = vector.extract_strided_slice %9 {offsets = [0, 210], sizes = [16, 89], strides = [1, 1]} : vector<16x400xf32> to vector<16x89xf32>
    %23 = vector.extract_strided_slice %9 {offsets = [0, 310], sizes = [16, 89], strides = [1, 1]} : vector<16x400xf32> to vector<16x89xf32>
    %24 = vector.extract_strided_slice %9 {offsets = [0, 211], sizes = [16, 89], strides = [1, 1]} : vector<16x400xf32> to vector<16x89xf32>
    %25 = vector.extract_strided_slice %9 {offsets = [0, 311], sizes = [16, 89], strides = [1, 1]} : vector<16x400xf32> to vector<16x89xf32>
    %26 = tpu.concatenate %10, %11, %12, %13, %14, %15, %16, %17, %18, %19, %20, %21, %22, %23, %24, %25 in 0 : vector<16x89xf32>, vector<16x89xf32>, vector<16x89xf32>, vector<16x89xf32>, vector<16x89xf32>, vector<16x89xf32>, vector<16x89xf32>, vector<16x89xf32>, vector<16x89xf32>, vector<16x89xf32>, vector<16x89xf32>, vector<16x89xf32>, vector<16x89xf32>, vector<16x89xf32>, vector<16x89xf32>, vector<16x89xf32> -> vector<256x89xf32>
    %c0_7 = arith.constant 0 : index
    %c0_8 = arith.constant 0 : index
    %27 = vector.load %arg4[%c0_7, %c0_8] : memref<32x256xf32, #tpu.memory_space<vmem>>, vector<32x256xf32>
    %cst_9 = arith.constant dense<0.000000e+00> : vector<32x89xf32>
    %28 = tpu.matmul %27, %26, %cst_9 {dimension_numbers = #tpu.dot_dimension_numbers<[1], [0], [0], [1], [0, 0, 1, 1], [], []>} : vector<32x256xf32>, vector<256x89xf32>, vector<32x89xf32> -> vector<32x89xf32>
    %c0_10 = arith.constant 0 : index
    %c0_11 = arith.constant 0 : index
    %29 = vector.load %arg5[%c0_10, %c0_11] : memref<32x1xf32, #tpu.memory_space<vmem>>, vector<32x1xf32>
    %30 = vector.broadcast %29 : vector<32x1xf32> to vector<32x89xf32>
    %31 = arith.addf %28, %30 : vector<32x89xf32>
    %cst_12 = arith.constant 0.000000e+00 : f32
    %32 = vector.broadcast %cst_12 : f32 to vector<32x89xf32>
    %33 = arith.maximumf %31, %32 : vector<32x89xf32>
    %c0_13 = arith.constant 0 : index
    %c0_14 = arith.constant 0 : index
    %c0_15 = arith.constant 0 : index
    %34 = vector.load %arg6[%c0_13, %c0_14, %c0_15] : memref<4x32x89xf32, #tpu.memory_space<vmem>>, vector<4x32x89xf32>
    %35 = vector.shape_cast %33 : vector<32x89xf32> to vector<1x32x89xf32>
    %36 = vector.broadcast %35 : vector<1x32x89xf32> to vector<4x32x89xf32>
    %37 = arith.mulf %34, %36 : vector<4x32x89xf32>
    %cst_16 = arith.constant dense<0.000000e+00> : vector<4x89xf32>
    %38 = vector.multi_reduction <add>, %37, %cst_16 [1] : vector<4x32x89xf32> to vector<4x89xf32>
    %cst_17 = arith.constant 0.000000e+00 : f32
    %39 = vector.broadcast %cst_17 : f32 to vector<1x4xf32>
    %c0_i32 = arith.constant 0 : i32
    %40 = vector.broadcast %c0_i32 : i32 to vector<1x4xi32>
    %41 = arith.cmpi eq, %0, %40 : vector<1x4xi32>
    %42 = vector.extract_strided_slice %38 {offsets = [0, 0], sizes = [1, 89], strides = [1, 1]} : vector<4x89xf32> to vector<1x89xf32>
    %43 = vector.shape_cast %42 : vector<1x89xf32> to vector<1x1x89xf32>
    %cst_18 = arith.constant dense<0.000000e+00> : vector<1xf32>
    %44 = vector.multi_reduction <add>, %43, %cst_18 [1, 2] : vector<1x1x89xf32> to vector<1xf32>
    %45 = vector.shape_cast %44 : vector<1xf32> to vector<1x1x1xf32>
    %46 = vector.extract %45[0, 0, 0] : f32 from vector<1x1x1xf32>
    %cst_19 = arith.constant 0.000000e+00 : f32
    %47 = vector.broadcast %46 : f32 to vector<1x4xf32>
    %48 = vector.broadcast %cst_19 : f32 to vector<1x4xf32>
    %49 = arith.select %41, %47, %48 : vector<1x4xi1>, vector<1x4xf32>
    %50 = arith.addf %39, %49 : vector<1x4xf32>
    %c1_i32 = arith.constant 1 : i32
    %51 = vector.broadcast %c1_i32 : i32 to vector<1x4xi32>
    %52 = arith.cmpi eq, %0, %51 : vector<1x4xi32>
    %53 = vector.extract_strided_slice %38 {offsets = [1, 0], sizes = [1, 89], strides = [1, 1]} : vector<4x89xf32> to vector<1x89xf32>
    %54 = vector.shape_cast %53 : vector<1x89xf32> to vector<1x1x89xf32>
    %cst_20 = arith.constant dense<0.000000e+00> : vector<1xf32>
    %55 = vector.multi_reduction <add>, %54, %cst_20 [1, 2] : vector<1x1x89xf32> to vector<1xf32>
    %56 = vector.shape_cast %55 : vector<1xf32> to vector<1x1x1xf32>
    %57 = vector.extract %56[0, 0, 0] : f32 from vector<1x1x1xf32>
    %cst_21 = arith.constant 0.000000e+00 : f32
    %58 = vector.broadcast %57 : f32 to vector<1x4xf32>
    %59 = vector.broadcast %cst_21 : f32 to vector<1x4xf32>
    %60 = arith.select %52, %58, %59 : vector<1x4xi1>, vector<1x4xf32>
    %61 = arith.addf %50, %60 : vector<1x4xf32>
    %c2_i32 = arith.constant 2 : i32
    %62 = vector.broadcast %c2_i32 : i32 to vector<1x4xi32>
    %63 = arith.cmpi eq, %0, %62 : vector<1x4xi32>
    %64 = vector.extract_strided_slice %38 {offsets = [2, 0], sizes = [1, 89], strides = [1, 1]} : vector<4x89xf32> to vector<1x89xf32>
    %65 = vector.shape_cast %64 : vector<1x89xf32> to vector<1x1x89xf32>
    %cst_22 = arith.constant dense<0.000000e+00> : vector<1xf32>
    %66 = vector.multi_reduction <add>, %65, %cst_22 [1, 2] : vector<1x1x89xf32> to vector<1xf32>
    %67 = vector.shape_cast %66 : vector<1xf32> to vector<1x1x1xf32>
    %68 = vector.extract %67[0, 0, 0] : f32 from vector<1x1x1xf32>
    %cst_23 = arith.constant 0.000000e+00 : f32
    %69 = vector.broadcast %68 : f32 to vector<1x4xf32>
    %70 = vector.broadcast %cst_23 : f32 to vector<1x4xf32>
    %71 = arith.select %63, %69, %70 : vector<1x4xi1>, vector<1x4xf32>
    %72 = arith.addf %61, %71 : vector<1x4xf32>
    %c3_i32 = arith.constant 3 : i32
    %73 = vector.broadcast %c3_i32 : i32 to vector<1x4xi32>
    %74 = arith.cmpi eq, %0, %73 : vector<1x4xi32>
    %75 = vector.extract_strided_slice %38 {offsets = [3, 0], sizes = [1, 89], strides = [1, 1]} : vector<4x89xf32> to vector<1x89xf32>
    %76 = vector.shape_cast %75 : vector<1x89xf32> to vector<1x1x89xf32>
    %cst_24 = arith.constant dense<0.000000e+00> : vector<1xf32>
    %77 = vector.multi_reduction <add>, %76, %cst_24 [1, 2] : vector<1x1x89xf32> to vector<1xf32>
    %78 = vector.shape_cast %77 : vector<1xf32> to vector<1x1x1xf32>
    %79 = vector.extract %78[0, 0, 0] : f32 from vector<1x1x1xf32>
    %cst_25 = arith.constant 0.000000e+00 : f32
    %80 = vector.broadcast %79 : f32 to vector<1x4xf32>
    %81 = vector.broadcast %cst_25 : f32 to vector<1x4xf32>
    %82 = arith.select %74, %80, %81 : vector<1x4xi1>, vector<1x4xf32>
    %83 = arith.addf %72, %82 : vector<1x4xf32>
    %c0_26 = arith.constant 0 : index
    %c0_27 = arith.constant 0 : index
    %84 = vector.load %arg2[%c0_26, %c0_27] : memref<16x64xf32, #tpu.memory_space<vmem>>, vector<16x64xf32>
    %c1 = arith.constant 1 : index
    %c0_28 = arith.constant 0 : index
    %c0_29 = arith.constant 0 : index
    %85 = vector.load %arg1[%c1, %c0_28, %c0_29] : memref<4x64x400xf32, #tpu.memory_space<vmem>>, vector<1x64x400xf32>
    %86 = vector.shape_cast %85 : vector<1x64x400xf32> to vector<64x400xf32>
    %cst_30 = arith.constant dense<0.000000e+00> : vector<16x400xf32>
    %87 = tpu.matmul %84, %86, %cst_30 {dimension_numbers = #tpu.dot_dimension_numbers<[1], [0], [0], [1], [0, 0, 1, 1], [], []>} : vector<16x64xf32>, vector<64x400xf32>, vector<16x400xf32> -> vector<16x400xf32>
    %c0_31 = arith.constant 0 : index
    %c0_32 = arith.constant 0 : index
    %88 = vector.load %arg3[%c0_31, %c0_32] : memref<16x1xf32, #tpu.memory_space<vmem>>, vector<16x1xf32>
    %89 = vector.broadcast %88 : vector<16x1xf32> to vector<16x400xf32>
    %90 = arith.addf %87, %89 : vector<16x400xf32>
    %cst_33 = arith.constant 0.000000e+00 : f32
    %91 = vector.broadcast %cst_33 : f32 to vector<16x400xf32>
    %92 = arith.maximumf %90, %91 : vector<16x400xf32>
    %93 = vector.extract_strided_slice %92 {offsets = [0, 0], sizes = [16, 89], strides = [1, 1]} : vector<16x400xf32> to vector<16x89xf32>
    %94 = vector.extract_strided_slice %92 {offsets = [0, 100], sizes = [16, 89], strides = [1, 1]} : vector<16x400xf32> to vector<16x89xf32>
    %95 = vector.extract_strided_slice %92 {offsets = [0, 1], sizes = [16, 89], strides = [1, 1]} : vector<16x400xf32> to vector<16x89xf32>
    %96 = vector.extract_strided_slice %92 {offsets = [0, 101], sizes = [16, 89], strides = [1, 1]} : vector<16x400xf32> to vector<16x89xf32>
    %97 = vector.extract_strided_slice %92 {offsets = [0, 200], sizes = [16, 89], strides = [1, 1]} : vector<16x400xf32> to vector<16x89xf32>
    %98 = vector.extract_strided_slice %92 {offsets = [0, 300], sizes = [16, 89], strides = [1, 1]} : vector<16x400xf32> to vector<16x89xf32>
    %99 = vector.extract_strided_slice %92 {offsets = [0, 201], sizes = [16, 89], strides = [1, 1]} : vector<16x400xf32> to vector<16x89xf32>
    %100 = vector.extract_strided_slice %92 {offsets = [0, 301], sizes = [16, 89], strides = [1, 1]} : vector<16x400xf32> to vector<16x89xf32>
    %101 = vector.extract_strided_slice %92 {offsets = [0, 10], sizes = [16, 89], strides = [1, 1]} : vector<16x400xf32> to vector<16x89xf32>
    %102 = vector.extract_strided_slice %92 {offsets = [0, 110], sizes = [16, 89], strides = [1, 1]} : vector<16x400xf32> to vector<16x89xf32>
    %103 = vector.extract_strided_slice %92 {offsets = [0, 11], sizes = [16, 89], strides = [1, 1]} : vector<16x400xf32> to vector<16x89xf32>
    %104 = vector.extract_strided_slice %92 {offsets = [0, 111], sizes = [16, 89], strides = [1, 1]} : vector<16x400xf32> to vector<16x89xf32>
    %105 = vector.extract_strided_slice %92 {offsets = [0, 210], sizes = [16, 89], strides = [1, 1]} : vector<16x400xf32> to vector<16x89xf32>
    %106 = vector.extract_strided_slice %92 {offsets = [0, 310], sizes = [16, 89], strides = [1, 1]} : vector<16x400xf32> to vector<16x89xf32>
    %107 = vector.extract_strided_slice %92 {offsets = [0, 211], sizes = [16, 89], strides = [1, 1]} : vector<16x400xf32> to vector<16x89xf32>
    %108 = vector.extract_strided_slice %92 {offsets = [0, 311], sizes = [16, 89], strides = [1, 1]} : vector<16x400xf32> to vector<16x89xf32>
    %109 = tpu.concatenate %93, %94, %95, %96, %97, %98, %99, %100, %101, %102, %103, %104, %105, %106, %107, %108 in 0 : vector<16x89xf32>, vector<16x89xf32>, vector<16x89xf32>, vector<16x89xf32>, vector<16x89xf32>, vector<16x89xf32>, vector<16x89xf32>, vector<16x89xf32>, vector<16x89xf32>, vector<16x89xf32>, vector<16x89xf32>, vector<16x89xf32>, vector<16x89xf32>, vector<16x89xf32>, vector<16x89xf32>, vector<16x89xf32> -> vector<256x89xf32>
    %c0_34 = arith.constant 0 : index
    %c0_35 = arith.constant 0 : index
    %110 = vector.load %arg4[%c0_34, %c0_35] : memref<32x256xf32, #tpu.memory_space<vmem>>, vector<32x256xf32>
    %cst_36 = arith.constant dense<0.000000e+00> : vector<32x89xf32>
    %111 = tpu.matmul %110, %109, %cst_36 {dimension_numbers = #tpu.dot_dimension_numbers<[1], [0], [0], [1], [0, 0, 1, 1], [], []>} : vector<32x256xf32>, vector<256x89xf32>, vector<32x89xf32> -> vector<32x89xf32>
    %c0_37 = arith.constant 0 : index
    %c0_38 = arith.constant 0 : index
    %112 = vector.load %arg5[%c0_37, %c0_38] : memref<32x1xf32, #tpu.memory_space<vmem>>, vector<32x1xf32>
    %113 = vector.broadcast %112 : vector<32x1xf32> to vector<32x89xf32>
    %114 = arith.addf %111, %113 : vector<32x89xf32>
    %cst_39 = arith.constant 0.000000e+00 : f32
    %115 = vector.broadcast %cst_39 : f32 to vector<32x89xf32>
    %116 = arith.maximumf %114, %115 : vector<32x89xf32>
    %c0_40 = arith.constant 0 : index
    %c0_41 = arith.constant 0 : index
    %c0_42 = arith.constant 0 : index
    %117 = vector.load %arg6[%c0_40, %c0_41, %c0_42] : memref<4x32x89xf32, #tpu.memory_space<vmem>>, vector<4x32x89xf32>
    %118 = vector.shape_cast %116 : vector<32x89xf32> to vector<1x32x89xf32>
    %119 = vector.broadcast %118 : vector<1x32x89xf32> to vector<4x32x89xf32>
    %120 = arith.mulf %117, %119 : vector<4x32x89xf32>
    %cst_43 = arith.constant dense<0.000000e+00> : vector<4x89xf32>
    %121 = vector.multi_reduction <add>, %120, %cst_43 [1] : vector<4x32x89xf32> to vector<4x89xf32>
    %cst_44 = arith.constant 0.000000e+00 : f32
    %122 = vector.broadcast %cst_44 : f32 to vector<1x4xf32>
    %c0_i32_45 = arith.constant 0 : i32
    %123 = vector.broadcast %c0_i32_45 : i32 to vector<1x4xi32>
    %124 = arith.cmpi eq, %0, %123 : vector<1x4xi32>
    %125 = vector.extract_strided_slice %121 {offsets = [0, 0], sizes = [1, 89], strides = [1, 1]} : vector<4x89xf32> to vector<1x89xf32>
    %126 = vector.shape_cast %125 : vector<1x89xf32> to vector<1x1x89xf32>
    %cst_46 = arith.constant dense<0.000000e+00> : vector<1xf32>
    %127 = vector.multi_reduction <add>, %126, %cst_46 [1, 2] : vector<1x1x89xf32> to vector<1xf32>
    %128 = vector.shape_cast %127 : vector<1xf32> to vector<1x1x1xf32>
    %129 = vector.extract %128[0, 0, 0] : f32 from vector<1x1x1xf32>
    %cst_47 = arith.constant 0.000000e+00 : f32
    %130 = vector.broadcast %129 : f32 to vector<1x4xf32>
    %131 = vector.broadcast %cst_47 : f32 to vector<1x4xf32>
    %132 = arith.select %124, %130, %131 : vector<1x4xi1>, vector<1x4xf32>
    %133 = arith.addf %122, %132 : vector<1x4xf32>
    %c1_i32_48 = arith.constant 1 : i32
    %134 = vector.broadcast %c1_i32_48 : i32 to vector<1x4xi32>
    %135 = arith.cmpi eq, %0, %134 : vector<1x4xi32>
    %136 = vector.extract_strided_slice %121 {offsets = [1, 0], sizes = [1, 89], strides = [1, 1]} : vector<4x89xf32> to vector<1x89xf32>
    %137 = vector.shape_cast %136 : vector<1x89xf32> to vector<1x1x89xf32>
    %cst_49 = arith.constant dense<0.000000e+00> : vector<1xf32>
    %138 = vector.multi_reduction <add>, %137, %cst_49 [1, 2] : vector<1x1x89xf32> to vector<1xf32>
    %139 = vector.shape_cast %138 : vector<1xf32> to vector<1x1x1xf32>
    %140 = vector.extract %139[0, 0, 0] : f32 from vector<1x1x1xf32>
    %cst_50 = arith.constant 0.000000e+00 : f32
    %141 = vector.broadcast %140 : f32 to vector<1x4xf32>
    %142 = vector.broadcast %cst_50 : f32 to vector<1x4xf32>
    %143 = arith.select %135, %141, %142 : vector<1x4xi1>, vector<1x4xf32>
    %144 = arith.addf %133, %143 : vector<1x4xf32>
    %c2_i32_51 = arith.constant 2 : i32
    %145 = vector.broadcast %c2_i32_51 : i32 to vector<1x4xi32>
    %146 = arith.cmpi eq, %0, %145 : vector<1x4xi32>
    %147 = vector.extract_strided_slice %121 {offsets = [2, 0], sizes = [1, 89], strides = [1, 1]} : vector<4x89xf32> to vector<1x89xf32>
    %148 = vector.shape_cast %147 : vector<1x89xf32> to vector<1x1x89xf32>
    %cst_52 = arith.constant dense<0.000000e+00> : vector<1xf32>
    %149 = vector.multi_reduction <add>, %148, %cst_52 [1, 2] : vector<1x1x89xf32> to vector<1xf32>
    %150 = vector.shape_cast %149 : vector<1xf32> to vector<1x1x1xf32>
    %151 = vector.extract %150[0, 0, 0] : f32 from vector<1x1x1xf32>
    %cst_53 = arith.constant 0.000000e+00 : f32
    %152 = vector.broadcast %151 : f32 to vector<1x4xf32>
    %153 = vector.broadcast %cst_53 : f32 to vector<1x4xf32>
    %154 = arith.select %146, %152, %153 : vector<1x4xi1>, vector<1x4xf32>
    %155 = arith.addf %144, %154 : vector<1x4xf32>
    %c3_i32_54 = arith.constant 3 : i32
    %156 = vector.broadcast %c3_i32_54 : i32 to vector<1x4xi32>
    %157 = arith.cmpi eq, %0, %156 : vector<1x4xi32>
    %158 = vector.extract_strided_slice %121 {offsets = [3, 0], sizes = [1, 89], strides = [1, 1]} : vector<4x89xf32> to vector<1x89xf32>
    %159 = vector.shape_cast %158 : vector<1x89xf32> to vector<1x1x89xf32>
    %cst_55 = arith.constant dense<0.000000e+00> : vector<1xf32>
    %160 = vector.multi_reduction <add>, %159, %cst_55 [1, 2] : vector<1x1x89xf32> to vector<1xf32>
    %161 = vector.shape_cast %160 : vector<1xf32> to vector<1x1x1xf32>
    %162 = vector.extract %161[0, 0, 0] : f32 from vector<1x1x1xf32>
    %cst_56 = arith.constant 0.000000e+00 : f32
    %163 = vector.broadcast %162 : f32 to vector<1x4xf32>
    %164 = vector.broadcast %cst_56 : f32 to vector<1x4xf32>
    %165 = arith.select %157, %163, %164 : vector<1x4xi1>, vector<1x4xf32>
    %166 = arith.addf %155, %165 : vector<1x4xf32>
    %c0_57 = arith.constant 0 : index
    %c0_58 = arith.constant 0 : index
    %167 = vector.load %arg2[%c0_57, %c0_58] : memref<16x64xf32, #tpu.memory_space<vmem>>, vector<16x64xf32>
    %c2 = arith.constant 2 : index
    %c0_59 = arith.constant 0 : index
    %c0_60 = arith.constant 0 : index
    %168 = vector.load %arg1[%c2, %c0_59, %c0_60] : memref<4x64x400xf32, #tpu.memory_space<vmem>>, vector<1x64x400xf32>
    %169 = vector.shape_cast %168 : vector<1x64x400xf32> to vector<64x400xf32>
    %cst_61 = arith.constant dense<0.000000e+00> : vector<16x400xf32>
    %170 = tpu.matmul %167, %169, %cst_61 {dimension_numbers = #tpu.dot_dimension_numbers<[1], [0], [0], [1], [0, 0, 1, 1], [], []>} : vector<16x64xf32>, vector<64x400xf32>, vector<16x400xf32> -> vector<16x400xf32>
    %c0_62 = arith.constant 0 : index
    %c0_63 = arith.constant 0 : index
    %171 = vector.load %arg3[%c0_62, %c0_63] : memref<16x1xf32, #tpu.memory_space<vmem>>, vector<16x1xf32>
    %172 = vector.broadcast %171 : vector<16x1xf32> to vector<16x400xf32>
    %173 = arith.addf %170, %172 : vector<16x400xf32>
    %cst_64 = arith.constant 0.000000e+00 : f32
    %174 = vector.broadcast %cst_64 : f32 to vector<16x400xf32>
    %175 = arith.maximumf %173, %174 : vector<16x400xf32>
    %176 = vector.extract_strided_slice %175 {offsets = [0, 0], sizes = [16, 89], strides = [1, 1]} : vector<16x400xf32> to vector<16x89xf32>
    %177 = vector.extract_strided_slice %175 {offsets = [0, 100], sizes = [16, 89], strides = [1, 1]} : vector<16x400xf32> to vector<16x89xf32>
    %178 = vector.extract_strided_slice %175 {offsets = [0, 1], sizes = [16, 89], strides = [1, 1]} : vector<16x400xf32> to vector<16x89xf32>
    %179 = vector.extract_strided_slice %175 {offsets = [0, 101], sizes = [16, 89], strides = [1, 1]} : vector<16x400xf32> to vector<16x89xf32>
    %180 = vector.extract_strided_slice %175 {offsets = [0, 200], sizes = [16, 89], strides = [1, 1]} : vector<16x400xf32> to vector<16x89xf32>
    %181 = vector.extract_strided_slice %175 {offsets = [0, 300], sizes = [16, 89], strides = [1, 1]} : vector<16x400xf32> to vector<16x89xf32>
    %182 = vector.extract_strided_slice %175 {offsets = [0, 201], sizes = [16, 89], strides = [1, 1]} : vector<16x400xf32> to vector<16x89xf32>
    %183 = vector.extract_strided_slice %175 {offsets = [0, 301], sizes = [16, 89], strides = [1, 1]} : vector<16x400xf32> to vector<16x89xf32>
    %184 = vector.extract_strided_slice %175 {offsets = [0, 10], sizes = [16, 89], strides = [1, 1]} : vector<16x400xf32> to vector<16x89xf32>
    %185 = vector.extract_strided_slice %175 {offsets = [0, 110], sizes = [16, 89], strides = [1, 1]} : vector<16x400xf32> to vector<16x89xf32>
    %186 = vector.extract_strided_slice %175 {offsets = [0, 11], sizes = [16, 89], strides = [1, 1]} : vector<16x400xf32> to vector<16x89xf32>
    %187 = vector.extract_strided_slice %175 {offsets = [0, 111], sizes = [16, 89], strides = [1, 1]} : vector<16x400xf32> to vector<16x89xf32>
    %188 = vector.extract_strided_slice %175 {offsets = [0, 210], sizes = [16, 89], strides = [1, 1]} : vector<16x400xf32> to vector<16x89xf32>
    %189 = vector.extract_strided_slice %175 {offsets = [0, 310], sizes = [16, 89], strides = [1, 1]} : vector<16x400xf32> to vector<16x89xf32>
    %190 = vector.extract_strided_slice %175 {offsets = [0, 211], sizes = [16, 89], strides = [1, 1]} : vector<16x400xf32> to vector<16x89xf32>
    %191 = vector.extract_strided_slice %175 {offsets = [0, 311], sizes = [16, 89], strides = [1, 1]} : vector<16x400xf32> to vector<16x89xf32>
    %192 = tpu.concatenate %176, %177, %178, %179, %180, %181, %182, %183, %184, %185, %186, %187, %188, %189, %190, %191 in 0 : vector<16x89xf32>, vector<16x89xf32>, vector<16x89xf32>, vector<16x89xf32>, vector<16x89xf32>, vector<16x89xf32>, vector<16x89xf32>, vector<16x89xf32>, vector<16x89xf32>, vector<16x89xf32>, vector<16x89xf32>, vector<16x89xf32>, vector<16x89xf32>, vector<16x89xf32>, vector<16x89xf32>, vector<16x89xf32> -> vector<256x89xf32>
    %c0_65 = arith.constant 0 : index
    %c0_66 = arith.constant 0 : index
    %193 = vector.load %arg4[%c0_65, %c0_66] : memref<32x256xf32, #tpu.memory_space<vmem>>, vector<32x256xf32>
    %cst_67 = arith.constant dense<0.000000e+00> : vector<32x89xf32>
    %194 = tpu.matmul %193, %192, %cst_67 {dimension_numbers = #tpu.dot_dimension_numbers<[1], [0], [0], [1], [0, 0, 1, 1], [], []>} : vector<32x256xf32>, vector<256x89xf32>, vector<32x89xf32> -> vector<32x89xf32>
    %c0_68 = arith.constant 0 : index
    %c0_69 = arith.constant 0 : index
    %195 = vector.load %arg5[%c0_68, %c0_69] : memref<32x1xf32, #tpu.memory_space<vmem>>, vector<32x1xf32>
    %196 = vector.broadcast %195 : vector<32x1xf32> to vector<32x89xf32>
    %197 = arith.addf %194, %196 : vector<32x89xf32>
    %cst_70 = arith.constant 0.000000e+00 : f32
    %198 = vector.broadcast %cst_70 : f32 to vector<32x89xf32>
    %199 = arith.maximumf %197, %198 : vector<32x89xf32>
    %c0_71 = arith.constant 0 : index
    %c0_72 = arith.constant 0 : index
    %c0_73 = arith.constant 0 : index
    %200 = vector.load %arg6[%c0_71, %c0_72, %c0_73] : memref<4x32x89xf32, #tpu.memory_space<vmem>>, vector<4x32x89xf32>
    %201 = vector.shape_cast %199 : vector<32x89xf32> to vector<1x32x89xf32>
    %202 = vector.broadcast %201 : vector<1x32x89xf32> to vector<4x32x89xf32>
    %203 = arith.mulf %200, %202 : vector<4x32x89xf32>
    %cst_74 = arith.constant dense<0.000000e+00> : vector<4x89xf32>
    %204 = vector.multi_reduction <add>, %203, %cst_74 [1] : vector<4x32x89xf32> to vector<4x89xf32>
    %cst_75 = arith.constant 0.000000e+00 : f32
    %205 = vector.broadcast %cst_75 : f32 to vector<1x4xf32>
    %c0_i32_76 = arith.constant 0 : i32
    %206 = vector.broadcast %c0_i32_76 : i32 to vector<1x4xi32>
    %207 = arith.cmpi eq, %0, %206 : vector<1x4xi32>
    %208 = vector.extract_strided_slice %204 {offsets = [0, 0], sizes = [1, 89], strides = [1, 1]} : vector<4x89xf32> to vector<1x89xf32>
    %209 = vector.shape_cast %208 : vector<1x89xf32> to vector<1x1x89xf32>
    %cst_77 = arith.constant dense<0.000000e+00> : vector<1xf32>
    %210 = vector.multi_reduction <add>, %209, %cst_77 [1, 2] : vector<1x1x89xf32> to vector<1xf32>
    %211 = vector.shape_cast %210 : vector<1xf32> to vector<1x1x1xf32>
    %212 = vector.extract %211[0, 0, 0] : f32 from vector<1x1x1xf32>
    %cst_78 = arith.constant 0.000000e+00 : f32
    %213 = vector.broadcast %212 : f32 to vector<1x4xf32>
    %214 = vector.broadcast %cst_78 : f32 to vector<1x4xf32>
    %215 = arith.select %207, %213, %214 : vector<1x4xi1>, vector<1x4xf32>
    %216 = arith.addf %205, %215 : vector<1x4xf32>
    %c1_i32_79 = arith.constant 1 : i32
    %217 = vector.broadcast %c1_i32_79 : i32 to vector<1x4xi32>
    %218 = arith.cmpi eq, %0, %217 : vector<1x4xi32>
    %219 = vector.extract_strided_slice %204 {offsets = [1, 0], sizes = [1, 89], strides = [1, 1]} : vector<4x89xf32> to vector<1x89xf32>
    %220 = vector.shape_cast %219 : vector<1x89xf32> to vector<1x1x89xf32>
    %cst_80 = arith.constant dense<0.000000e+00> : vector<1xf32>
    %221 = vector.multi_reduction <add>, %220, %cst_80 [1, 2] : vector<1x1x89xf32> to vector<1xf32>
    %222 = vector.shape_cast %221 : vector<1xf32> to vector<1x1x1xf32>
    %223 = vector.extract %222[0, 0, 0] : f32 from vector<1x1x1xf32>
    %cst_81 = arith.constant 0.000000e+00 : f32
    %224 = vector.broadcast %223 : f32 to vector<1x4xf32>
    %225 = vector.broadcast %cst_81 : f32 to vector<1x4xf32>
    %226 = arith.select %218, %224, %225 : vector<1x4xi1>, vector<1x4xf32>
    %227 = arith.addf %216, %226 : vector<1x4xf32>
    %c2_i32_82 = arith.constant 2 : i32
    %228 = vector.broadcast %c2_i32_82 : i32 to vector<1x4xi32>
    %229 = arith.cmpi eq, %0, %228 : vector<1x4xi32>
    %230 = vector.extract_strided_slice %204 {offsets = [2, 0], sizes = [1, 89], strides = [1, 1]} : vector<4x89xf32> to vector<1x89xf32>
    %231 = vector.shape_cast %230 : vector<1x89xf32> to vector<1x1x89xf32>
    %cst_83 = arith.constant dense<0.000000e+00> : vector<1xf32>
    %232 = vector.multi_reduction <add>, %231, %cst_83 [1, 2] : vector<1x1x89xf32> to vector<1xf32>
    %233 = vector.shape_cast %232 : vector<1xf32> to vector<1x1x1xf32>
    %234 = vector.extract %233[0, 0, 0] : f32 from vector<1x1x1xf32>
    %cst_84 = arith.constant 0.000000e+00 : f32
    %235 = vector.broadcast %234 : f32 to vector<1x4xf32>
    %236 = vector.broadcast %cst_84 : f32 to vector<1x4xf32>
    %237 = arith.select %229, %235, %236 : vector<1x4xi1>, vector<1x4xf32>
    %238 = arith.addf %227, %237 : vector<1x4xf32>
    %c3_i32_85 = arith.constant 3 : i32
    %239 = vector.broadcast %c3_i32_85 : i32 to vector<1x4xi32>
    %240 = arith.cmpi eq, %0, %239 : vector<1x4xi32>
    %241 = vector.extract_strided_slice %204 {offsets = [3, 0], sizes = [1, 89], strides = [1, 1]} : vector<4x89xf32> to vector<1x89xf32>
    %242 = vector.shape_cast %241 : vector<1x89xf32> to vector<1x1x89xf32>
    %cst_86 = arith.constant dense<0.000000e+00> : vector<1xf32>
    %243 = vector.multi_reduction <add>, %242, %cst_86 [1, 2] : vector<1x1x89xf32> to vector<1xf32>
    %244 = vector.shape_cast %243 : vector<1xf32> to vector<1x1x1xf32>
    %245 = vector.extract %244[0, 0, 0] : f32 from vector<1x1x1xf32>
    %cst_87 = arith.constant 0.000000e+00 : f32
    %246 = vector.broadcast %245 : f32 to vector<1x4xf32>
    %247 = vector.broadcast %cst_87 : f32 to vector<1x4xf32>
    %248 = arith.select %240, %246, %247 : vector<1x4xi1>, vector<1x4xf32>
    %249 = arith.addf %238, %248 : vector<1x4xf32>
    %c0_88 = arith.constant 0 : index
    %c0_89 = arith.constant 0 : index
    %250 = vector.load %arg2[%c0_88, %c0_89] : memref<16x64xf32, #tpu.memory_space<vmem>>, vector<16x64xf32>
    %c3 = arith.constant 3 : index
    %c0_90 = arith.constant 0 : index
    %c0_91 = arith.constant 0 : index
    %251 = vector.load %arg1[%c3, %c0_90, %c0_91] : memref<4x64x400xf32, #tpu.memory_space<vmem>>, vector<1x64x400xf32>
    %252 = vector.shape_cast %251 : vector<1x64x400xf32> to vector<64x400xf32>
    %cst_92 = arith.constant dense<0.000000e+00> : vector<16x400xf32>
    %253 = tpu.matmul %250, %252, %cst_92 {dimension_numbers = #tpu.dot_dimension_numbers<[1], [0], [0], [1], [0, 0, 1, 1], [], []>} : vector<16x64xf32>, vector<64x400xf32>, vector<16x400xf32> -> vector<16x400xf32>
    %c0_93 = arith.constant 0 : index
    %c0_94 = arith.constant 0 : index
    %254 = vector.load %arg3[%c0_93, %c0_94] : memref<16x1xf32, #tpu.memory_space<vmem>>, vector<16x1xf32>
    %255 = vector.broadcast %254 : vector<16x1xf32> to vector<16x400xf32>
    %256 = arith.addf %253, %255 : vector<16x400xf32>
    %cst_95 = arith.constant 0.000000e+00 : f32
    %257 = vector.broadcast %cst_95 : f32 to vector<16x400xf32>
    %258 = arith.maximumf %256, %257 : vector<16x400xf32>
    %259 = vector.extract_strided_slice %258 {offsets = [0, 0], sizes = [16, 89], strides = [1, 1]} : vector<16x400xf32> to vector<16x89xf32>
    %260 = vector.extract_strided_slice %258 {offsets = [0, 100], sizes = [16, 89], strides = [1, 1]} : vector<16x400xf32> to vector<16x89xf32>
    %261 = vector.extract_strided_slice %258 {offsets = [0, 1], sizes = [16, 89], strides = [1, 1]} : vector<16x400xf32> to vector<16x89xf32>
    %262 = vector.extract_strided_slice %258 {offsets = [0, 101], sizes = [16, 89], strides = [1, 1]} : vector<16x400xf32> to vector<16x89xf32>
    %263 = vector.extract_strided_slice %258 {offsets = [0, 200], sizes = [16, 89], strides = [1, 1]} : vector<16x400xf32> to vector<16x89xf32>
    %264 = vector.extract_strided_slice %258 {offsets = [0, 300], sizes = [16, 89], strides = [1, 1]} : vector<16x400xf32> to vector<16x89xf32>
    %265 = vector.extract_strided_slice %258 {offsets = [0, 201], sizes = [16, 89], strides = [1, 1]} : vector<16x400xf32> to vector<16x89xf32>
    %266 = vector.extract_strided_slice %258 {offsets = [0, 301], sizes = [16, 89], strides = [1, 1]} : vector<16x400xf32> to vector<16x89xf32>
    %267 = vector.extract_strided_slice %258 {offsets = [0, 10], sizes = [16, 89], strides = [1, 1]} : vector<16x400xf32> to vector<16x89xf32>
    %268 = vector.extract_strided_slice %258 {offsets = [0, 110], sizes = [16, 89], strides = [1, 1]} : vector<16x400xf32> to vector<16x89xf32>
    %269 = vector.extract_strided_slice %258 {offsets = [0, 11], sizes = [16, 89], strides = [1, 1]} : vector<16x400xf32> to vector<16x89xf32>
    %270 = vector.extract_strided_slice %258 {offsets = [0, 111], sizes = [16, 89], strides = [1, 1]} : vector<16x400xf32> to vector<16x89xf32>
    %271 = vector.extract_strided_slice %258 {offsets = [0, 210], sizes = [16, 89], strides = [1, 1]} : vector<16x400xf32> to vector<16x89xf32>
    %272 = vector.extract_strided_slice %258 {offsets = [0, 310], sizes = [16, 89], strides = [1, 1]} : vector<16x400xf32> to vector<16x89xf32>
    %273 = vector.extract_strided_slice %258 {offsets = [0, 211], sizes = [16, 89], strides = [1, 1]} : vector<16x400xf32> to vector<16x89xf32>
    %274 = vector.extract_strided_slice %258 {offsets = [0, 311], sizes = [16, 89], strides = [1, 1]} : vector<16x400xf32> to vector<16x89xf32>
    %275 = tpu.concatenate %259, %260, %261, %262, %263, %264, %265, %266, %267, %268, %269, %270, %271, %272, %273, %274 in 0 : vector<16x89xf32>, vector<16x89xf32>, vector<16x89xf32>, vector<16x89xf32>, vector<16x89xf32>, vector<16x89xf32>, vector<16x89xf32>, vector<16x89xf32>, vector<16x89xf32>, vector<16x89xf32>, vector<16x89xf32>, vector<16x89xf32>, vector<16x89xf32>, vector<16x89xf32>, vector<16x89xf32>, vector<16x89xf32> -> vector<256x89xf32>
    %c0_96 = arith.constant 0 : index
    %c0_97 = arith.constant 0 : index
    %276 = vector.load %arg4[%c0_96, %c0_97] : memref<32x256xf32, #tpu.memory_space<vmem>>, vector<32x256xf32>
    %cst_98 = arith.constant dense<0.000000e+00> : vector<32x89xf32>
    %277 = tpu.matmul %276, %275, %cst_98 {dimension_numbers = #tpu.dot_dimension_numbers<[1], [0], [0], [1], [0, 0, 1, 1], [], []>} : vector<32x256xf32>, vector<256x89xf32>, vector<32x89xf32> -> vector<32x89xf32>
    %c0_99 = arith.constant 0 : index
    %c0_100 = arith.constant 0 : index
    %278 = vector.load %arg5[%c0_99, %c0_100] : memref<32x1xf32, #tpu.memory_space<vmem>>, vector<32x1xf32>
    %279 = vector.broadcast %278 : vector<32x1xf32> to vector<32x89xf32>
    %280 = arith.addf %277, %279 : vector<32x89xf32>
    %cst_101 = arith.constant 0.000000e+00 : f32
    %281 = vector.broadcast %cst_101 : f32 to vector<32x89xf32>
    %282 = arith.maximumf %280, %281 : vector<32x89xf32>
    %c0_102 = arith.constant 0 : index
    %c0_103 = arith.constant 0 : index
    %c0_104 = arith.constant 0 : index
    %283 = vector.load %arg6[%c0_102, %c0_103, %c0_104] : memref<4x32x89xf32, #tpu.memory_space<vmem>>, vector<4x32x89xf32>
    %284 = vector.shape_cast %282 : vector<32x89xf32> to vector<1x32x89xf32>
    %285 = vector.broadcast %284 : vector<1x32x89xf32> to vector<4x32x89xf32>
    %286 = arith.mulf %283, %285 : vector<4x32x89xf32>
    %cst_105 = arith.constant dense<0.000000e+00> : vector<4x89xf32>
    %287 = vector.multi_reduction <add>, %286, %cst_105 [1] : vector<4x32x89xf32> to vector<4x89xf32>
    %cst_106 = arith.constant 0.000000e+00 : f32
    %288 = vector.broadcast %cst_106 : f32 to vector<1x4xf32>
    %c0_i32_107 = arith.constant 0 : i32
    %289 = vector.broadcast %c0_i32_107 : i32 to vector<1x4xi32>
    %290 = arith.cmpi eq, %0, %289 : vector<1x4xi32>
    %291 = vector.extract_strided_slice %287 {offsets = [0, 0], sizes = [1, 89], strides = [1, 1]} : vector<4x89xf32> to vector<1x89xf32>
    %292 = vector.shape_cast %291 : vector<1x89xf32> to vector<1x1x89xf32>
    %cst_108 = arith.constant dense<0.000000e+00> : vector<1xf32>
    %293 = vector.multi_reduction <add>, %292, %cst_108 [1, 2] : vector<1x1x89xf32> to vector<1xf32>
    %294 = vector.shape_cast %293 : vector<1xf32> to vector<1x1x1xf32>
    %295 = vector.extract %294[0, 0, 0] : f32 from vector<1x1x1xf32>
    %cst_109 = arith.constant 0.000000e+00 : f32
    %296 = vector.broadcast %295 : f32 to vector<1x4xf32>
    %297 = vector.broadcast %cst_109 : f32 to vector<1x4xf32>
    %298 = arith.select %290, %296, %297 : vector<1x4xi1>, vector<1x4xf32>
    %299 = arith.addf %288, %298 : vector<1x4xf32>
    %c1_i32_110 = arith.constant 1 : i32
    %300 = vector.broadcast %c1_i32_110 : i32 to vector<1x4xi32>
    %301 = arith.cmpi eq, %0, %300 : vector<1x4xi32>
    %302 = vector.extract_strided_slice %287 {offsets = [1, 0], sizes = [1, 89], strides = [1, 1]} : vector<4x89xf32> to vector<1x89xf32>
    %303 = vector.shape_cast %302 : vector<1x89xf32> to vector<1x1x89xf32>
    %cst_111 = arith.constant dense<0.000000e+00> : vector<1xf32>
    %304 = vector.multi_reduction <add>, %303, %cst_111 [1, 2] : vector<1x1x89xf32> to vector<1xf32>
    %305 = vector.shape_cast %304 : vector<1xf32> to vector<1x1x1xf32>
    %306 = vector.extract %305[0, 0, 0] : f32 from vector<1x1x1xf32>
    %cst_112 = arith.constant 0.000000e+00 : f32
    %307 = vector.broadcast %306 : f32 to vector<1x4xf32>
    %308 = vector.broadcast %cst_112 : f32 to vector<1x4xf32>
    %309 = arith.select %301, %307, %308 : vector<1x4xi1>, vector<1x4xf32>
    %310 = arith.addf %299, %309 : vector<1x4xf32>
    %c2_i32_113 = arith.constant 2 : i32
    %311 = vector.broadcast %c2_i32_113 : i32 to vector<1x4xi32>
    %312 = arith.cmpi eq, %0, %311 : vector<1x4xi32>
    %313 = vector.extract_strided_slice %287 {offsets = [2, 0], sizes = [1, 89], strides = [1, 1]} : vector<4x89xf32> to vector<1x89xf32>
    %314 = vector.shape_cast %313 : vector<1x89xf32> to vector<1x1x89xf32>
    %cst_114 = arith.constant dense<0.000000e+00> : vector<1xf32>
    %315 = vector.multi_reduction <add>, %314, %cst_114 [1, 2] : vector<1x1x89xf32> to vector<1xf32>
    %316 = vector.shape_cast %315 : vector<1xf32> to vector<1x1x1xf32>
    %317 = vector.extract %316[0, 0, 0] : f32 from vector<1x1x1xf32>
    %cst_115 = arith.constant 0.000000e+00 : f32
    %318 = vector.broadcast %317 : f32 to vector<1x4xf32>
    %319 = vector.broadcast %cst_115 : f32 to vector<1x4xf32>
    %320 = arith.select %312, %318, %319 : vector<1x4xi1>, vector<1x4xf32>
    %321 = arith.addf %310, %320 : vector<1x4xf32>
    %c3_i32_116 = arith.constant 3 : i32
    %322 = vector.broadcast %c3_i32_116 : i32 to vector<1x4xi32>
    %323 = arith.cmpi eq, %0, %322 : vector<1x4xi32>
    %324 = vector.extract_strided_slice %287 {offsets = [3, 0], sizes = [1, 89], strides = [1, 1]} : vector<4x89xf32> to vector<1x89xf32>
    %325 = vector.shape_cast %324 : vector<1x89xf32> to vector<1x1x89xf32>
    %cst_117 = arith.constant dense<0.000000e+00> : vector<1xf32>
    %326 = vector.multi_reduction <add>, %325, %cst_117 [1, 2] : vector<1x1x89xf32> to vector<1xf32>
    %327 = vector.shape_cast %326 : vector<1xf32> to vector<1x1x1xf32>
    %328 = vector.extract %327[0, 0, 0] : f32 from vector<1x1x1xf32>
    %cst_118 = arith.constant 0.000000e+00 : f32
    %329 = vector.broadcast %328 : f32 to vector<1x4xf32>
    %330 = vector.broadcast %cst_118 : f32 to vector<1x4xf32>
    %331 = arith.select %323, %329, %330 : vector<1x4xi1>, vector<1x4xf32>
    %332 = arith.addf %321, %331 : vector<1x4xf32>
    %333 = tpu.concatenate %83, %166, %249, %332 in 0 : vector<1x4xf32>, vector<1x4xf32>, vector<1x4xf32>, vector<1x4xf32> -> vector<4x4xf32>
    %c0_119 = arith.constant 0 : index
    %c0_120 = arith.constant 0 : index
    %334 = vector.load %arg7[%c0_119, %c0_120] : memref<1x4xf32, #tpu.memory_space<vmem>>, vector<1x4xf32>
    %335 = vector.broadcast %334 : vector<1x4xf32> to vector<4x4xf32>
    %336 = arith.addf %333, %335 : vector<4x4xf32>
    %c0_121 = arith.constant 0 : index
    %c0_122 = arith.constant 0 : index
    %c0_123 = arith.constant 0 : index
    %337 = vector.load %arg8[%c0_121, %c0_122, %c0_123] : memref<1x4x4xf32, #tpu.memory_space<vmem>>, vector<1x4x4xf32>
    %338 = vector.shape_cast %337 : vector<1x4x4xf32> to vector<4x4xf32>
    %339 = vector.shape_cast %336 : vector<4x4xf32> to vector<1x4x4xf32>
    tpu.vector_store %arg8[%c0_121, %c0_122, %c0_123], %339 {strides = array<i32>} : memref<1x4x4xf32, #tpu.memory_space<vmem>>, vector<1x4x4xf32>,
    return
  }
  func.func @transform_0(%arg0: i32) -> (i32, i32, i32) {
    %c0_i32 = arith.constant 0 : i32
    %c0_i32_0 = arith.constant 0 : i32
    %c0_i32_1 = arith.constant 0 : i32
    return %arg0, %c0_i32, %c0_i32_0 : i32, i32, i32
  }
  func.func @transform_1(%arg0: i32) -> (i32, i32) {
    %c0_i32 = arith.constant 0 : i32
    %c0_i32_0 = arith.constant 0 : i32
    %c0_i32_1 = arith.constant 0 : i32
    return %c0_i32, %c0_i32_0 : i32, i32
  }
  func.func @transform_2(%arg0: i32) -> (i32, i32) {
    %c0_i32 = arith.constant 0 : i32
    %c0_i32_0 = arith.constant 0 : i32
    %c0_i32_1 = arith.constant 0 : i32
    return %c0_i32, %c0_i32_0 : i32, i32
  }
  func.func @transform_3(%arg0: i32) -> (i32, i32) {
    %c0_i32 = arith.constant 0 : i32
    %c0_i32_0 = arith.constant 0 : i32
    %c0_i32_1 = arith.constant 0 : i32
    return %c0_i32, %c0_i32_0 : i32, i32
  }
  func.func @transform_4(%arg0: i32) -> (i32, i32) {
    %c0_i32 = arith.constant 0 : i32
    %c0_i32_0 = arith.constant 0 : i32
    %c0_i32_1 = arith.constant 0 : i32
    return %c0_i32, %c0_i32_0 : i32, i32
  }
  func.func @transform_5(%arg0: i32) -> (i32, i32, i32) {
    %c0_i32 = arith.constant 0 : i32
    %c0_i32_0 = arith.constant 0 : i32
    %c0_i32_1 = arith.constant 0 : i32
    %c0_i32_2 = arith.constant 0 : i32
    return %c0_i32, %c0_i32_0, %c0_i32_1 : i32, i32, i32
  }
  func.func @transform_6(%arg0: i32) -> (i32, i32) {
    %c0_i32 = arith.constant 0 : i32
    %c0_i32_0 = arith.constant 0 : i32
    %c0_i32_1 = arith.constant 0 : i32
    return %c0_i32, %c0_i32_0 : i32, i32
  }
  func.func @transform_7(%arg0: i32) -> (i32, i32, i32) {
    %c0_i32 = arith.constant 0 : i32
    %c0_i32_0 = arith.constant 0 : i32
    %c0_i32_1 = arith.constant 0 : i32
    return %arg0, %c0_i32, %c0_i32_0 : i32, i32, i32
  }
}

</mosaic_0001>

<llo_original>
// kernel: conv_net_forward.1
$region0: #{conv_net_forward.1}
  #allocation0 [shape = 'u32[]', space=smem, size = 0x4, offset = 0x4, fixed_abs, tag = 'smem constant byte address 0x4 - core index']
  #allocation1 [shape = 'u32[144,128]{1,0:T(1,128)}', space=vmem, size = 0x12000, scoped, tag = 'internal scratch']
  %s0 = inlined_call_operand.vmem [shape: f32[8,64,400], index: 0, kind: input, shape index: {}]
  %s1 = inlined_call_operand.vmem [shape: f32[16,64], index: 1, kind: input, shape index: {}]
  %s2 = inlined_call_operand.vmem [shape: f32[16,1], index: 2, kind: input, shape index: {}]
  %s3 = inlined_call_operand.vmem [shape: f32[32,256], index: 3, kind: input, shape index: {}]
  %s4 = inlined_call_operand.vmem [shape: f32[32,1], index: 4, kind: input, shape index: {}]
  %s5 = inlined_call_operand.vmem [shape: f32[4,32,89], index: 5, kind: input, shape index: {}]
  %s6 = inlined_call_operand.vmem [shape: f32[1,4], index: 6, kind: input, shape index: {}]
  %s7 = inlined_call_operand.vmem [shape: f32[2,4,4], index: 7, kind: output, shape index: {}]
  %s8 = sld [smem:[#allocation0]]
  $region61: #{conv_net_forward.1} parent=0
    _
  %s10 = ssub.s32 1, %s8
  %s11 = scalar_select 0, %s10, %s8
  loop: start=0, step=1, limit=4
  $region2: #{conv_net_forward.1} parent=0 // loop_pre_header
    _
  $region3: #{conv_net_forward.1} parent=0 // loop_header
    %s13 = sphi 0, %s17
    %p14 = scmp.ge.s32.totalorder %s13, 4
    %s23 = sphi 0, %s25
    %s26 = sphi 0, %s23
    %s27 = sphi 0, %s26
    %s43 = sphi 0, %s27
    %s47 = sphi 0, %s47
    %s49 = sphi 0, %s47
    %s50 = sphi 0, %s49
    %s64 = sphi 0, %s50
    %s68 = sphi 0, %s68
    %s70 = sphi 0, %s68
    %s71 = sphi 0, %s70
    %s85 = sphi 0, %s71
    %s89 = sphi 0, %s89
    %s91 = sphi 0, %s89
    %s92 = sphi 0, %s91
    %s106 = sphi 0, %s92
    %s110 = sphi 0, %s110
    %s112 = sphi 0, %s110
    %s113 = sphi 0, %s112
    %s127 = sphi 0, %s113
    %s131 = sphi 0, %s131
    %s133 = sphi 0, %s131
    %s134 = sphi 0, %s133
    %s148 = sphi 0, %s134
    %s152 = sphi 0, %s152
    %s154 = sphi 0, %s152
    %s155 = sphi 0, %s154
    %s169 = sphi 0, %s155
    %s175 = sphi 0, %s177
    %s178 = sphi 0, %s175
    %s179 = sphi 0, %s178
    %s195 = sphi 0, %s179
  $region4: #{conv_net_forward.1} parent=0 // loop_header_branch
    %16 = sbr.rel (%p14) target = $region8
  $region5: #{conv_net_forward.1} parent=0 // loop_body
    %s18 = ssub.s32 %s13, 1
    %s19 = ssub.s32 %s13, 2
    %s20 = sadd.s32 %s13, 1
    %s21 = ssub.s32 %s13, %s20
    %p22 = scmp.eq.s32.totalorder %s21, 0
    %s24 = sadd.s32 %s23, 1
    %s25 = scalar_select %p22, %s23, %s24
    %p28 = pneg %p22
    %p29 = scmp.eq.s32.totalorder %s13, 1
    %p30 = por %p28, %p29
    %p31 = scmp.ne.s32.totalorder %s23, %s26
    %p32 = scmp.eq.s32.totalorder %s13, 0
    %p33 = por %p31, %p32
    %p34 = scmp.ne.s32.totalorder %s23, %s26
    %p35 = scmp.eq.s32.totalorder %s18, 1
    %p36 = por %p34, %p35
    %p37 = scmp.ne.s32.totalorder %s26, %s27
    %p38 = scmp.eq.s32.totalorder %s18, 0
    %p39 = por %p37, %p38
    %p40 = scmp.ne.s32.totalorder %s26, %s27
    %p41 = scmp.eq.s32.totalorder %s19, 1
    %p42 = por %p40, %p41
    %p44 = scmp.ne.s32.totalorder %s27, %s43
    %p45 = scmp.eq.s32.totalorder %s19, 0
    %p46 = por %p44, %p45
    %s48 = sadd.s32 %s47, 1
    %p51 = scmp.eq.s32.totalorder %s13, 1
    %p52 = scmp.ne.s32.totalorder %s47, %s49
    %p53 = scmp.eq.s32.totalorder %s13, 0
    %p54 = por %p52, %p53
    %p55 = scmp.ne.s32.totalorder %s47, %s49
    %p56 = scmp.eq.s32.totalorder %s18, 1
    %p57 = por %p55, %p56
    %p58 = scmp.ne.s32.totalorder %s49, %s50
    %p59 = scmp.eq.s32.totalorder %s18, 0
    %p60 = por %p58, %p59
    %p61 = scmp.ne.s32.totalorder %s49, %s50
    %p62 = scmp.eq.s32.totalorder %s19, 1
    %p63 = por %p61, %p62
    %p65 = scmp.ne.s32.totalorder %s50, %s64
    %p66 = scmp.eq.s32.totalorder %s19, 0
    %p67 = por %p65, %p66
    %s69 = sadd.s32 %s68, 1
    %p72 = scmp.eq.s32.totalorder %s13, 1
    %p73 = scmp.ne.s32.totalorder %s68, %s70
    %p74 = scmp.eq.s32.totalorder %s13, 0
    %p75 = por %p73, %p74
    %p76 = scmp.ne.s32.totalorder %s68, %s70
    %p77 = scmp.eq.s32.totalorder %s18, 1
    %p78 = por %p76, %p77
    %p79 = scmp.ne.s32.totalorder %s70, %s71
    %p80 = scmp.eq.s32.totalorder %s18, 0
    %p81 = por %p79, %p80
    %p82 = scmp.ne.s32.totalorder %s70, %s71
    %p83 = scmp.eq.s32.totalorder %s19, 1
    %p84 = por %p82, %p83
    %p86 = scmp.ne.s32.totalorder %s71, %s85
    %p87 = scmp.eq.s32.totalorder %s19, 0
    %p88 = por %p86, %p87
    %s90 = sadd.s32 %s89, 1
    %p93 = scmp.eq.s32.totalorder %s13, 1
    %p94 = scmp.ne.s32.totalorder %s89, %s91
    %p95 = scmp.eq.s32.totalorder %s13, 0
    %p96 = por %p94, %p95
    %p97 = scmp.ne.s32.totalorder %s89, %s91
    %p98 = scmp.eq.s32.totalorder %s18, 1
    %p99 = por %p97, %p98
    %p100 = scmp.ne.s32.totalorder %s91, %s92
    %p101 = scmp.eq.s32.totalorder %s18, 0
    %p102 = por %p100, %p101
    %p103 = scmp.ne.s32.totalorder %s91, %s92
    %p104 = scmp.eq.s32.totalorder %s19, 1
    %p105 = por %p103, %p104
    %p107 = scmp.ne.s32.totalorder %s92, %s106
    %p108 = scmp.eq.s32.totalorder %s19, 0
    %p109 = por %p107, %p108
    %s111 = sadd.s32 %s110, 1
    %p114 = scmp.eq.s32.totalorder %s13, 1
    %p115 = scmp.ne.s32.totalorder %s110, %s112
    %p116 = scmp.eq.s32.totalorder %s13, 0
    %p117 = por %p115, %p116
    %p118 = scmp.ne.s32.totalorder %s110, %s112
    %p119 = scmp.eq.s32.totalorder %s18, 1
    %p120 = por %p118, %p119
    %p121 = scmp.ne.s32.totalorder %s112, %s113
    %p122 = scmp.eq.s32.totalorder %s18, 0
    %p123 = por %p121, %p122
    %p124 = scmp.ne.s32.totalorder %s112, %s113
    %p125 = scmp.eq.s32.totalorder %s19, 1
    %p126 = por %p124, %p125
    %p128 = scmp.ne.s32.totalorder %s113, %s127
    %p129 = scmp.eq.s32.totalorder %s19, 0
    %p130 = por %p128, %p129
    %s132 = sadd.s32 %s131, 1
    %p135 = scmp.eq.s32.totalorder %s13, 1
    %p136 = scmp.ne.s32.totalorder %s131, %s133
    %p137 = scmp.eq.s32.totalorder %s13, 0
    %p138 = por %p136, %p137
    %p139 = scmp.ne.s32.totalorder %s131, %s133
    %p140 = scmp.eq.s32.totalorder %s18, 1
    %p141 = por %p139, %p140
    %p142 = scmp.ne.s32.totalorder %s133, %s134
    %p143 = scmp.eq.s32.totalorder %s18, 0
    %p144 = por %p142, %p143
    %p145 = scmp.ne.s32.totalorder %s133, %s134
    %p146 = scmp.eq.s32.totalorder %s19, 1
    %p147 = por %p145, %p146
    %p149 = scmp.ne.s32.totalorder %s134, %s148
    %p150 = scmp.eq.s32.totalorder %s19, 0
    %p151 = por %p149, %p150
    %s153 = sadd.s32 %s152, 1
    %p156 = scmp.eq.s32.totalorder %s13, 1
    %p157 = scmp.ne.s32.totalorder %s152, %s154
    %p158 = scmp.eq.s32.totalorder %s13, 0
    %p159 = por %p157, %p158
    %p160 = scmp.ne.s32.totalorder %s152, %s154
    %p161 = scmp.eq.s32.totalorder %s18, 1
    %p162 = por %p160, %p161
    %p163 = scmp.ne.s32.totalorder %s154, %s155
    %p164 = scmp.eq.s32.totalorder %s18, 0
    %p165 = por %p163, %p164
    %p166 = scmp.ne.s32.totalorder %s154, %s155
    %p167 = scmp.eq.s32.totalorder %s19, 1
    %p168 = por %p166, %p167
    %p170 = scmp.ne.s32.totalorder %s155, %s169
    %p171 = scmp.eq.s32.totalorder %s19, 0
    %p172 = por %p170, %p171
    %s173 = ssub.s32 %s13, %s20
    %p174 = scmp.eq.s32.totalorder %s173, 0
    %s176 = sadd.s32 %s175, 1
    %s177 = scalar_select %p174, %s175, %s176
    %p180 = pneg %p174
    %p181 = scmp.eq.s32.totalorder %s13, 1
    %p182 = por %p180, %p181
    %p183 = scmp.ne.s32.totalorder %s175, %s178
    %p184 = scmp.eq.s32.totalorder %s13, 0
    %p185 = por %p183, %p184
    %p186 = scmp.ne.s32.totalorder %s175, %s178
    %p187 = scmp.eq.s32.totalorder %s18, 1
    %p188 = por %p186, %p187
    %p189 = scmp.ne.s32.totalorder %s178, %s179
    %p190 = scmp.eq.s32.totalorder %s18, 0
    %p191 = por %p189, %p190
    %p192 = scmp.ne.s32.totalorder %s178, %s179
    %p193 = scmp.eq.s32.totalorder %s19, 1
    %p194 = por %p192, %p193
    %p196 = scmp.ne.s32.totalorder %s179, %s195
    %p197 = scmp.eq.s32.totalorder %s19, 0
    %p198 = por %p196, %p197
    %p199 = scmp.le.s32.totalorder 1, %s13
    %p200 = scmp.lt.s32.totalorder %s13, 3
    %p201 = pnand %p199, %p200
    %p202 = pneg %p201
    // Predicated region
    $region9: #{conv_net_forward.1} parent=5 // pred_check
      _
    $region10: #{conv_net_forward.1} parent=5 // pred_check_branch
      %204 = sbr.rel (%p201) target = $region12
    $region11: #{conv_net_forward.1} parent=5 // pred_region
      %s205 = ssub.s32 %s13, 1
      // Predicated region
      $region13: #{conv_net_forward.1} parent=11 // pred_check
        %p206 = pneg %p60
      $region14: #{conv_net_forward.1} parent=11 // pred_check_branch
        %208 = sbr.rel (%p206) target = $region16
      $region15: #{conv_net_forward.1} parent=11 // pred_region
        _
      $region16: #{conv_net_forward.1} parent=11 // pred_fallthru
        _
      // Predicated region
      $region17: #{conv_net_forward.1} parent=11 // pred_check
        %p209 = pneg %p81
      $region18: #{conv_net_forward.1} parent=11 // pred_check_branch
        %211 = sbr.rel (%p209) target = $region20
      $region19: #{conv_net_forward.1} parent=11 // pred_region
        _
      $region20: #{conv_net_forward.1} parent=11 // pred_fallthru
        _
      // Predicated region
      $region21: #{conv_net_forward.1} parent=11 // pred_check
        %p212 = pneg %p102
      $region22: #{conv_net_forward.1} parent=11 // pred_check_branch
        %214 = sbr.rel (%p212) target = $region24
      $region23: #{conv_net_forward.1} parent=11 // pred_region
        _
      $region24: #{conv_net_forward.1} parent=11 // pred_fallthru
        _
      // Predicated region
      $region25: #{conv_net_forward.1} parent=11 // pred_check
        %p215 = pneg %p123
      $region26: #{conv_net_forward.1} parent=11 // pred_check_branch
        %217 = sbr.rel (%p215) target = $region28
      $region27: #{conv_net_forward.1} parent=11 // pred_region
        _
      $region28: #{conv_net_forward.1} parent=11 // pred_fallthru
        _
      // Predicated region
      $region29: #{conv_net_forward.1} parent=11 // pred_check
        %p218 = pneg %p144
      $region30: #{conv_net_forward.1} parent=11 // pred_check_branch
        %220 = sbr.rel (%p218) target = $region32
      $region31: #{conv_net_forward.1} parent=11 // pred_region
        _
      $region32: #{conv_net_forward.1} parent=11 // pred_fallthru
        _
      // Predicated region
      $region33: #{conv_net_forward.1} parent=11 // pred_check
        %p221 = pneg %p165
      $region34: #{conv_net_forward.1} parent=11 // pred_check_branch
        %223 = sbr.rel (%p221) target = $region36
      $region35: #{conv_net_forward.1} parent=11 // pred_region
        _
      $region36: #{conv_net_forward.1} parent=11 // pred_fallthru
        _
    $region12: #{conv_net_forward.1} parent=5 // pred_fallthru
      _
    %p224 = scmp.lt.s32.totalorder %s13, 2
    // Predicated region
    $region37: #{conv_net_forward.1} parent=5 // pred_check
      %p225 = pneg %p224
    $region38: #{conv_net_forward.1} parent=5 // pred_check_branch
      %227 = sbr.rel (%p225) target = $region40
    $region39: #{conv_net_forward.1} parent=5 // pred_region
      // Predicated region
      $region41: #{conv_net_forward.1} parent=39 // pred_check
        %p228 = pneg %p33
      $region42: #{conv_net_forward.1} parent=39 // pred_check_branch
        %230 = sbr.rel (%p228) target = $region44
      $region43: #{conv_net_forward.1} parent=39 // pred_region
        %s231 = smul.u32 4, %s13
        %p232 = scmp.lt.s32.totalorder %s231, 7
        %s233 = scalar_select %p232, %s231, 7
        %s234 = smul.addr %s233, 32
        %s235 = smul.addr %s234, 8
        %s236 = scalar_lea.vmem %s0, %s235
        %s237 = smul.u32 4, %s13
      $region44: #{conv_net_forward.1} parent=39 // pred_fallthru
        _
    $region40: #{conv_net_forward.1} parent=5 // pred_fallthru
      _
    %p238 = scmp.le.s32.totalorder 1, %s13
    %p239 = scmp.lt.s32.totalorder %s13, 3
    %p240 = pnand %p238, %p239
    %p241 = pneg %p240
    // Predicated region
    $region45: #{conv_net_forward.1} parent=5 // pred_check
      _
    $region46: #{conv_net_forward.1} parent=5 // pred_check_branch
      %243 = sbr.rel (%p240) target = $region48
    $region47: #{conv_net_forward.1} parent=5 // pred_region
      %s244 = ssub.s32 %s13, 1
      %s245 = smul.u32 4, %s18
      %p246 = scmp.lt.s32.totalorder %s245, 7
      %s247 = scalar_select %p246, %s245, 7
      %s248 = smul.addr %s247, 32
      %s249 = smul.addr %s248, 8
      %s250 = scalar_lea.vmem %s0, %s249
      %p251 = pneg %p39
      %p252 = pneg %p36
      %p253 = pneg %p60
      %p254 = pneg %p57
      %p255 = pneg %p81
      %p256 = pneg %p78
      %p257 = pneg %p102
      %p258 = pneg %p99
      %p259 = pneg %p123
      %p260 = pneg %p120
      %p261 = pneg %p144
      %p262 = pneg %p141
      %p263 = pneg %p165
      %p264 = pneg %p162
      %p265 = pneg %p191
      %p266 = pneg %p188
      %p267 = scmp.lt.s32.totalorder %s18, 1
      %s268 = scalar_select %p267, %s18, 1
      %s269 = smul.addr %s268, 4
      %s270 = scalar_lea.vmem %s7, %s269
      %s271 = smul.u32 4, %s18
      %p272 = scmp.lt.s32.totalorder %s271, 7
      %s273 = scalar_select %p272, %s271, 7
      %s274 = smul.addr %s273, 32
      %s275 = smul.addr %s274, 8
      %s276 = scalar_lea.vmem %s0, %s275
      %s277 = smul.u32 4, %s18
      %p278 = scmp.lt.s32.totalorder %s18, 1
      %s279 = scalar_select %p278, %s18, 1
      %s280 = smul.addr %s279, 4
      %s281 = scalar_lea.vmem %s7, %s280
      %v282 = vlaneseq
      %v283 = vand.u32 %v282, 127
      %v284 = vld [vmem:[%s1] sm:$0xff]
      %v285 = vld [vmem:[%s1 + $0x8] sm:$0xff]
      %v286 = vld [vmem:[%s276] sm:$0xff]
      %v287 = vld [vmem:[%s276 + $0x8] sm:$0xff]
      %v288 = vld [vmem:[%s276 + $0x10] sm:$0xff]
      %v289 = vld [vmem:[%s276 + $0x18] sm:$0xff]
      %v290 = vld [vmem:[%s276 + $0x20] sm:$0xff]
      %v291 = vld [vmem:[%s276 + $0x28] sm:$0xff]
      %v292 = vld [vmem:[%s276 + $0x30] sm:$0xff]
      %v293 = vld [vmem:[%s276 + $0x38] sm:$0xff]
      %v294 = vld [vmem:[%s276 + $0x40] sm:$0xff]
      %v295 = vld [vmem:[%s276 + $0x48] sm:$0xff]
      %v296 = vld [vmem:[%s276 + $0x50] sm:$0xff]
      %v297 = vld [vmem:[%s276 + $0x58] sm:$0xff]
      %v298 = vld [vmem:[%s276 + $0x60] sm:$0xff]
      %v299 = vld [vmem:[%s276 + $0x68] sm:$0xff]
      %v300 = vld [vmem:[%s276 + $0x70] sm:$0xff]
      %v301 = vld [vmem:[%s276 + $0x78] sm:$0xff]
      %v302 = vld [vmem:[%s276 + $0x80] sm:$0xff]
      %v303 = vld [vmem:[%s276 + $0x88] sm:$0xff]
      %v304 = vld [vmem:[%s276 + $0x90] sm:$0xff]
      %v305 = vld [vmem:[%s276 + $0x98] sm:$0xff]
      %v306 = vld [vmem:[%s276 + $0xa0] sm:$0xff]
      %v307 = vld [vmem:[%s276 + $0xa8] sm:$0xff]
      %v308 = vld [vmem:[%s276 + $0xb0] sm:$0xff]
      %v309 = vld [vmem:[%s276 + $0xb8] sm:$0xff]
      %v310 = vld [vmem:[%s276 + $0xc0] sm:$0xff]
      %v311 = vld [vmem:[%s276 + $0xc8] sm:$0xff]
      %v312 = vld [vmem:[%s276 + $0xd0] sm:$0xff]
      %v313 = vld [vmem:[%s276 + $0xd8] sm:$0xff]
      %v314 = vld [vmem:[%s276 + $0xe0] sm:$0xff]
      %v315 = vld [vmem:[%s276 + $0xe8] sm:$0xff]
      %v316 = vld [vmem:[%s276 + $0xf0] sm:$0xff]
      %v317 = vld [vmem:[%s276 + $0xf8] sm:$0xff]
      %v318 = vld [vmem:[%s2] sm:$0xff]
      %v319 = vld [vmem:[%s2 + $0x8] sm:$0xff]
      %321 = vset.pattern.permute.xlu0 0
      %322 = vperm.xlu0 %321, %v318
      %v323 = vpop.permute.xlu0 %322
      %326 = vset.pattern.permute.xlu0 0
      %327 = vperm.xlu0 %326, %v319
      %v328 = vpop.permute.xlu0 %327
      %vm330 = vcmask 523264
      %v332 = vsel %vm330, %v284, 0
      %v335 = vsel %vm330, %v285, 0
      %337 = vmatprep.subr.mxu0 %v287
      %338 = vmatpush1.msra.mxu0 %v286
      %339 = vmatprep.subr.mxu0 %v291
      %340 = vmatpush1.msra.mxu0 %v290
      %341 = vmatprep.subr.mxu0 %v295
      %342 = vmatpush1.msra.mxu0 %v294
      %343 = vmatprep.subr.mxu0 %v299
      %344 = vmatpush1.msra.mxu0 %v298
      %345 = vmatprep.subr.mxu0 %v303
      %346 = vmatpush1.msra.mxu0 %v302
      %347 = vmatprep.subr.mxu0 %v307
      %348 = vmatpush1.msra.mxu0 %v306
      %349 = vmatprep.subr.mxu0 %v311
      %350 = vmatpush1.msra.mxu0 %v310
      %351 = vmatprep.subr.mxu0 %v315
      %352 = vmatpush1.msra.mxu0 %v314
      %353 = vmatprep.subr.mxu0 0.0
      %354 = vmatpush1.msra.mxu0 0.0
      %355 = vmatprep.subr.mxu0 0.0
      %356 = vmatpush1.msra.mxu0 0.0
      %357 = vmatprep.subr.mxu0 0.0
      %358 = vmatpush1.msra.mxu0 0.0
      %359 = vmatprep.subr.mxu0 0.0
      %360 = vmatpush1.msra.mxu0 0.0
      %361 = vmatprep.subr.mxu0 0.0
      %362 = vmatpush1.msra.mxu0 0.0
      %363 = vmatprep.subr.mxu0 0.0
      %364 = vmatpush1.msra.mxu0 0.0
      %365 = vmatprep.subr.mxu0 0.0
      %366 = vmatpush1.msra.mxu0 0.0
      %367 = vmatprep.subr.mxu0 0.0
      %368 = vmatpush1.msra.mxu0 0.0
      %369 = vmatprep.subr.mxu0 0.0
      %370 = vmatpush1.msra.mxu0 0.0
      %371 = vmatprep.subr.mxu0 0.0
      %372 = vmatpush1.msra.mxu0 0.0
      %373 = vmatprep.subr.mxu0 0.0
      %374 = vmatpush1.msra.mxu0 0.0
      %375 = vmatprep.subr.mxu0 0.0
      %376 = vmatpush1.msra.mxu0 0.0
      %377 = vmatprep.subr.mxu0 0.0
      %378 = vmatpush1.msra.mxu0 0.0
      %379 = vmatprep.subr.mxu0 0.0
      %380 = vmatpush1.msra.mxu0 0.0
      %381 = vmatprep.subr.mxu0 0.0
      %382 = vmatpush1.msra.mxu0 0.0
      %383 = vmatprep.subr.mxu0 0.0
      %384 = vmatpush1.msra.mxu0 0.0
      %385 = vmatprep.subr.mxu0 0.0
      %386 = vmatpush1.msra.mxu0 0.0
      %387 = vmatprep.subr.mxu0 0.0
      %388 = vmatpush1.msra.mxu0 0.0
      %389 = vmatprep.subr.mxu0 0.0
      %390 = vmatpush1.msra.mxu0 0.0
      %391 = vmatprep.subr.mxu0 0.0
      %392 = vmatpush1.msra.mxu0 0.0
      %393 = vmatprep.subr.mxu0 0.0
      %394 = vmatpush1.msra.mxu0 0.0
      %395 = vmatprep.subr.mxu0 0.0
      %396 = vmatpush1.msra.mxu0 0.0
      %397 = vmatprep.subr.mxu0 0.0
      %398 = vmatpush1.msra.mxu0 0.0
      %399 = vmatprep.subr.mxu0 0.0
      %400 = vmatpush1.msra.mxu0 0.0
      %401 = vmatprep.mubr.f32.mxu0 0.0
      %402 = vmatmul.mubr.f32.gmra.mrb[0].mxu0 %v332
      %v403 = vpop.f32.mrb[0].mxu0
      %v404 = vadd.f32 %v323, %v403
      %v405 = vpop.f32.mrb[0].mxu0
      %v406 = vadd.f32 %v323, %v405
      %407 = vmatprep.mubr.f32.mxu0 0.0
      %408 = vmatmul.mubr.f32.gmra.mrb[0].mxu0 %v335
      %v409 = vpop.f32.mrb[0].mxu0
      %v410 = vadd.f32 %v328, %v409
      %v411 = vpop.f32.mrb[0].mxu0
      %v412 = vadd.f32 %v328, %v411
      %413 = vdwg.mxu0
      %414 = vmatprep.subr.mxu0 %v289
      %415 = vmatpush1.msra.mxu0 %v288
      %416 = vmatprep.subr.mxu0 %v293
      %417 = vmatpush1.msra.mxu0 %v292
      %418 = vmatprep.subr.mxu0 %v297
      %419 = vmatpush1.msra.mxu0 %v296
      %420 = vmatprep.subr.mxu0 %v301
      %421 = vmatpush1.msra.mxu0 %v300
      %422 = vmatprep.subr.mxu0 %v305
      %423 = vmatpush1.msra.mxu0 %v304
      %424 = vmatprep.subr.mxu0 %v309
      %425 = vmatpush1.msra.mxu0 %v308
      %426 = vmatprep.subr.mxu0 %v313
      %427 = vmatpush1.msra.mxu0 %v312
      %428 = vmatprep.subr.mxu0 %v317
      %429 = vmatpush1.msra.mxu0 %v316
      %430 = vmatprep.subr.mxu0 0.0
      %431 = vmatpush1.msra.mxu0 0.0
      %432 = vmatprep.subr.mxu0 0.0
      %433 = vmatpush1.msra.mxu0 0.0
      %434 = vmatprep.subr.mxu0 0.0
      %435 = vmatpush1.msra.mxu0 0.0
      %436 = vmatprep.subr.mxu0 0.0
      %437 = vmatpush1.msra.mxu0 0.0
      %438 = vmatprep.subr.mxu0 0.0
      %439 = vmatpush1.msra.mxu0 0.0
      %440 = vmatprep.subr.mxu0 0.0
      %441 = vmatpush1.msra.mxu0 0.0
      %442 = vmatprep.subr.mxu0 0.0
      %443 = vmatpush1.msra.mxu0 0.0
      %444 = vmatprep.subr.mxu0 0.0
      %445 = vmatpush1.msra.mxu0 0.0
      %446 = vmatprep.subr.mxu0 0.0
      %447 = vmatpush1.msra.mxu0 0.0
      %448 = vmatprep.subr.mxu0 0.0
      %449 = vmatpush1.msra.mxu0 0.0
      %450 = vmatprep.subr.mxu0 0.0
      %451 = vmatpush1.msra.mxu0 0.0
      %452 = vmatprep.subr.mxu0 0.0
      %453 = vmatpush1.msra.mxu0 0.0
      %454 = vmatprep.subr.mxu0 0.0
      %455 = vmatpush1.msra.mxu0 0.0
      %456 = vmatprep.subr.mxu0 0.0
      %457 = vmatpush1.msra.mxu0 0.0
      %458 = vmatprep.subr.mxu0 0.0
      %459 = vmatpush1.msra.mxu0 0.0
      %460 = vmatprep.subr.mxu0 0.0
      %461 = vmatpush1.msra.mxu0 0.0
      %462 = vmatprep.subr.mxu0 0.0
      %463 = vmatpush1.msra.mxu0 0.0
      %464 = vmatprep.subr.mxu0 0.0
      %465 = vmatpush1.msra.mxu0 0.0
      %466 = vmatprep.subr.mxu0 0.0
      %467 = vmatpush1.msra.mxu0 0.0
      %468 = vmatprep.subr.mxu0 0.0
      %469 = vmatpush1.msra.mxu0 0.0
      %470 = vmatprep.subr.mxu0 0.0
      %471 = vmatpush1.msra.mxu0 0.0
      %472 = vmatprep.subr.mxu0 0.0
      %473 = vmatpush1.msra.mxu0 0.0
      %474 = vmatprep.subr.mxu0 0.0
      %475 = vmatpush1.msra.mxu0 0.0
      %476 = vmatprep.subr.mxu0 0.0
      %477 = vmatpush1.msra.mxu0 0.0
      %478 = vmatprep.mubr.f32.mxu0 0.0
      %479 = vmatmul.mubr.f32.gmra.mrb[0].mxu0 %v332
      %v480 = vpop.f32.mrb[0].mxu0
      %v481 = vadd.f32 %v323, %v480
      %v482 = vpop.f32.mrb[0].mxu0
      %v483 = vadd.f32 %v323, %v482
      %484 = vmatprep.mubr.f32.mxu0 0.0
      %485 = vmatmul.mubr.f32.gmra.mrb[0].mxu0 %v335
      %v486 = vpop.f32.mrb[0].mxu0
      %v487 = vadd.f32 %v328, %v486
      %v488 = vpop.f32.mrb[0].mxu0
      %v489 = vadd.f32 %v328, %v488
      %490 = vdwg.mxu0
      %v491 = vmax.f32 %v404, 0.0
      %v492 = vmax.f32 %v406, 0.0
      %v493 = vmax.f32 %v481, 0.0
      %v494 = vmax.f32 %v483, 0.0
      %v495 = vmax.f32 %v410, 0.0
      %v496 = vmax.f32 %v412, 0.0
      %v497 = vmax.f32 %v487, 0.0
      %v498 = vmax.f32 %v489, 0.0
      %503 = vrot.lane.b32.xlu0 %v491, 28
      %v504 = vpop.permute.xlu0 %503
      %505 = vrot.lane.b32.xlu0 %v492, 28
      %v506 = vpop.permute.xlu0 %505
      %507 = vrot.lane.b32.xlu0 %v495, 28
      %v508 = vpop.permute.xlu0 %507
      %509 = vrot.lane.b32.xlu0 %v496, 28
      %v510 = vpop.permute.xlu0 %509
      %vm511 = vcmask 228352
      %v512 = vsel %vm511, %v504, %v506
      %v513 = vsel %vm511, %v508, %v510
      %516 = vrot.lane.b32.xlu0 %v491, 127
      %v517 = vpop.permute.xlu0 %516
      %518 = vrot.lane.b32.xlu0 %v495, 127
      %v519 = vpop.permute.xlu0 %518
      %522 = vrot.lane.b32.xlu0 %v491, 27
      %v523 = vpop.permute.xlu0 %522
      %524 = vrot.lane.b32.xlu0 %v492, 27
      %v525 = vpop.permute.xlu0 %524
      %526 = vrot.lane.b32.xlu0 %v495, 27
      %v527 = vpop.permute.xlu0 %526
      %528 = vrot.lane.b32.xlu0 %v496, 27
      %v529 = vpop.permute.xlu0 %528
      %vm530 = vcmask 220160
      %v531 = vsel %vm530, %v523, %v525
      %v532 = vsel %vm530, %v527, %v529
      %537 = vrot.lane.b32.xlu0 %v492, 56
      %v538 = vpop.permute.xlu0 %537
      %539 = vrot.lane.b32.xlu0 %v493, 56
      %v540 = vpop.permute.xlu0 %539
      %541 = vrot.lane.b32.xlu0 %v496, 56
      %v542 = vpop.permute.xlu0 %541
      %543 = vrot.lane.b32.xlu0 %v497, 56
      %v544 = vpop.permute.xlu0 %543
      %vm545 = vcmask 457728
      %v546 = vsel %vm545, %v538, %v540
      %v547 = vsel %vm545, %v542, %v544
      %552 = vrot.lane.b32.xlu0 %v493, 84
      %v553 = vpop.permute.xlu0 %552
      %554 = vrot.lane.b32.xlu0 %v494, 84
      %v555 = vpop.permute.xlu0 %554
      %556 = vrot.lane.b32.xlu0 %v497, 84
      %v557 = vpop.permute.xlu0 %556
      %558 = vrot.lane.b32.xlu0 %v498, 84
      %v559 = vpop.permute.xlu0 %558
      %vm560 = vcmask 687104
      %v561 = vsel %vm560, %v553, %v555
      %v562 = vsel %vm560, %v557, %v559
      %565 = vrot.lane.b32.xlu0 %v492, 55
      %v566 = vpop.permute.xlu0 %565
      %567 = vrot.lane.b32.xlu0 %v493, 55
      %v568 = vpop.permute.xlu0 %567
      %569 = vrot.lane.b32.xlu0 %v496, 55
      %v570 = vpop.permute.xlu0 %569
      %571 = vrot.lane.b32.xlu0 %v497, 55
      %v572 = vpop.permute.xlu0 %571
      %vm573 = vcmask 449536
      %v574 = vsel %vm573, %v566, %v568
      %v575 = vsel %vm573, %v570, %v572
      %578 = vrot.lane.b32.xlu0 %v493, 83
      %v579 = vpop.permute.xlu0 %578
      %580 = vrot.lane.b32.xlu0 %v494, 83
      %v581 = vpop.permute.xlu0 %580
      %582 = vrot.lane.b32.xlu0 %v497, 83
      %v583 = vpop.permute.xlu0 %582
      %584 = vrot.lane.b32.xlu0 %v498, 83
      %v585 = vpop.permute.xlu0 %584
      %vm586 = vcmask 678912
      %v587 = vsel %vm586, %v579, %v581
      %v588 = vsel %vm586, %v583, %v585
      %591 = vrot.lane.b32.xlu0 %v491, 118
      %v592 = vpop.permute.xlu0 %591
      %593 = vrot.lane.b32.xlu0 %v495, 118
      %v594 = vpop.permute.xlu0 %593
      %597 = vrot.lane.b32.xlu0 %v491, 18
      %v598 = vpop.permute.xlu0 %597
      %599 = vrot.lane.b32.xlu0 %v492, 18
      %v600 = vpop.permute.xlu0 %599
      %601 = vrot.lane.b32.xlu0 %v495, 18
      %v602 = vpop.permute.xlu0 %601
      %603 = vrot.lane.b32.xlu0 %v496, 18
      %v604 = vpop.permute.xlu0 %603
      %vm605 = vcmask 146432
      %v606 = vsel %vm605, %v598, %v600
      %v607 = vsel %vm605, %v602, %v604
      %610 = vrot.lane.b32.xlu0 %v491, 117
      %v611 = vpop.permute.xlu0 %610
      %612 = vrot.lane.b32.xlu0 %v495, 117
      %v613 = vpop.permute.xlu0 %612
      %616 = vrot.lane.b32.xlu0 %v491, 17
      %v617 = vpop.permute.xlu0 %616
      %618 = vrot.lane.b32.xlu0 %v492, 17
      %v619 = vpop.permute.xlu0 %618
      %620 = vrot.lane.b32.xlu0 %v495, 17
      %v621 = vpop.permute.xlu0 %620
      %622 = vrot.lane.b32.xlu0 %v496, 17
      %v623 = vpop.permute.xlu0 %622
      %vm624 = vcmask 138240
      %v625 = vsel %vm624, %v617, %v619
      %v626 = vsel %vm624, %v621, %v623
      %629 = vrot.lane.b32.xlu0 %v492, 46
      %v630 = vpop.permute.xlu0 %629
      %631 = vrot.lane.b32.xlu0 %v493, 46
      %v632 = vpop.permute.xlu0 %631
      %633 = vrot.lane.b32.xlu0 %v496, 46
      %v634 = vpop.permute.xlu0 %633
      %635 = vrot.lane.b32.xlu0 %v497, 46
      %v636 = vpop.permute.xlu0 %635
      %vm637 = vcmask 375808
      %v638 = vsel %vm637, %v630, %v632
      %v639 = vsel %vm637, %v634, %v636
      %642 = vrot.lane.b32.xlu0 %v493, 74
      %v643 = vpop.permute.xlu0 %642
      %644 = vrot.lane.b32.xlu0 %v494, 74
      %v645 = vpop.permute.xlu0 %644
      %646 = vrot.lane.b32.xlu0 %v497, 74
      %v647 = vpop.permute.xlu0 %646
      %648 = vrot.lane.b32.xlu0 %v498, 74
      %v649 = vpop.permute.xlu0 %648
      %vm650 = vcmask 605184
      %v651 = vsel %vm650, %v643, %v645
      %v652 = vsel %vm650, %v647, %v649
      %655 = vrot.lane.b32.xlu0 %v492, 45
      %v656 = vpop.permute.xlu0 %655
      %657 = vrot.lane.b32.xlu0 %v493, 45
      %v658 = vpop.permute.xlu0 %657
      %659 = vrot.lane.b32.xlu0 %v496, 45
      %v660 = vpop.permute.xlu0 %659
      %661 = vrot.lane.b32.xlu0 %v497, 45
      %v662 = vpop.permute.xlu0 %661
      %vm663 = vcmask 367616
      %v664 = vsel %vm663, %v656, %v658
      %v665 = vsel %vm663, %v660, %v662
      %668 = vrot.lane.b32.xlu0 %v493, 73
      %v669 = vpop.permute.xlu0 %668
      %670 = vrot.lane.b32.xlu0 %v494, 73
      %v671 = vpop.permute.xlu0 %670
      %672 = vrot.lane.b32.xlu0 %v497, 73
      %v673 = vpop.permute.xlu0 %672
      %674 = vrot.lane.b32.xlu0 %v498, 73
      %v675 = vpop.permute.xlu0 %674
      %vm676 = vcmask 596992
      %v677 = vsel %vm676, %v669, %v671
      %v678 = vsel %vm676, %v673, %v675
      %v681 = vld [vmem:[%s3] sm:$0xff]
      %v682 = vld [vmem:[%s3 + $0x8] sm:$0xff]
      %v683 = vld [vmem:[%s3 + $0x10] sm:$0xff]
      %v684 = vld [vmem:[%s3 + $0x18] sm:$0xff]
      %v685 = vld [vmem:[%s3 + $0x20] sm:$0xff]
      %v686 = vld [vmem:[%s3 + $0x28] sm:$0xff]
      %v687 = vld [vmem:[%s3 + $0x30] sm:$0xff]
      %v688 = vld [vmem:[%s3 + $0x38] sm:$0xff]
      %v689 = vld [vmem:[%s4] sm:$0xff]
      %v690 = vld [vmem:[%s4 + $0x8] sm:$0xff]
      %v691 = vld [vmem:[%s4 + $0x10] sm:$0xff]
      %v692 = vld [vmem:[%s4 + $0x18] sm:$0xff]
      %694 = vset.pattern.permute.xlu0 0
      %695 = vperm.xlu0 %694, %v689
      %v696 = vpop.permute.xlu0 %695
      %699 = vset.pattern.permute.xlu0 0
      %700 = vperm.xlu0 %699, %v690
      %v701 = vpop.permute.xlu0 %700
      %704 = vset.pattern.permute.xlu0 0
      %705 = vperm.xlu0 %704, %v691
      %v706 = vpop.permute.xlu0 %705
      %709 = vset.pattern.permute.xlu0 0
      %710 = vperm.xlu0 %709, %v692
      %v711 = vpop.permute.xlu0 %710
      %713 = vmatprep.subr.mxu0 0.0
      %714 = vmatpush1.msra.mxu0 %v491
      %715 = vmatprep.subr.mxu0 0.0
      %716 = vmatpush1.msra.mxu0 %v495
      %717 = vmatprep.subr.mxu0 0.0
      %718 = vmatpush1.msra.mxu0 %v512
      %719 = vmatprep.subr.mxu0 0.0
      %720 = vmatpush1.msra.mxu0 %v513
      %721 = vmatprep.subr.mxu0 0.0
      %722 = vmatpush1.msra.mxu0 %v517
      %723 = vmatprep.subr.mxu0 0.0
      %724 = vmatpush1.msra.mxu0 %v519
      %725 = vmatprep.subr.mxu0 0.0
      %726 = vmatpush1.msra.mxu0 %v531
      %727 = vmatprep.subr.mxu0 0.0
      %728 = vmatpush1.msra.mxu0 %v532
      %729 = vmatprep.subr.mxu0 0.0
      %730 = vmatpush1.msra.mxu0 %v546
      %731 = vmatprep.subr.mxu0 0.0
      %732 = vmatpush1.msra.mxu0 %v547
      %733 = vmatprep.subr.mxu0 0.0
      %734 = vmatpush1.msra.mxu0 %v561
      %735 = vmatprep.subr.mxu0 0.0
      %736 = vmatpush1.msra.mxu0 %v562
      %737 = vmatprep.subr.mxu0 0.0
      %738 = vmatpush1.msra.mxu0 %v574
      %739 = vmatprep.subr.mxu0 0.0
      %740 = vmatpush1.msra.mxu0 %v575
      %741 = vmatprep.subr.mxu0 0.0
      %742 = vmatpush1.msra.mxu0 %v587
      %743 = vmatprep.subr.mxu0 0.0
      %744 = vmatpush1.msra.mxu0 %v588
      %745 = vmatprep.subr.mxu0 0.0
      %746 = vmatpush1.msra.mxu0 %v592
      %747 = vmatprep.subr.mxu0 0.0
      %748 = vmatpush1.msra.mxu0 %v594
      %749 = vmatprep.subr.mxu0 0.0
      %750 = vmatpush1.msra.mxu0 %v606
      %751 = vmatprep.subr.mxu0 0.0
      %752 = vmatpush1.msra.mxu0 %v607
      %753 = vmatprep.subr.mxu0 0.0
      %754 = vmatpush1.msra.mxu0 %v611
      %755 = vmatprep.subr.mxu0 0.0
      %756 = vmatpush1.msra.mxu0 %v613
      %757 = vmatprep.subr.mxu0 0.0
      %758 = vmatpush1.msra.mxu0 %v625
      %759 = vmatprep.subr.mxu0 0.0
      %760 = vmatpush1.msra.mxu0 %v626
      %761 = vmatprep.subr.mxu0 0.0
      %762 = vmatpush1.msra.mxu0 %v638
      %763 = vmatprep.subr.mxu0 0.0
      %764 = vmatpush1.msra.mxu0 %v639
      %765 = vmatprep.subr.mxu0 0.0
      %766 = vmatpush1.msra.mxu0 %v651
      %767 = vmatprep.subr.mxu0 0.0
      %768 = vmatpush1.msra.mxu0 %v652
      %769 = vmatprep.subr.mxu0 0.0
      %770 = vmatpush1.msra.mxu0 %v664
      %771 = vmatprep.subr.mxu0 0.0
      %772 = vmatpush1.msra.mxu0 %v665
      %773 = vmatprep.subr.mxu0 0.0
      %774 = vmatpush1.msra.mxu0 %v677
      %775 = vmatprep.subr.mxu0 0.0
      %776 = vmatpush1.msra.mxu0 %v678
      %777 = vmatprep.mubr.f32.mxu0 %v682
      %778 = vmatmul.mubr.f32.gmra.mrb[0].mxu0 %v681
      %v779 = vpop.f32.mrb[0].mxu0
      %v780 = vadd.f32 %v696, %v779
      %v781 = vpop.f32.mrb[0].mxu0
      %782 = vmatprep.mubr.f32.mxu0 %v684
      %783 = vmatmul.mubr.f32.gmra.mrb[0].mxu0 %v683
      %v784 = vpop.f32.mrb[0].mxu0
      %v785 = vadd.f32 %v701, %v784
      %v786 = vpop.f32.mrb[0].mxu0
      %787 = vmatprep.mubr.f32.mxu0 %v686
      %788 = vmatmul.mubr.f32.gmra.mrb[0].mxu0 %v685
      %v789 = vpop.f32.mrb[0].mxu0
      %v790 = vadd.f32 %v706, %v789
      %v791 = vpop.f32.mrb[0].mxu0
      %792 = vmatprep.mubr.f32.mxu0 %v688
      %793 = vmatmul.mubr.f32.gmra.mrb[0].mxu0 %v687
      %v794 = vpop.f32.mrb[0].mxu0
      %v795 = vadd.f32 %v711, %v794
      %v796 = vpop.f32.mrb[0].mxu0
      %797 = vdwg.mxu0
      %v798 = vmax.f32 %v780, 0.0
      %v799 = vmax.f32 %v785, 0.0
      %v800 = vmax.f32 %v790, 0.0
      %v801 = vmax.f32 %v795, 0.0
      %v802 = vld [vmem:[%s5] sm:$0xff]
      %v803 = vld [vmem:[%s5 + $0x8] sm:$0xff]
      %v804 = vld [vmem:[%s5 + $0x10] sm:$0xff]
      %v805 = vld [vmem:[%s5 + $0x18] sm:$0xff]
      %v806 = vld [vmem:[%s5 + $0x20] sm:$0xff]
      %v807 = vld [vmem:[%s5 + $0x28] sm:$0xff]
      %v808 = vld [vmem:[%s5 + $0x30] sm:$0xff]
      %v809 = vld [vmem:[%s5 + $0x38] sm:$0xff]
      %v810 = vld [vmem:[%s5 + $0x40] sm:$0xff]
      %v811 = vld [vmem:[%s5 + $0x48] sm:$0xff]
      %v812 = vld [vmem:[%s5 + $0x50] sm:$0xff]
      %v813 = vld [vmem:[%s5 + $0x58] sm:$0xff]
      %v814 = vld [vmem:[%s5 + $0x60] sm:$0xff]
      %v815 = vld [vmem:[%s5 + $0x68] sm:$0xff]
      %v816 = vld [vmem:[%s5 + $0x70] sm:$0xff]
      %v817 = vld [vmem:[%s5 + $0x78] sm:$0xff]
      %v818 = vmul.f32 %v802, %v798
      %v819 = vmul.f32 %v803, %v799
      %v820 = vmul.f32 %v804, %v800
      %v821 = vmul.f32 %v805, %v801
      %v822 = vmul.f32 %v806, %v798
      %v823 = vmul.f32 %v807, %v799
      %v824 = vmul.f32 %v808, %v800
      %v825 = vmul.f32 %v809, %v801
      %v826 = vmul.f32 %v810, %v798
      %v827 = vmul.f32 %v811, %v799
      %v828 = vmul.f32 %v812, %v800
      %v829 = vmul.f32 %v813, %v801
      %v830 = vmul.f32 %v814, %v798
      %v831 = vmul.f32 %v815, %v799
      %v832 = vmul.f32 %v816, %v800
      %v833 = vmul.f32 %v817, %v801
      %vm834 = vcmask 728064
      %v835 = vsel %vm834, %v818, 0.0
      %v836 = vsel %vm834, %v819, 0.0
      %v837 = vadd.f32 %v835, %v836
      %v838 = vsel %vm834, %v820, 0.0
      %v839 = vadd.f32 %v837, %v838
      %v840 = vsel %vm834, %v821, 0.0
      %v841 = vadd.f32 %v839, %v840
      %v842 = vrot.slane %v841, 4
      %v843 = vadd.f32 %v841, %v842
      %v844 = vrot.slane %v843, 2
      %v845 = vadd.f32 %v843, %v844
      %v846 = vrot.slane %v845, 1
      %v847 = vadd.f32 %v845, %v846
      %v848 = vsel %vm834, %v822, 0.0
      %v849 = vsel %vm834, %v823, 0.0
      %v850 = vadd.f32 %v848, %v849
      %v851 = vsel %vm834, %v824, 0.0
      %v852 = vadd.f32 %v850, %v851
      %v853 = vsel %vm834, %v825, 0.0
      %v854 = vadd.f32 %v852, %v853
      %v855 = vrot.slane %v854, 4
      %v856 = vadd.f32 %v854, %v855
      %v857 = vrot.slane %v856, 2
      %v858 = vadd.f32 %v856, %v857
      %v859 = vrot.slane %v858, 1
      %v860 = vadd.f32 %v858, %v859
      %v861 = vsel %vm834, %v826, 0.0
      %v862 = vsel %vm834, %v827, 0.0
      %v863 = vadd.f32 %v861, %v862
      %v864 = vsel %vm834, %v828, 0.0
      %v865 = vadd.f32 %v863, %v864
      %v866 = vsel %vm834, %v829, 0.0
      %v867 = vadd.f32 %v865, %v866
      %v868 = vrot.slane %v867, 4
      %v869 = vadd.f32 %v867, %v868
      %v870 = vrot.slane %v869, 2
      %v871 = vadd.f32 %v869, %v870
      %v872 = vrot.slane %v871, 1
      %v873 = vadd.f32 %v871, %v872
      %v874 = vsel %vm834, %v830, 0.0
      %v875 = vsel %vm834, %v831, 0.0
      %v876 = vadd.f32 %v874, %v875
      %v877 = vsel %vm834, %v832, 0.0
      %v878 = vadd.f32 %v876, %v877
      %v879 = vsel %vm834, %v833, 0.0
      %v880 = vadd.f32 %v878, %v879
      %v881 = vrot.slane %v880, 4
      %v882 = vadd.f32 %v880, %v881
      %v883 = vrot.slane %v882, 2
      %v884 = vadd.f32 %v882, %v883
      %v885 = vrot.slane %v884, 1
      %v886 = vadd.f32 %v884, %v885
      %vm887 = vcmp.eq.s32.totalorder %v283, 0
      %vm888 = vcmask 720896
      %v889 = vsel %vm888, %v847, 0.0
      %890 = vadd.xlane.f32.xlu0 %v889
      %v891 = vpop.xlane.xlu0 %890
      %v892 = vrot.slane %v891, 4
      %v893 = vadd.f32 %v891, %v892
      %v894 = vrot.slane %v893, 2
      %v895 = vadd.f32 %v893, %v894
      %v896 = vrot.slane %v895, 1
      %v897 = vadd.f32 %v895, %v896
      %s898 = vtos %v897
      %v899 = vstv %s898
      %v900 = vsel %vm887, %v899, 0.0
      %v901 = vadd.f32 %v900, 0.0
      %vm902 = vcmp.eq.s32.totalorder %v283, 1
      %v903 = vsel %vm888, %v860, 0.0
      %904 = vadd.xlane.f32.xlu0 %v903
      %v905 = vpop.xlane.xlu0 %904
      %v906 = vrot.slane %v905, 4
      %v907 = vadd.f32 %v905, %v906
      %v908 = vrot.slane %v907, 2
      %v909 = vadd.f32 %v907, %v908
      %v910 = vrot.slane %v909, 1
      %v911 = vadd.f32 %v909, %v910
      %s912 = vtos %v911
      %v913 = vstv %s912
      %v914 = vsel %vm902, %v913, 0.0
      %v915 = vadd.f32 %v901, %v914
      %vm916 = vcmp.eq.s32.totalorder %v283, 2
      %v917 = vsel %vm888, %v873, 0.0
      %918 = vadd.xlane.f32.xlu0 %v917
      %v919 = vpop.xlane.xlu0 %918
      %v920 = vrot.slane %v919, 4
      %v921 = vadd.f32 %v919, %v920
      %v922 = vrot.slane %v921, 2
      %v923 = vadd.f32 %v921, %v922
      %v924 = vrot.slane %v923, 1
      %v925 = vadd.f32 %v923, %v924
      %s926 = vtos %v925
      %v927 = vstv %s926
      %v928 = vsel %vm916, %v927, 0.0
      %v929 = vadd.f32 %v915, %v928
      %vm930 = vcmp.eq.s32.totalorder %v283, 3
      %v931 = vsel %vm888, %v886, 0.0
      %932 = vadd.xlane.f32.xlu0 %v931
      %v933 = vpop.xlane.xlu0 %932
      %v934 = vrot.slane %v933, 4
      %v935 = vadd.f32 %v933, %v934
      %v936 = vrot.slane %v935, 2
      %v937 = vadd.f32 %v935, %v936
      %v938 = vrot.slane %v937, 1
      %v939 = vadd.f32 %v937, %v938
      %s940 = vtos %v939
      %v941 = vstv %s940
      %v942 = vsel %vm930, %v941, 0.0
      %v943 = vadd.f32 %v929, %v942
      %s944 = scalar_lea.vmem %s276, 256
      %v945 = vld [vmem:[%s944] sm:$0xff]
      %v946 = vld [vmem:[%s944 + $0x8] sm:$0xff]
      %v947 = vld [vmem:[%s944 + $0x10] sm:$0xff]
      %v948 = vld [vmem:[%s944 + $0x18] sm:$0xff]
      %v949 = vld [vmem:[%s944 + $0x20] sm:$0xff]
      %v950 = vld [vmem:[%s944 + $0x28] sm:$0xff]
      %v951 = vld [vmem:[%s944 + $0x30] sm:$0xff]
      %v952 = vld [vmem:[%s944 + $0x38] sm:$0xff]
      %v953 = vld [vmem:[%s944 + $0x40] sm:$0xff]
      %v954 = vld [vmem:[%s944 + $0x48] sm:$0xff]
      %v955 = vld [vmem:[%s944 + $0x50] sm:$0xff]
      %v956 = vld [vmem:[%s944 + $0x58] sm:$0xff]
      %v957 = vld [vmem:[%s944 + $0x60] sm:$0xff]
      %v958 = vld [vmem:[%s944 + $0x68] sm:$0xff]
      %v959 = vld [vmem:[%s944 + $0x70] sm:$0xff]
      %v960 = vld [vmem:[%s944 + $0x78] sm:$0xff]
      %v961 = vld [vmem:[%s944 + $0x80] sm:$0xff]
      %v962 = vld [vmem:[%s944 + $0x88] sm:$0xff]
      %v963 = vld [vmem:[%s944 + $0x90] sm:$0xff]
      %v964 = vld [vmem:[%s944 + $0x98] sm:$0xff]
      %v965 = vld [vmem:[%s944 + $0xa0] sm:$0xff]
      %v966 = vld [vmem:[%s944 + $0xa8] sm:$0xff]
      %v967 = vld [vmem:[%s944 + $0xb0] sm:$0xff]
      %v968 = vld [vmem:[%s944 + $0xb8] sm:$0xff]
      %v969 = vld [vmem:[%s944 + $0xc0] sm:$0xff]
      %v970 = vld [vmem:[%s944 + $0xc8] sm:$0xff]
      %v971 = vld [vmem:[%s944 + $0xd0] sm:$0xff]
      %v972 = vld [vmem:[%s944 + $0xd8] sm:$0xff]
      %v973 = vld [vmem:[%s944 + $0xe0] sm:$0xff]
      %v974 = vld [vmem:[%s944 + $0xe8] sm:$0xff]
      %v975 = vld [vmem:[%s944 + $0xf0] sm:$0xff]
      %v976 = vld [vmem:[%s944 + $0xf8] sm:$0xff]
      %977 = vmatprep.subr.mxu0 %v946
      %978 = vmatpush1.msra.mxu0 %v945
      %979 = vmatprep.subr.mxu0 %v950
      %980 = vmatpush1.msra.mxu0 %v949
      %981 = vmatprep.subr.mxu0 %v954
      %982 = vmatpush1.msra.mxu0 %v953
      %983 = vmatprep.subr.mxu0 %v958
      %984 = vmatpush1.msra.mxu0 %v957
      %985 = vmatprep.subr.mxu0 %v962
      %986 = vmatpush1.msra.mxu0 %v961
      %987 = vmatprep.subr.mxu0 %v966
      %988 = vmatpush1.msra.mxu0 %v965
      %989 = vmatprep.subr.mxu0 %v970
      %990 = vmatpush1.msra.mxu0 %v969
      %991 = vmatprep.subr.mxu0 %v974
      %992 = vmatpush1.msra.mxu0 %v973
      %993 = vmatprep.subr.mxu0 0.0
      %994 = vmatpush1.msra.mxu0 0.0
      %995 = vmatprep.subr.mxu0 0.0
      %996 = vmatpush1.msra.mxu0 0.0
      %997 = vmatprep.subr.mxu0 0.0
      %998 = vmatpush1.msra.mxu0 0.0
      %999 = vmatprep.subr.mxu0 0.0
      %1000 = vmatpush1.msra.mxu0 0.0
      %1001 = vmatprep.subr.mxu0 0.0
      %1002 = vmatpush1.msra.mxu0 0.0
      %1003 = vmatprep.subr.mxu0 0.0
      %1004 = vmatpush1.msra.mxu0 0.0
      %1005 = vmatprep.subr.mxu0 0.0
      %1006 = vmatpush1.msra.mxu0 0.0
      %1007 = vmatprep.subr.mxu0 0.0
      %1008 = vmatpush1.msra.mxu0 0.0
      %1009 = vmatprep.subr.mxu0 0.0
      %1010 = vmatpush1.msra.mxu0 0.0
      %1011 = vmatprep.subr.mxu0 0.0
      %1012 = vmatpush1.msra.mxu0 0.0
      %1013 = vmatprep.subr.mxu0 0.0
      %1014 = vmatpush1.msra.mxu0 0.0
      %1015 = vmatprep.subr.mxu0 0.0
      %1016 = vmatpush1.msra.mxu0 0.0
      %1017 = vmatprep.subr.mxu0 0.0
      %1018 = vmatpush1.msra.mxu0 0.0
      %1019 = vmatprep.subr.mxu0 0.0
      %1020 = vmatpush1.msra.mxu0 0.0
      %1021 = vmatprep.subr.mxu0 0.0
      %1022 = vmatpush1.msra.mxu0 0.0
      %1023 = vmatprep.subr.mxu0 0.0
      %1024 = vmatpush1.msra.mxu0 0.0
      %1025 = vmatprep.subr.mxu0 0.0
      %1026 = vmatpush1.msra.mxu0 0.0
      %1027 = vmatprep.subr.mxu0 0.0
      %1028 = vmatpush1.msra.mxu0 0.0
      %1029 = vmatprep.subr.mxu0 0.0
      %1030 = vmatpush1.msra.mxu0 0.0
      %1031 = vmatprep.subr.mxu0 0.0
      %1032 = vmatpush1.msra.mxu0 0.0
      %1033 = vmatprep.subr.mxu0 0.0
      %1034 = vmatpush1.msra.mxu0 0.0
      %1035 = vmatprep.subr.mxu0 0.0
      %1036 = vmatpush1.msra.mxu0 0.0
      %1037 = vmatprep.subr.mxu0 0.0
      %1038 = vmatpush1.msra.mxu0 0.0
      %1039 = vmatprep.subr.mxu0 0.0
      %1040 = vmatpush1.msra.mxu0 0.0
      %1041 = vmatprep.mubr.f32.mxu0 0.0
      %1042 = vmatmul.mubr.f32.gmra.mrb[0].mxu0 %v332
      %v1043 = vpop.f32.mrb[0].mxu0
      %v1044 = vadd.f32 %v323, %v1043
      %v1045 = vpop.f32.mrb[0].mxu0
      %v1046 = vadd.f32 %v323, %v1045
      %1047 = vmatprep.mubr.f32.mxu0 0.0
      %1048 = vmatmul.mubr.f32.gmra.mrb[0].mxu0 %v335
      %v1049 = vpop.f32.mrb[0].mxu0
      %v1050 = vadd.f32 %v328, %v1049
      %v1051 = vpop.f32.mrb[0].mxu0
      %v1052 = vadd.f32 %v328, %v1051
      %1053 = vdwg.mxu0
      %1054 = vmatprep.subr.mxu0 %v948
      %1055 = vmatpush1.msra.mxu0 %v947
      %1056 = vmatprep.subr.mxu0 %v952
      %1057 = vmatpush1.msra.mxu0 %v951
      %1058 = vmatprep.subr.mxu0 %v956
      %1059 = vmatpush1.msra.mxu0 %v955
      %1060 = vmatprep.subr.mxu0 %v960
      %1061 = vmatpush1.msra.mxu0 %v959
      %1062 = vmatprep.subr.mxu0 %v964
      %1063 = vmatpush1.msra.mxu0 %v963
      %1064 = vmatprep.subr.mxu0 %v968
      %1065 = vmatpush1.msra.mxu0 %v967
      %1066 = vmatprep.subr.mxu0 %v972
      %1067 = vmatpush1.msra.mxu0 %v971
      %1068 = vmatprep.subr.mxu0 %v976
      %1069 = vmatpush1.msra.mxu0 %v975
      %1070 = vmatprep.subr.mxu0 0.0
      %1071 = vmatpush1.msra.mxu0 0.0
      %1072 = vmatprep.subr.mxu0 0.0
      %1073 = vmatpush1.msra.mxu0 0.0
      %1074 = vmatprep.subr.mxu0 0.0
      %1075 = vmatpush1.msra.mxu0 0.0
      %1076 = vmatprep.subr.mxu0 0.0
      %1077 = vmatpush1.msra.mxu0 0.0
      %1078 = vmatprep.subr.mxu0 0.0
      %1079 = vmatpush1.msra.mxu0 0.0
      %1080 = vmatprep.subr.mxu0 0.0
      %1081 = vmatpush1.msra.mxu0 0.0
      %1082 = vmatprep.subr.mxu0 0.0
      %1083 = vmatpush1.msra.mxu0 0.0
      %1084 = vmatprep.subr.mxu0 0.0
      %1085 = vmatpush1.msra.mxu0 0.0
      %1086 = vmatprep.subr.mxu0 0.0
      %1087 = vmatpush1.msra.mxu0 0.0
      %1088 = vmatprep.subr.mxu0 0.0
      %1089 = vmatpush1.msra.mxu0 0.0
      %1090 = vmatprep.subr.mxu0 0.0
      %1091 = vmatpush1.msra.mxu0 0.0
      %1092 = vmatprep.subr.mxu0 0.0
      %1093 = vmatpush1.msra.mxu0 0.0
      %1094 = vmatprep.subr.mxu0 0.0
      %1095 = vmatpush1.msra.mxu0 0.0
      %1096 = vmatprep.subr.mxu0 0.0
      %1097 = vmatpush1.msra.mxu0 0.0
      %1098 = vmatprep.subr.mxu0 0.0
      %1099 = vmatpush1.msra.mxu0 0.0
      %1100 = vmatprep.subr.mxu0 0.0
      %1101 = vmatpush1.msra.mxu0 0.0
      %1102 = vmatprep.subr.mxu0 0.0
      %1103 = vmatpush1.msra.mxu0 0.0
      %1104 = vmatprep.subr.mxu0 0.0
      %1105 = vmatpush1.msra.mxu0 0.0
      %1106 = vmatprep.subr.mxu0 0.0
      %1107 = vmatpush1.msra.mxu0 0.0
      %1108 = vmatprep.subr.mxu0 0.0
      %1109 = vmatpush1.msra.mxu0 0.0
      %1110 = vmatprep.subr.mxu0 0.0
      %1111 = vmatpush1.msra.mxu0 0.0
      %1112 = vmatprep.subr.mxu0 0.0
      %1113 = vmatpush1.msra.mxu0 0.0
      %1114 = vmatprep.subr.mxu0 0.0
      %1115 = vmatpush1.msra.mxu0 0.0
      %1116 = vmatprep.subr.mxu0 0.0
      %1117 = vmatpush1.msra.mxu0 0.0
      %1118 = vmatprep.mubr.f32.mxu0 0.0
      %1119 = vmatmul.mubr.f32.gmra.mrb[0].mxu0 %v332
      %v1120 = vpop.f32.mrb[0].mxu0
      %v1121 = vadd.f32 %v323, %v1120
      %v1122 = vpop.f32.mrb[0].mxu0
      %v1123 = vadd.f32 %v323, %v1122
      %1124 = vmatprep.mubr.f32.mxu0 0.0
      %1125 = vmatmul.mubr.f32.gmra.mrb[0].mxu0 %v335
      %v1126 = vpop.f32.mrb[0].mxu0
      %v1127 = vadd.f32 %v328, %v1126
      %v1128 = vpop.f32.mrb[0].mxu0
      %v1129 = vadd.f32 %v328, %v1128
      %1130 = vdwg.mxu0
      %v1131 = vmax.f32 %v1044, 0.0
      %v1132 = vmax.f32 %v1046, 0.0
      %v1133 = vmax.f32 %v1121, 0.0
      %v1134 = vmax.f32 %v1123, 0.0
      %v1135 = vmax.f32 %v1050, 0.0
      %v1136 = vmax.f32 %v1052, 0.0
      %v1137 = vmax.f32 %v1127, 0.0
      %v1138 = vmax.f32 %v1129, 0.0
      %1143 = vrot.lane.b32.xlu0 %v1131, 28
      %v1144 = vpop.permute.xlu0 %1143
      %1145 = vrot.lane.b32.xlu0 %v1132, 28
      %v1146 = vpop.permute.xlu0 %1145
      %1147 = vrot.lane.b32.xlu0 %v1135, 28
      %v1148 = vpop.permute.xlu0 %1147
      %1149 = vrot.lane.b32.xlu0 %v1136, 28
      %v1150 = vpop.permute.xlu0 %1149
      %v1151 = vsel %vm511, %v1144, %v1146
      %v1152 = vsel %vm511, %v1148, %v1150
      %1155 = vrot.lane.b32.xlu0 %v1131, 127
      %v1156 = vpop.permute.xlu0 %1155
      %1157 = vrot.lane.b32.xlu0 %v1135, 127
      %v1158 = vpop.permute.xlu0 %1157
      %1161 = vrot.lane.b32.xlu0 %v1131, 27
      %v1162 = vpop.permute.xlu0 %1161
      %1163 = vrot.lane.b32.xlu0 %v1132, 27
      %v1164 = vpop.permute.xlu0 %1163
      %1165 = vrot.lane.b32.xlu0 %v1135, 27
      %v1166 = vpop.permute.xlu0 %1165
      %1167 = vrot.lane.b32.xlu0 %v1136, 27
      %v1168 = vpop.permute.xlu0 %1167
      %v1169 = vsel %vm530, %v1162, %v1164
      %v1170 = vsel %vm530, %v1166, %v1168
      %1175 = vrot.lane.b32.xlu0 %v1132, 56
      %v1176 = vpop.permute.xlu0 %1175
      %1177 = vrot.lane.b32.xlu0 %v1133, 56
      %v1178 = vpop.permute.xlu0 %1177
      %1179 = vrot.lane.b32.xlu0 %v1136, 56
      %v1180 = vpop.permute.xlu0 %1179
      %1181 = vrot.lane.b32.xlu0 %v1137, 56
      %v1182 = vpop.permute.xlu0 %1181
      %v1183 = vsel %vm545, %v1176, %v1178
      %v1184 = vsel %vm545, %v1180, %v1182
      %1189 = vrot.lane.b32.xlu0 %v1133, 84
      %v1190 = vpop.permute.xlu0 %1189
      %1191 = vrot.lane.b32.xlu0 %v1134, 84
      %v1192 = vpop.permute.xlu0 %1191
      %1193 = vrot.lane.b32.xlu0 %v1137, 84
      %v1194 = vpop.permute.xlu0 %1193
      %1195 = vrot.lane.b32.xlu0 %v1138, 84
      %v1196 = vpop.permute.xlu0 %1195
      %v1197 = vsel %vm560, %v1190, %v1192
      %v1198 = vsel %vm560, %v1194, %v1196
      %1201 = vrot.lane.b32.xlu0 %v1132, 55
      %v1202 = vpop.permute.xlu0 %1201
      %1203 = vrot.lane.b32.xlu0 %v1133, 55
      %v1204 = vpop.permute.xlu0 %1203
      %1205 = vrot.lane.b32.xlu0 %v1136, 55
      %v1206 = vpop.permute.xlu0 %1205
      %1207 = vrot.lane.b32.xlu0 %v1137, 55
      %v1208 = vpop.permute.xlu0 %1207
      %v1209 = vsel %vm573, %v1202, %v1204
      %v1210 = vsel %vm573, %v1206, %v1208
      %1213 = vrot.lane.b32.xlu0 %v1133, 83
      %v1214 = vpop.permute.xlu0 %1213
      %1215 = vrot.lane.b32.xlu0 %v1134, 83
      %v1216 = vpop.permute.xlu0 %1215
      %1217 = vrot.lane.b32.xlu0 %v1137, 83
      %v1218 = vpop.permute.xlu0 %1217
      %1219 = vrot.lane.b32.xlu0 %v1138, 83
      %v1220 = vpop.permute.xlu0 %1219
      %v1221 = vsel %vm586, %v1214, %v1216
      %v1222 = vsel %vm586, %v1218, %v1220
      %1225 = vrot.lane.b32.xlu0 %v1131, 118
      %v1226 = vpop.permute.xlu0 %1225
      %1227 = vrot.lane.b32.xlu0 %v1135, 118
      %v1228 = vpop.permute.xlu0 %1227
      %1231 = vrot.lane.b32.xlu0 %v1131, 18
      %v1232 = vpop.permute.xlu0 %1231
      %1233 = vrot.lane.b32.xlu0 %v1132, 18
      %v1234 = vpop.permute.xlu0 %1233
      %1235 = vrot.lane.b32.xlu0 %v1135, 18
      %v1236 = vpop.permute.xlu0 %1235
      %1237 = vrot.lane.b32.xlu0 %v1136, 18
      %v1238 = vpop.permute.xlu0 %1237
      %v1239 = vsel %vm605, %v1232, %v1234
      %v1240 = vsel %vm605, %v1236, %v1238
      %1243 = vrot.lane.b32.xlu0 %v1131, 117
      %v1244 = vpop.permute.xlu0 %1243
      %1245 = vrot.lane.b32.xlu0 %v1135, 117
      %v1246 = vpop.permute.xlu0 %1245
      %1249 = vrot.lane.b32.xlu0 %v1131, 17
      %v1250 = vpop.permute.xlu0 %1249
      %1251 = vrot.lane.b32.xlu0 %v1132, 17
      %v1252 = vpop.permute.xlu0 %1251
      %1253 = vrot.lane.b32.xlu0 %v1135, 17
      %v1254 = vpop.permute.xlu0 %1253
      %1255 = vrot.lane.b32.xlu0 %v1136, 17
      %v1256 = vpop.permute.xlu0 %1255
      %v1257 = vsel %vm624, %v1250, %v1252
      %v1258 = vsel %vm624, %v1254, %v1256
      %1261 = vrot.lane.b32.xlu0 %v1132, 46
      %v1262 = vpop.permute.xlu0 %1261
      %1263 = vrot.lane.b32.xlu0 %v1133, 46
      %v1264 = vpop.permute.xlu0 %1263
      %1265 = vrot.lane.b32.xlu0 %v1136, 46
      %v1266 = vpop.permute.xlu0 %1265
      %1267 = vrot.lane.b32.xlu0 %v1137, 46
      %v1268 = vpop.permute.xlu0 %1267
      %v1269 = vsel %vm637, %v1262, %v1264
      %v1270 = vsel %vm637, %v1266, %v1268
      %1273 = vrot.lane.b32.xlu0 %v1133, 74
      %v1274 = vpop.permute.xlu0 %1273
      %1275 = vrot.lane.b32.xlu0 %v1134, 74
      %v1276 = vpop.permute.xlu0 %1275
      %1277 = vrot.lane.b32.xlu0 %v1137, 74
      %v1278 = vpop.permute.xlu0 %1277
      %1279 = vrot.lane.b32.xlu0 %v1138, 74
      %v1280 = vpop.permute.xlu0 %1279
      %v1281 = vsel %vm650, %v1274, %v1276
      %v1282 = vsel %vm650, %v1278, %v1280
      %1285 = vrot.lane.b32.xlu0 %v1132, 45
      %v1286 = vpop.permute.xlu0 %1285
      %1287 = vrot.lane.b32.xlu0 %v1133, 45
      %v1288 = vpop.permute.xlu0 %1287
      %1289 = vrot.lane.b32.xlu0 %v1136, 45
      %v1290 = vpop.permute.xlu0 %1289
      %1291 = vrot.lane.b32.xlu0 %v1137, 45
      %v1292 = vpop.permute.xlu0 %1291
      %v1293 = vsel %vm663, %v1286, %v1288
      %v1294 = vsel %vm663, %v1290, %v1292
      %1297 = vrot.lane.b32.xlu0 %v1133, 73
      %v1298 = vpop.permute.xlu0 %1297
      %1299 = vrot.lane.b32.xlu0 %v1134, 73
      %v1300 = vpop.permute.xlu0 %1299
      %1301 = vrot.lane.b32.xlu0 %v1137, 73
      %v1302 = vpop.permute.xlu0 %1301
      %1303 = vrot.lane.b32.xlu0 %v1138, 73
      %v1304 = vpop.permute.xlu0 %1303
      %v1305 = vsel %vm676, %v1298, %v1300
      %v1306 = vsel %vm676, %v1302, %v1304
      %1309 = vmatprep.subr.mxu0 0.0
      %1310 = vmatpush1.msra.mxu0 %v1131
      %1311 = vmatprep.subr.mxu0 0.0
      %1312 = vmatpush1.msra.mxu0 %v1135
      %1313 = vmatprep.subr.mxu0 0.0
      %1314 = vmatpush1.msra.mxu0 %v1151
      %1315 = vmatprep.subr.mxu0 0.0
      %1316 = vmatpush1.msra.mxu0 %v1152
      %1317 = vmatprep.subr.mxu0 0.0
      %1318 = vmatpush1.msra.mxu0 %v1156
      %1319 = vmatprep.subr.mxu0 0.0
      %1320 = vmatpush1.msra.mxu0 %v1158
      %1321 = vmatprep.subr.mxu0 0.0
      %1322 = vmatpush1.msra.mxu0 %v1169
      %1323 = vmatprep.subr.mxu0 0.0
      %1324 = vmatpush1.msra.mxu0 %v1170
      %1325 = vmatprep.subr.mxu0 0.0
      %1326 = vmatpush1.msra.mxu0 %v1183
      %1327 = vmatprep.subr.mxu0 0.0
      %1328 = vmatpush1.msra.mxu0 %v1184
      %1329 = vmatprep.subr.mxu0 0.0
      %1330 = vmatpush1.msra.mxu0 %v1197
      %1331 = vmatprep.subr.mxu0 0.0
      %1332 = vmatpush1.msra.mxu0 %v1198
      %1333 = vmatprep.subr.mxu0 0.0
      %1334 = vmatpush1.msra.mxu0 %v1209
      %1335 = vmatprep.subr.mxu0 0.0
      %1336 = vmatpush1.msra.mxu0 %v1210
      %1337 = vmatprep.subr.mxu0 0.0
      %1338 = vmatpush1.msra.mxu0 %v1221
      %1339 = vmatprep.subr.mxu0 0.0
      %1340 = vmatpush1.msra.mxu0 %v1222
      %1341 = vmatprep.subr.mxu0 0.0
      %1342 = vmatpush1.msra.mxu0 %v1226
      %1343 = vmatprep.subr.mxu0 0.0
      %1344 = vmatpush1.msra.mxu0 %v1228
      %1345 = vmatprep.subr.mxu0 0.0
      %1346 = vmatpush1.msra.mxu0 %v1239
      %1347 = vmatprep.subr.mxu0 0.0
      %1348 = vmatpush1.msra.mxu0 %v1240
      %1349 = vmatprep.subr.mxu0 0.0
      %1350 = vmatpush1.msra.mxu0 %v1244
      %1351 = vmatprep.subr.mxu0 0.0
      %1352 = vmatpush1.msra.mxu0 %v1246
      %1353 = vmatprep.subr.mxu0 0.0
      %1354 = vmatpush1.msra.mxu0 %v1257
      %1355 = vmatprep.subr.mxu0 0.0
      %1356 = vmatpush1.msra.mxu0 %v1258
      %1357 = vmatprep.subr.mxu0 0.0
      %1358 = vmatpush1.msra.mxu0 %v1269
      %1359 = vmatprep.subr.mxu0 0.0
      %1360 = vmatpush1.msra.mxu0 %v1270
      %1361 = vmatprep.subr.mxu0 0.0
      %1362 = vmatpush1.msra.mxu0 %v1281
      %1363 = vmatprep.subr.mxu0 0.0
      %1364 = vmatpush1.msra.mxu0 %v1282
      %1365 = vmatprep.subr.mxu0 0.0
      %1366 = vmatpush1.msra.mxu0 %v1293
      %1367 = vmatprep.subr.mxu0 0.0
      %1368 = vmatpush1.msra.mxu0 %v1294
      %1369 = vmatprep.subr.mxu0 0.0
      %1370 = vmatpush1.msra.mxu0 %v1305
      %1371 = vmatprep.subr.mxu0 0.0
      %1372 = vmatpush1.msra.mxu0 %v1306
      %1373 = vmatprep.mubr.f32.mxu0 %v682
      %1374 = vmatmul.mubr.f32.gmra.mrb[0].mxu0 %v681
      %v1375 = vpop.f32.mrb[0].mxu0
      %v1376 = vadd.f32 %v696, %v1375
      %v1377 = vpop.f32.mrb[0].mxu0
      %1378 = vmatprep.mubr.f32.mxu0 %v684
      %1379 = vmatmul.mubr.f32.gmra.mrb[0].mxu0 %v683
      %v1380 = vpop.f32.mrb[0].mxu0
      %v1381 = vadd.f32 %v701, %v1380
      %v1382 = vpop.f32.mrb[0].mxu0
      %1383 = vmatprep.mubr.f32.mxu0 %v686
      %1384 = vmatmul.mubr.f32.gmra.mrb[0].mxu0 %v685
      %v1385 = vpop.f32.mrb[0].mxu0
      %v1386 = vadd.f32 %v706, %v1385
      %v1387 = vpop.f32.mrb[0].mxu0
      %1388 = vmatprep.mubr.f32.mxu0 %v688
      %1389 = vmatmul.mubr.f32.gmra.mrb[0].mxu0 %v687
      %v1390 = vpop.f32.mrb[0].mxu0
      %v1391 = vadd.f32 %v711, %v1390
      %v1392 = vpop.f32.mrb[0].mxu0
      %1393 = vdwg.mxu0
      %v1394 = vmax.f32 %v1376, 0.0
      %v1395 = vmax.f32 %v1381, 0.0
      %v1396 = vmax.f32 %v1386, 0.0
      %v1397 = vmax.f32 %v1391, 0.0
      %v1398 = vmul.f32 %v802, %v1394
      %v1399 = vmul.f32 %v803, %v1395
      %v1400 = vmul.f32 %v804, %v1396
      %v1401 = vmul.f32 %v805, %v1397
      %v1402 = vmul.f32 %v806, %v1394
      %v1403 = vmul.f32 %v807, %v1395
      %v1404 = vmul.f32 %v808, %v1396
      %v1405 = vmul.f32 %v809, %v1397
      %v1406 = vmul.f32 %v810, %v1394
      %v1407 = vmul.f32 %v811, %v1395
      %v1408 = vmul.f32 %v812, %v1396
      %v1409 = vmul.f32 %v813, %v1397
      %v1410 = vmul.f32 %v814, %v1394
      %v1411 = vmul.f32 %v815, %v1395
      %v1412 = vmul.f32 %v816, %v1396
      %v1413 = vmul.f32 %v817, %v1397
      %v1414 = vsel %vm834, %v1398, 0.0
      %v1415 = vsel %vm834, %v1399, 0.0
      %v1416 = vadd.f32 %v1414, %v1415
      %v1417 = vsel %vm834, %v1400, 0.0
      %v1418 = vadd.f32 %v1416, %v1417
      %v1419 = vsel %vm834, %v1401, 0.0
      %v1420 = vadd.f32 %v1418, %v1419
      %v1421 = vrot.slane %v1420, 4
      %v1422 = vadd.f32 %v1420, %v1421
      %v1423 = vrot.slane %v1422, 2
      %v1424 = vadd.f32 %v1422, %v1423
      %v1425 = vrot.slane %v1424, 1
      %v1426 = vadd.f32 %v1424, %v1425
      %v1427 = vsel %vm834, %v1402, 0.0
      %v1428 = vsel %vm834, %v1403, 0.0
      %v1429 = vadd.f32 %v1427, %v1428
      %v1430 = vsel %vm834, %v1404, 0.0
      %v1431 = vadd.f32 %v1429, %v1430
      %v1432 = vsel %vm834, %v1405, 0.0
      %v1433 = vadd.f32 %v1431, %v1432
      %v1434 = vrot.slane %v1433, 4
      %v1435 = vadd.f32 %v1433, %v1434
      %v1436 = vrot.slane %v1435, 2
      %v1437 = vadd.f32 %v1435, %v1436
      %v1438 = vrot.slane %v1437, 1
      %v1439 = vadd.f32 %v1437, %v1438
      %v1440 = vsel %vm834, %v1406, 0.0
      %v1441 = vsel %vm834, %v1407, 0.0
      %v1442 = vadd.f32 %v1440, %v1441
      %v1443 = vsel %vm834, %v1408, 0.0
      %v1444 = vadd.f32 %v1442, %v1443
      %v1445 = vsel %vm834, %v1409, 0.0
      %v1446 = vadd.f32 %v1444, %v1445
      %v1447 = vrot.slane %v1446, 4
      %v1448 = vadd.f32 %v1446, %v1447
      %v1449 = vrot.slane %v1448, 2
      %v1450 = vadd.f32 %v1448, %v1449
      %v1451 = vrot.slane %v1450, 1
      %v1452 = vadd.f32 %v1450, %v1451
      %v1453 = vsel %vm834, %v1410, 0.0
      %v1454 = vsel %vm834, %v1411, 0.0
      %v1455 = vadd.f32 %v1453, %v1454
      %v1456 = vsel %vm834, %v1412, 0.0
      %v1457 = vadd.f32 %v1455, %v1456
      %v1458 = vsel %vm834, %v1413, 0.0
      %v1459 = vadd.f32 %v1457, %v1458
      %v1460 = vrot.slane %v1459, 4
      %v1461 = vadd.f32 %v1459, %v1460
      %v1462 = vrot.slane %v1461, 2
      %v1463 = vadd.f32 %v1461, %v1462
      %v1464 = vrot.slane %v1463, 1
      %v1465 = vadd.f32 %v1463, %v1464
      %v1466 = vsel %vm888, %v1426, 0.0
      %1467 = vadd.xlane.f32.xlu0 %v1466
      %v1468 = vpop.xlane.xlu0 %1467
      %v1469 = vrot.slane %v1468, 4
      %v1470 = vadd.f32 %v1468, %v1469
      %v1471 = vrot.slane %v1470, 2
      %v1472 = vadd.f32 %v1470, %v1471
      %v1473 = vrot.slane %v1472, 1
      %v1474 = vadd.f32 %v1472, %v1473
      %s1475 = vtos %v1474
      %v1476 = vstv %s1475
      %v1477 = vsel %vm887, %v1476, 0.0
      %v1478 = vadd.f32 %v1477, 0.0
      %v1479 = vsel %vm888, %v1439, 0.0
      %1480 = vadd.xlane.f32.xlu0 %v1479
      %v1481 = vpop.xlane.xlu0 %1480
      %v1482 = vrot.slane %v1481, 4
      %v1483 = vadd.f32 %v1481, %v1482
      %v1484 = vrot.slane %v1483, 2
      %v1485 = vadd.f32 %v1483, %v1484
      %v1486 = vrot.slane %v1485, 1
      %v1487 = vadd.f32 %v1485, %v1486
      %s1488 = vtos %v1487
      %v1489 = vstv %s1488
      %v1490 = vsel %vm902, %v1489, 0.0
      %v1491 = vadd.f32 %v1478, %v1490
      %v1492 = vsel %vm888, %v1452, 0.0
      %1493 = vadd.xlane.f32.xlu0 %v1492
      %v1494 = vpop.xlane.xlu0 %1493
      %v1495 = vrot.slane %v1494, 4
      %v1496 = vadd.f32 %v1494, %v1495
      %v1497 = vrot.slane %v1496, 2
      %v1498 = vadd.f32 %v1496, %v1497
      %v1499 = vrot.slane %v1498, 1
      %v1500 = vadd.f32 %v1498, %v1499
      %s1501 = vtos %v1500
      %v1502 = vstv %s1501
      %v1503 = vsel %vm916, %v1502, 0.0
      %v1504 = vadd.f32 %v1491, %v1503
      %v1505 = vsel %vm888, %v1465, 0.0
      %1506 = vadd.xlane.f32.xlu0 %v1505
      %v1507 = vpop.xlane.xlu0 %1506
      %v1508 = vrot.slane %v1507, 4
      %v1509 = vadd.f32 %v1507, %v1508
      %v1510 = vrot.slane %v1509, 2
      %v1511 = vadd.f32 %v1509, %v1510
      %v1512 = vrot.slane %v1511, 1
      %v1513 = vadd.f32 %v1511, %v1512
      %s1514 = vtos %v1513
      %v1515 = vstv %s1514
      %v1516 = vsel %vm930, %v1515, 0.0
      %v1517 = vadd.f32 %v1504, %v1516
      %s1518 = scalar_lea.vmem %s276, 512
      %v1519 = vld [vmem:[%s1518] sm:$0xff]
      %v1520 = vld [vmem:[%s1518 + $0x8] sm:$0xff]
      %v1521 = vld [vmem:[%s1518 + $0x10] sm:$0xff]
      %v1522 = vld [vmem:[%s1518 + $0x18] sm:$0xff]
      %v1523 = vld [vmem:[%s1518 + $0x20] sm:$0xff]
      %v1524 = vld [vmem:[%s1518 + $0x28] sm:$0xff]
      %v1525 = vld [vmem:[%s1518 + $0x30] sm:$0xff]
      %v1526 = vld [vmem:[%s1518 + $0x38] sm:$0xff]
      %v1527 = vld [vmem:[%s1518 + $0x40] sm:$0xff]
      %v1528 = vld [vmem:[%s1518 + $0x48] sm:$0xff]
      %v1529 = vld [vmem:[%s1518 + $0x50] sm:$0xff]
      %v1530 = vld [vmem:[%s1518 + $0x58] sm:$0xff]
      %v1531 = vld [vmem:[%s1518 + $0x60] sm:$0xff]
      %v1532 = vld [vmem:[%s1518 + $0x68] sm:$0xff]
      %v1533 = vld [vmem:[%s1518 + $0x70] sm:$0xff]
      %v1534 = vld [vmem:[%s1518 + $0x78] sm:$0xff]
      %v1535 = vld [vmem:[%s1518 + $0x80] sm:$0xff]
      %v1536 = vld [vmem:[%s1518 + $0x88] sm:$0xff]
      %v1537 = vld [vmem:[%s1518 + $0x90] sm:$0xff]
      %v1538 = vld [vmem:[%s1518 + $0x98] sm:$0xff]
      %v1539 = vld [vmem:[%s1518 + $0xa0] sm:$0xff]
      %v1540 = vld [vmem:[%s1518 + $0xa8] sm:$0xff]
      %v1541 = vld [vmem:[%s1518 + $0xb0] sm:$0xff]
      %v1542 = vld [vmem:[%s1518 + $0xb8] sm:$0xff]
      %v1543 = vld [vmem:[%s1518 + $0xc0] sm:$0xff]
      %v1544 = vld [vmem:[%s1518 + $0xc8] sm:$0xff]
      %v1545 = vld [vmem:[%s1518 + $0xd0] sm:$0xff]
      %v1546 = vld [vmem:[%s1518 + $0xd8] sm:$0xff]
      %v1547 = vld [vmem:[%s1518 + $0xe0] sm:$0xff]
      %v1548 = vld [vmem:[%s1518 + $0xe8] sm:$0xff]
      %v1549 = vld [vmem:[%s1518 + $0xf0] sm:$0xff]
      %v1550 = vld [vmem:[%s1518 + $0xf8] sm:$0xff]
      %1551 = vmatprep.subr.mxu0 %v1520
      %1552 = vmatpush1.msra.mxu0 %v1519
      %1553 = vmatprep.subr.mxu0 %v1524
      %1554 = vmatpush1.msra.mxu0 %v1523
      %1555 = vmatprep.subr.mxu0 %v1528
      %1556 = vmatpush1.msra.mxu0 %v1527
      %1557 = vmatprep.subr.mxu0 %v1532
      %1558 = vmatpush1.msra.mxu0 %v1531
      %1559 = vmatprep.subr.mxu0 %v1536
      %1560 = vmatpush1.msra.mxu0 %v1535
      %1561 = vmatprep.subr.mxu0 %v1540
      %1562 = vmatpush1.msra.mxu0 %v1539
      %1563 = vmatprep.subr.mxu0 %v1544
      %1564 = vmatpush1.msra.mxu0 %v1543
      %1565 = vmatprep.subr.mxu0 %v1548
      %1566 = vmatpush1.msra.mxu0 %v1547
      %1567 = vmatprep.subr.mxu0 0.0
      %1568 = vmatpush1.msra.mxu0 0.0
      %1569 = vmatprep.subr.mxu0 0.0
      %1570 = vmatpush1.msra.mxu0 0.0
      %1571 = vmatprep.subr.mxu0 0.0
      %1572 = vmatpush1.msra.mxu0 0.0
      %1573 = vmatprep.subr.mxu0 0.0
      %1574 = vmatpush1.msra.mxu0 0.0
      %1575 = vmatprep.subr.mxu0 0.0
      %1576 = vmatpush1.msra.mxu0 0.0
      %1577 = vmatprep.subr.mxu0 0.0
      %1578 = vmatpush1.msra.mxu0 0.0
      %1579 = vmatprep.subr.mxu0 0.0
      %1580 = vmatpush1.msra.mxu0 0.0
      %1581 = vmatprep.subr.mxu0 0.0
      %1582 = vmatpush1.msra.mxu0 0.0
      %1583 = vmatprep.subr.mxu0 0.0
      %1584 = vmatpush1.msra.mxu0 0.0
      %1585 = vmatprep.subr.mxu0 0.0
      %1586 = vmatpush1.msra.mxu0 0.0
      %1587 = vmatprep.subr.mxu0 0.0
      %1588 = vmatpush1.msra.mxu0 0.0
      %1589 = vmatprep.subr.mxu0 0.0
      %1590 = vmatpush1.msra.mxu0 0.0
      %1591 = vmatprep.subr.mxu0 0.0
      %1592 = vmatpush1.msra.mxu0 0.0
      %1593 = vmatprep.subr.mxu0 0.0
      %1594 = vmatpush1.msra.mxu0 0.0
      %1595 = vmatprep.subr.mxu0 0.0
      %1596 = vmatpush1.msra.mxu0 0.0
      %1597 = vmatprep.subr.mxu0 0.0
      %1598 = vmatpush1.msra.mxu0 0.0
      %1599 = vmatprep.subr.mxu0 0.0
      %1600 = vmatpush1.msra.mxu0 0.0
      %1601 = vmatprep.subr.mxu0 0.0
      %1602 = vmatpush1.msra.mxu0 0.0
      %1603 = vmatprep.subr.mxu0 0.0
      %1604 = vmatpush1.msra.mxu0 0.0
      %1605 = vmatprep.subr.mxu0 0.0
      %1606 = vmatpush1.msra.mxu0 0.0
      %1607 = vmatprep.subr.mxu0 0.0
      %1608 = vmatpush1.msra.mxu0 0.0
      %1609 = vmatprep.subr.mxu0 0.0
      %1610 = vmatpush1.msra.mxu0 0.0
      %1611 = vmatprep.subr.mxu0 0.0
      %1612 = vmatpush1.msra.mxu0 0.0
      %1613 = vmatprep.subr.mxu0 0.0
      %1614 = vmatpush1.msra.mxu0 0.0
      %1615 = vmatprep.mubr.f32.mxu0 0.0
      %1616 = vmatmul.mubr.f32.gmra.mrb[0].mxu0 %v332
      %v1617 = vpop.f32.mrb[0].mxu0
      %v1618 = vadd.f32 %v323, %v1617
      %v1619 = vpop.f32.mrb[0].mxu0
      %v1620 = vadd.f32 %v323, %v1619
      %1621 = vmatprep.mubr.f32.mxu0 0.0
      %1622 = vmatmul.mubr.f32.gmra.mrb[0].mxu0 %v335
      %v1623 = vpop.f32.mrb[0].mxu0
      %v1624 = vadd.f32 %v328, %v1623
      %v1625 = vpop.f32.mrb[0].mxu0
      %v1626 = vadd.f32 %v328, %v1625
      %1627 = vdwg.mxu0
      %1628 = vmatprep.subr.mxu0 %v1522
      %1629 = vmatpush1.msra.mxu0 %v1521
      %1630 = vmatprep.subr.mxu0 %v1526
      %1631 = vmatpush1.msra.mxu0 %v1525
      %1632 = vmatprep.subr.mxu0 %v1530
      %1633 = vmatpush1.msra.mxu0 %v1529
      %1634 = vmatprep.subr.mxu0 %v1534
      %1635 = vmatpush1.msra.mxu0 %v1533
      %1636 = vmatprep.subr.mxu0 %v1538
      %1637 = vmatpush1.msra.mxu0 %v1537
      %1638 = vmatprep.subr.mxu0 %v1542
      %1639 = vmatpush1.msra.mxu0 %v1541
      %1640 = vmatprep.subr.mxu0 %v1546
      %1641 = vmatpush1.msra.mxu0 %v1545
      %1642 = vmatprep.subr.mxu0 %v1550
      %1643 = vmatpush1.msra.mxu0 %v1549
      %1644 = vmatprep.subr.mxu0 0.0
      %1645 = vmatpush1.msra.mxu0 0.0
      %1646 = vmatprep.subr.mxu0 0.0
      %1647 = vmatpush1.msra.mxu0 0.0
      %1648 = vmatprep.subr.mxu0 0.0
      %1649 = vmatpush1.msra.mxu0 0.0
      %1650 = vmatprep.subr.mxu0 0.0
      %1651 = vmatpush1.msra.mxu0 0.0
      %1652 = vmatprep.subr.mxu0 0.0
      %1653 = vmatpush1.msra.mxu0 0.0
      %1654 = vmatprep.subr.mxu0 0.0
      %1655 = vmatpush1.msra.mxu0 0.0
      %1656 = vmatprep.subr.mxu0 0.0
      %1657 = vmatpush1.msra.mxu0 0.0
      %1658 = vmatprep.subr.mxu0 0.0
      %1659 = vmatpush1.msra.mxu0 0.0
      %1660 = vmatprep.subr.mxu0 0.0
      %1661 = vmatpush1.msra.mxu0 0.0
      %1662 = vmatprep.subr.mxu0 0.0
      %1663 = vmatpush1.msra.mxu0 0.0
      %1664 = vmatprep.subr.mxu0 0.0
      %1665 = vmatpush1.msra.mxu0 0.0
      %1666 = vmatprep.subr.mxu0 0.0
      %1667 = vmatpush1.msra.mxu0 0.0
      %1668 = vmatprep.subr.mxu0 0.0
      %1669 = vmatpush1.msra.mxu0 0.0
      %1670 = vmatprep.subr.mxu0 0.0
      %1671 = vmatpush1.msra.mxu0 0.0
      %1672 = vmatprep.subr.mxu0 0.0
      %1673 = vmatpush1.msra.mxu0 0.0
      %1674 = vmatprep.subr.mxu0 0.0
      %1675 = vmatpush1.msra.mxu0 0.0
      %1676 = vmatprep.subr.mxu0 0.0
      %1677 = vmatpush1.msra.mxu0 0.0
      %1678 = vmatprep.subr.mxu0 0.0
      %1679 = vmatpush1.msra.mxu0 0.0
      %1680 = vmatprep.subr.mxu0 0.0
      %1681 = vmatpush1.msra.mxu0 0.0
      %1682 = vmatprep.subr.mxu0 0.0
      %1683 = vmatpush1.msra.mxu0 0.0
      %1684 = vmatprep.subr.mxu0 0.0
      %1685 = vmatpush1.msra.mxu0 0.0
      %1686 = vmatprep.subr.mxu0 0.0
      %1687 = vmatpush1.msra.mxu0 0.0
      %1688 = vmatprep.subr.mxu0 0.0
      %1689 = vmatpush1.msra.mxu0 0.0
      %1690 = vmatprep.subr.mxu0 0.0
      %1691 = vmatpush1.msra.mxu0 0.0
      %1692 = vmatprep.mubr.f32.mxu0 0.0
      %1693 = vmatmul.mubr.f32.gmra.mrb[0].mxu0 %v332
      %v1694 = vpop.f32.mrb[0].mxu0
      %v1695 = vadd.f32 %v323, %v1694
      %v1696 = vpop.f32.mrb[0].mxu0
      %v1697 = vadd.f32 %v323, %v1696
      %1698 = vmatprep.mubr.f32.mxu0 0.0
      %1699 = vmatmul.mubr.f32.gmra.mrb[0].mxu0 %v335
      %v1700 = vpop.f32.mrb[0].mxu0
      %v1701 = vadd.f32 %v328, %v1700
      %v1702 = vpop.f32.mrb[0].mxu0
      %v1703 = vadd.f32 %v328, %v1702
      %1704 = vdwg.mxu0
      %v1705 = vmax.f32 %v1618, 0.0
      %v1706 = vmax.f32 %v1620, 0.0
      %v1707 = vmax.f32 %v1695, 0.0
      %v1708 = vmax.f32 %v1697, 0.0
      %v1709 = vmax.f32 %v1624, 0.0
      %v1710 = vmax.f32 %v1626, 0.0
      %v1711 = vmax.f32 %v1701, 0.0
      %v1712 = vmax.f32 %v1703, 0.0
      %1717 = vrot.lane.b32.xlu0 %v1705, 28
      %v1718 = vpop.permute.xlu0 %1717
      %1719 = vrot.lane.b32.xlu0 %v1706, 28
      %v1720 = vpop.permute.xlu0 %1719
      %1721 = vrot.lane.b32.xlu0 %v1709, 28
      %v1722 = vpop.permute.xlu0 %1721
      %1723 = vrot.lane.b32.xlu0 %v1710, 28
      %v1724 = vpop.permute.xlu0 %1723
      %v1725 = vsel %vm511, %v1718, %v1720
      %v1726 = vsel %vm511, %v1722, %v1724
      %1729 = vrot.lane.b32.xlu0 %v1705, 127
      %v1730 = vpop.permute.xlu0 %1729
      %1731 = vrot.lane.b32.xlu0 %v1709, 127
      %v1732 = vpop.permute.xlu0 %1731
      %1735 = vrot.lane.b32.xlu0 %v1705, 27
      %v1736 = vpop.permute.xlu0 %1735
      %1737 = vrot.lane.b32.xlu0 %v1706, 27
      %v1738 = vpop.permute.xlu0 %1737
      %1739 = vrot.lane.b32.xlu0 %v1709, 27
      %v1740 = vpop.permute.xlu0 %1739
      %1741 = vrot.lane.b32.xlu0 %v1710, 27
      %v1742 = vpop.permute.xlu0 %1741
      %v1743 = vsel %vm530, %v1736, %v1738
      %v1744 = vsel %vm530, %v1740, %v1742
      %1749 = vrot.lane.b32.xlu0 %v1706, 56
      %v1750 = vpop.permute.xlu0 %1749
      %1751 = vrot.lane.b32.xlu0 %v1707, 56
      %v1752 = vpop.permute.xlu0 %1751
      %1753 = vrot.lane.b32.xlu0 %v1710, 56
      %v1754 = vpop.permute.xlu0 %1753
      %1755 = vrot.lane.b32.xlu0 %v1711, 56
      %v1756 = vpop.permute.xlu0 %1755
      %v1757 = vsel %vm545, %v1750, %v1752
      %v1758 = vsel %vm545, %v1754, %v1756
      %1763 = vrot.lane.b32.xlu0 %v1707, 84
      %v1764 = vpop.permute.xlu0 %1763
      %1765 = vrot.lane.b32.xlu0 %v1708, 84
      %v1766 = vpop.permute.xlu0 %1765
      %1767 = vrot.lane.b32.xlu0 %v1711, 84
      %v1768 = vpop.permute.xlu0 %1767
      %1769 = vrot.lane.b32.xlu0 %v1712, 84
      %v1770 = vpop.permute.xlu0 %1769
      %v1771 = vsel %vm560, %v1764, %v1766
      %v1772 = vsel %vm560, %v1768, %v1770
      %1775 = vrot.lane.b32.xlu0 %v1706, 55
      %v1776 = vpop.permute.xlu0 %1775
      %1777 = vrot.lane.b32.xlu0 %v1707, 55
      %v1778 = vpop.permute.xlu0 %1777
      %1779 = vrot.lane.b32.xlu0 %v1710, 55
      %v1780 = vpop.permute.xlu0 %1779
      %1781 = vrot.lane.b32.xlu0 %v1711, 55
      %v1782 = vpop.permute.xlu0 %1781
      %v1783 = vsel %vm573, %v1776, %v1778
      %v1784 = vsel %vm573, %v1780, %v1782
      %1787 = vrot.lane.b32.xlu0 %v1707, 83
      %v1788 = vpop.permute.xlu0 %1787
      %1789 = vrot.lane.b32.xlu0 %v1708, 83
      %v1790 = vpop.permute.xlu0 %1789
      %1791 = vrot.lane.b32.xlu0 %v1711, 83
      %v1792 = vpop.permute.xlu0 %1791
      %1793 = vrot.lane.b32.xlu0 %v1712, 83
      %v1794 = vpop.permute.xlu0 %1793
      %v1795 = vsel %vm586, %v1788, %v1790
      %v1796 = vsel %vm586, %v1792, %v1794
      %1799 = vrot.lane.b32.xlu0 %v1705, 118
      %v1800 = vpop.permute.xlu0 %1799
      %1801 = vrot.lane.b32.xlu0 %v1709, 118
      %v1802 = vpop.permute.xlu0 %1801
      %1805 = vrot.lane.b32.xlu0 %v1705, 18
      %v1806 = vpop.permute.xlu0 %1805
      %1807 = vrot.lane.b32.xlu0 %v1706, 18
      %v1808 = vpop.permute.xlu0 %1807
      %1809 = vrot.lane.b32.xlu0 %v1709, 18
      %v1810 = vpop.permute.xlu0 %1809
      %1811 = vrot.lane.b32.xlu0 %v1710, 18
      %v1812 = vpop.permute.xlu0 %1811
      %v1813 = vsel %vm605, %v1806, %v1808
      %v1814 = vsel %vm605, %v1810, %v1812
      %1817 = vrot.lane.b32.xlu0 %v1705, 117
      %v1818 = vpop.permute.xlu0 %1817
      %1819 = vrot.lane.b32.xlu0 %v1709, 117
      %v1820 = vpop.permute.xlu0 %1819
      %1823 = vrot.lane.b32.xlu0 %v1705, 17
      %v1824 = vpop.permute.xlu0 %1823
      %1825 = vrot.lane.b32.xlu0 %v1706, 17
      %v1826 = vpop.permute.xlu0 %1825
      %1827 = vrot.lane.b32.xlu0 %v1709, 17
      %v1828 = vpop.permute.xlu0 %1827
      %1829 = vrot.lane.b32.xlu0 %v1710, 17
      %v1830 = vpop.permute.xlu0 %1829
      %v1831 = vsel %vm624, %v1824, %v1826
      %v1832 = vsel %vm624, %v1828, %v1830
      %1835 = vrot.lane.b32.xlu0 %v1706, 46
      %v1836 = vpop.permute.xlu0 %1835
      %1837 = vrot.lane.b32.xlu0 %v1707, 46
      %v1838 = vpop.permute.xlu0 %1837
      %1839 = vrot.lane.b32.xlu0 %v1710, 46
      %v1840 = vpop.permute.xlu0 %1839
      %1841 = vrot.lane.b32.xlu0 %v1711, 46
      %v1842 = vpop.permute.xlu0 %1841
      %v1843 = vsel %vm637, %v1836, %v1838
      %v1844 = vsel %vm637, %v1840, %v1842
      %1847 = vrot.lane.b32.xlu0 %v1707, 74
      %v1848 = vpop.permute.xlu0 %1847
      %1849 = vrot.lane.b32.xlu0 %v1708, 74
      %v1850 = vpop.permute.xlu0 %1849
      %1851 = vrot.lane.b32.xlu0 %v1711, 74
      %v1852 = vpop.permute.xlu0 %1851
      %1853 = vrot.lane.b32.xlu0 %v1712, 74
      %v1854 = vpop.permute.xlu0 %1853
      %v1855 = vsel %vm650, %v1848, %v1850
      %v1856 = vsel %vm650, %v1852, %v1854
      %1859 = vrot.lane.b32.xlu0 %v1706, 45
      %v1860 = vpop.permute.xlu0 %1859
      %1861 = vrot.lane.b32.xlu0 %v1707, 45
      %v1862 = vpop.permute.xlu0 %1861
      %1863 = vrot.lane.b32.xlu0 %v1710, 45
      %v1864 = vpop.permute.xlu0 %1863
      %1865 = vrot.lane.b32.xlu0 %v1711, 45
      %v1866 = vpop.permute.xlu0 %1865
      %v1867 = vsel %vm663, %v1860, %v1862
      %v1868 = vsel %vm663, %v1864, %v1866
      %1871 = vrot.lane.b32.xlu0 %v1707, 73
      %v1872 = vpop.permute.xlu0 %1871
      %1873 = vrot.lane.b32.xlu0 %v1708, 73
      %v1874 = vpop.permute.xlu0 %1873
      %1875 = vrot.lane.b32.xlu0 %v1711, 73
      %v1876 = vpop.permute.xlu0 %1875
      %1877 = vrot.lane.b32.xlu0 %v1712, 73
      %v1878 = vpop.permute.xlu0 %1877
      %v1879 = vsel %vm676, %v1872, %v1874
      %v1880 = vsel %vm676, %v1876, %v1878
      %1883 = vmatprep.subr.mxu0 0.0
      %1884 = vmatpush1.msra.mxu0 %v1705
      %1885 = vmatprep.subr.mxu0 0.0
      %1886 = vmatpush1.msra.mxu0 %v1709
      %1887 = vmatprep.subr.mxu0 0.0
      %1888 = vmatpush1.msra.mxu0 %v1725
      %1889 = vmatprep.subr.mxu0 0.0
      %1890 = vmatpush1.msra.mxu0 %v1726
      %1891 = vmatprep.subr.mxu0 0.0
      %1892 = vmatpush1.msra.mxu0 %v1730
      %1893 = vmatprep.subr.mxu0 0.0
      %1894 = vmatpush1.msra.mxu0 %v1732
      %1895 = vmatprep.subr.mxu0 0.0
      %1896 = vmatpush1.msra.mxu0 %v1743
      %1897 = vmatprep.subr.mxu0 0.0
      %1898 = vmatpush1.msra.mxu0 %v1744
      %1899 = vmatprep.subr.mxu0 0.0
      %1900 = vmatpush1.msra.mxu0 %v1757
      %1901 = vmatprep.subr.mxu0 0.0
      %1902 = vmatpush1.msra.mxu0 %v1758
      %1903 = vmatprep.subr.mxu0 0.0
      %1904 = vmatpush1.msra.mxu0 %v1771
      %1905 = vmatprep.subr.mxu0 0.0
      %1906 = vmatpush1.msra.mxu0 %v1772
      %1907 = vmatprep.subr.mxu0 0.0
      %1908 = vmatpush1.msra.mxu0 %v1783
      %1909 = vmatprep.subr.mxu0 0.0
      %1910 = vmatpush1.msra.mxu0 %v1784
      %1911 = vmatprep.subr.mxu0 0.0
      %1912 = vmatpush1.msra.mxu0 %v1795
      %1913 = vmatprep.subr.mxu0 0.0
      %1914 = vmatpush1.msra.mxu0 %v1796
      %1915 = vmatprep.subr.mxu0 0.0
      %1916 = vmatpush1.msra.mxu0 %v1800
      %1917 = vmatprep.subr.mxu0 0.0
      %1918 = vmatpush1.msra.mxu0 %v1802
      %1919 = vmatprep.subr.mxu0 0.0
      %1920 = vmatpush1.msra.mxu0 %v1813
      %1921 = vmatprep.subr.mxu0 0.0
      %1922 = vmatpush1.msra.mxu0 %v1814
      %1923 = vmatprep.subr.mxu0 0.0
      %1924 = vmatpush1.msra.mxu0 %v1818
      %1925 = vmatprep.subr.mxu0 0.0
      %1926 = vmatpush1.msra.mxu0 %v1820
      %1927 = vmatprep.subr.mxu0 0.0
      %1928 = vmatpush1.msra.mxu0 %v1831
      %1929 = vmatprep.subr.mxu0 0.0
      %1930 = vmatpush1.msra.mxu0 %v1832
      %1931 = vmatprep.subr.mxu0 0.0
      %1932 = vmatpush1.msra.mxu0 %v1843
      %1933 = vmatprep.subr.mxu0 0.0
      %1934 = vmatpush1.msra.mxu0 %v1844
      %1935 = vmatprep.subr.mxu0 0.0
      %1936 = vmatpush1.msra.mxu0 %v1855
      %1937 = vmatprep.subr.mxu0 0.0
      %1938 = vmatpush1.msra.mxu0 %v1856
      %1939 = vmatprep.subr.mxu0 0.0
      %1940 = vmatpush1.msra.mxu0 %v1867
      %1941 = vmatprep.subr.mxu0 0.0
      %1942 = vmatpush1.msra.mxu0 %v1868
      %1943 = vmatprep.subr.mxu0 0.0
      %1944 = vmatpush1.msra.mxu0 %v1879
      %1945 = vmatprep.subr.mxu0 0.0
      %1946 = vmatpush1.msra.mxu0 %v1880
      %1947 = vmatprep.mubr.f32.mxu0 %v682
      %1948 = vmatmul.mubr.f32.gmra.mrb[0].mxu0 %v681
      %v1949 = vpop.f32.mrb[0].mxu0
      %v1950 = vadd.f32 %v696, %v1949
      %v1951 = vpop.f32.mrb[0].mxu0
      %1952 = vmatprep.mubr.f32.mxu0 %v684
      %1953 = vmatmul.mubr.f32.gmra.mrb[0].mxu0 %v683
      %v1954 = vpop.f32.mrb[0].mxu0
      %v1955 = vadd.f32 %v701, %v1954
      %v1956 = vpop.f32.mrb[0].mxu0
      %1957 = vmatprep.mubr.f32.mxu0 %v686
      %1958 = vmatmul.mubr.f32.gmra.mrb[0].mxu0 %v685
      %v1959 = vpop.f32.mrb[0].mxu0
      %v1960 = vadd.f32 %v706, %v1959
      %v1961 = vpop.f32.mrb[0].mxu0
      %1962 = vmatprep.mubr.f32.mxu0 %v688
      %1963 = vmatmul.mubr.f32.gmra.mrb[0].mxu0 %v687
      %v1964 = vpop.f32.mrb[0].mxu0
      %v1965 = vadd.f32 %v711, %v1964
      %v1966 = vpop.f32.mrb[0].mxu0
      %1967 = vdwg.mxu0
      %v1968 = vmax.f32 %v1950, 0.0
      %v1969 = vmax.f32 %v1955, 0.0
      %v1970 = vmax.f32 %v1960, 0.0
      %v1971 = vmax.f32 %v1965, 0.0
      %v1972 = vmul.f32 %v802, %v1968
      %v1973 = vmul.f32 %v803, %v1969
      %v1974 = vmul.f32 %v804, %v1970
      %v1975 = vmul.f32 %v805, %v1971
      %v1976 = vmul.f32 %v806, %v1968
      %v1977 = vmul.f32 %v807, %v1969
      %v1978 = vmul.f32 %v808, %v1970
      %v1979 = vmul.f32 %v809, %v1971
      %v1980 = vmul.f32 %v810, %v1968
      %v1981 = vmul.f32 %v811, %v1969
      %v1982 = vmul.f32 %v812, %v1970
      %v1983 = vmul.f32 %v813, %v1971
      %v1984 = vmul.f32 %v814, %v1968
      %v1985 = vmul.f32 %v815, %v1969
      %v1986 = vmul.f32 %v816, %v1970
      %v1987 = vmul.f32 %v817, %v1971
      %v1988 = vsel %vm834, %v1972, 0.0
      %v1989 = vsel %vm834, %v1973, 0.0
      %v1990 = vadd.f32 %v1988, %v1989
      %v1991 = vsel %vm834, %v1974, 0.0
      %v1992 = vadd.f32 %v1990, %v1991
      %v1993 = vsel %vm834, %v1975, 0.0
      %v1994 = vadd.f32 %v1992, %v1993
      %v1995 = vrot.slane %v1994, 4
      %v1996 = vadd.f32 %v1994, %v1995
      %v1997 = vrot.slane %v1996, 2
      %v1998 = vadd.f32 %v1996, %v1997
      %v1999 = vrot.slane %v1998, 1
      %v2000 = vadd.f32 %v1998, %v1999
      %v2001 = vsel %vm834, %v1976, 0.0
      %v2002 = vsel %vm834, %v1977, 0.0
      %v2003 = vadd.f32 %v2001, %v2002
      %v2004 = vsel %vm834, %v1978, 0.0
      %v2005 = vadd.f32 %v2003, %v2004
      %v2006 = vsel %vm834, %v1979, 0.0
      %v2007 = vadd.f32 %v2005, %v2006
      %v2008 = vrot.slane %v2007, 4
      %v2009 = vadd.f32 %v2007, %v2008
      %v2010 = vrot.slane %v2009, 2
      %v2011 = vadd.f32 %v2009, %v2010
      %v2012 = vrot.slane %v2011, 1
      %v2013 = vadd.f32 %v2011, %v2012
      %v2014 = vsel %vm834, %v1980, 0.0
      %v2015 = vsel %vm834, %v1981, 0.0
      %v2016 = vadd.f32 %v2014, %v2015
      %v2017 = vsel %vm834, %v1982, 0.0
      %v2018 = vadd.f32 %v2016, %v2017
      %v2019 = vsel %vm834, %v1983, 0.0
      %v2020 = vadd.f32 %v2018, %v2019
      %v2021 = vrot.slane %v2020, 4
      %v2022 = vadd.f32 %v2020, %v2021
      %v2023 = vrot.slane %v2022, 2
      %v2024 = vadd.f32 %v2022, %v2023
      %v2025 = vrot.slane %v2024, 1
      %v2026 = vadd.f32 %v2024, %v2025
      %v2027 = vsel %vm834, %v1984, 0.0
      %v2028 = vsel %vm834, %v1985, 0.0
      %v2029 = vadd.f32 %v2027, %v2028
      %v2030 = vsel %vm834, %v1986, 0.0
      %v2031 = vadd.f32 %v2029, %v2030
      %v2032 = vsel %vm834, %v1987, 0.0
      %v2033 = vadd.f32 %v2031, %v2032
      %v2034 = vrot.slane %v2033, 4
      %v2035 = vadd.f32 %v2033, %v2034
      %v2036 = vrot.slane %v2035, 2
      %v2037 = vadd.f32 %v2035, %v2036
      %v2038 = vrot.slane %v2037, 1
      %v2039 = vadd.f32 %v2037, %v2038
      %v2040 = vsel %vm888, %v2000, 0.0
      %2041 = vadd.xlane.f32.xlu0 %v2040
      %v2042 = vpop.xlane.xlu0 %2041
      %v2043 = vrot.slane %v2042, 4
      %v2044 = vadd.f32 %v2042, %v2043
      %v2045 = vrot.slane %v2044, 2
      %v2046 = vadd.f32 %v2044, %v2045
      %v2047 = vrot.slane %v2046, 1
      %v2048 = vadd.f32 %v2046, %v2047
      %s2049 = vtos %v2048
      %v2050 = vstv %s2049
      %v2051 = vsel %vm887, %v2050, 0.0
      %v2052 = vadd.f32 %v2051, 0.0
      %v2053 = vsel %vm888, %v2013, 0.0
      %2054 = vadd.xlane.f32.xlu0 %v2053
      %v2055 = vpop.xlane.xlu0 %2054
      %v2056 = vrot.slane %v2055, 4
      %v2057 = vadd.f32 %v2055, %v2056
      %v2058 = vrot.slane %v2057, 2
      %v2059 = vadd.f32 %v2057, %v2058
      %v2060 = vrot.slane %v2059, 1
      %v2061 = vadd.f32 %v2059, %v2060
      %s2062 = vtos %v2061
      %v2063 = vstv %s2062
      %v2064 = vsel %vm902, %v2063, 0.0
      %v2065 = vadd.f32 %v2052, %v2064
      %v2066 = vsel %vm888, %v2026, 0.0
      %2067 = vadd.xlane.f32.xlu0 %v2066
      %v2068 = vpop.xlane.xlu0 %2067
      %v2069 = vrot.slane %v2068, 4
      %v2070 = vadd.f32 %v2068, %v2069
      %v2071 = vrot.slane %v2070, 2
      %v2072 = vadd.f32 %v2070, %v2071
      %v2073 = vrot.slane %v2072, 1
      %v2074 = vadd.f32 %v2072, %v2073
      %s2075 = vtos %v2074
      %v2076 = vstv %s2075
      %v2077 = vsel %vm916, %v2076, 0.0
      %v2078 = vadd.f32 %v2065, %v2077
      %v2079 = vsel %vm888, %v2039, 0.0
      %2080 = vadd.xlane.f32.xlu0 %v2079
      %v2081 = vpop.xlane.xlu0 %2080
      %v2082 = vrot.slane %v2081, 4
      %v2083 = vadd.f32 %v2081, %v2082
      %v2084 = vrot.slane %v2083, 2
      %v2085 = vadd.f32 %v2083, %v2084
      %v2086 = vrot.slane %v2085, 1
      %v2087 = vadd.f32 %v2085, %v2086
      %s2088 = vtos %v2087
      %v2089 = vstv %s2088
      %v2090 = vsel %vm930, %v2089, 0.0
      %v2091 = vadd.f32 %v2078, %v2090
      %s2092 = scalar_lea.vmem %s276, 768
      %v2093 = vld [vmem:[%s2092] sm:$0xff]
      %v2094 = vld [vmem:[%s2092 + $0x8] sm:$0xff]
      %v2095 = vld [vmem:[%s2092 + $0x10] sm:$0xff]
      %v2096 = vld [vmem:[%s2092 + $0x18] sm:$0xff]
      %v2097 = vld [vmem:[%s2092 + $0x20] sm:$0xff]
      %v2098 = vld [vmem:[%s2092 + $0x28] sm:$0xff]
      %v2099 = vld [vmem:[%s2092 + $0x30] sm:$0xff]
      %v2100 = vld [vmem:[%s2092 + $0x38] sm:$0xff]
      %v2101 = vld [vmem:[%s2092 + $0x40] sm:$0xff]
      %v2102 = vld [vmem:[%s2092 + $0x48] sm:$0xff]
      %v2103 = vld [vmem:[%s2092 + $0x50] sm:$0xff]
      %v2104 = vld [vmem:[%s2092 + $0x58] sm:$0xff]
      %v2105 = vld [vmem:[%s2092 + $0x60] sm:$0xff]
      %v2106 = vld [vmem:[%s2092 + $0x68] sm:$0xff]
      %v2107 = vld [vmem:[%s2092 + $0x70] sm:$0xff]
      %v2108 = vld [vmem:[%s2092 + $0x78] sm:$0xff]
      %v2109 = vld [vmem:[%s2092 + $0x80] sm:$0xff]
      %v2110 = vld [vmem:[%s2092 + $0x88] sm:$0xff]
      %v2111 = vld [vmem:[%s2092 + $0x90] sm:$0xff]
      %v2112 = vld [vmem:[%s2092 + $0x98] sm:$0xff]
      %v2113 = vld [vmem:[%s2092 + $0xa0] sm:$0xff]
      %v2114 = vld [vmem:[%s2092 + $0xa8] sm:$0xff]
      %v2115 = vld [vmem:[%s2092 + $0xb0] sm:$0xff]
      %v2116 = vld [vmem:[%s2092 + $0xb8] sm:$0xff]
      %v2117 = vld [vmem:[%s2092 + $0xc0] sm:$0xff]
      %v2118 = vld [vmem:[%s2092 + $0xc8] sm:$0xff]
      %v2119 = vld [vmem:[%s2092 + $0xd0] sm:$0xff]
      %v2120 = vld [vmem:[%s2092 + $0xd8] sm:$0xff]
      %v2121 = vld [vmem:[%s2092 + $0xe0] sm:$0xff]
      %v2122 = vld [vmem:[%s2092 + $0xe8] sm:$0xff]
      %v2123 = vld [vmem:[%s2092 + $0xf0] sm:$0xff]
      %v2124 = vld [vmem:[%s2092 + $0xf8] sm:$0xff]
      %2125 = vmatprep.subr.mxu0 %v2094
      %2126 = vmatpush1.msra.mxu0 %v2093
      %2127 = vmatprep.subr.mxu0 %v2098
      %2128 = vmatpush1.msra.mxu0 %v2097
      %2129 = vmatprep.subr.mxu0 %v2102
      %2130 = vmatpush1.msra.mxu0 %v2101
      %2131 = vmatprep.subr.mxu0 %v2106
      %2132 = vmatpush1.msra.mxu0 %v2105
      %2133 = vmatprep.subr.mxu0 %v2110
      %2134 = vmatpush1.msra.mxu0 %v2109
      %2135 = vmatprep.subr.mxu0 %v2114
      %2136 = vmatpush1.msra.mxu0 %v2113
      %2137 = vmatprep.subr.mxu0 %v2118
      %2138 = vmatpush1.msra.mxu0 %v2117
      %2139 = vmatprep.subr.mxu0 %v2122
      %2140 = vmatpush1.msra.mxu0 %v2121
      %2141 = vmatprep.subr.mxu0 0.0
      %2142 = vmatpush1.msra.mxu0 0.0
      %2143 = vmatprep.subr.mxu0 0.0
      %2144 = vmatpush1.msra.mxu0 0.0
      %2145 = vmatprep.subr.mxu0 0.0
      %2146 = vmatpush1.msra.mxu0 0.0
      %2147 = vmatprep.subr.mxu0 0.0
      %2148 = vmatpush1.msra.mxu0 0.0
      %2149 = vmatprep.subr.mxu0 0.0
      %2150 = vmatpush1.msra.mxu0 0.0
      %2151 = vmatprep.subr.mxu0 0.0
      %2152 = vmatpush1.msra.mxu0 0.0
      %2153 = vmatprep.subr.mxu0 0.0
      %2154 = vmatpush1.msra.mxu0 0.0
      %2155 = vmatprep.subr.mxu0 0.0
      %2156 = vmatpush1.msra.mxu0 0.0
      %2157 = vmatprep.subr.mxu0 0.0
      %2158 = vmatpush1.msra.mxu0 0.0
      %2159 = vmatprep.subr.mxu0 0.0
      %2160 = vmatpush1.msra.mxu0 0.0
      %2161 = vmatprep.subr.mxu0 0.0
      %2162 = vmatpush1.msra.mxu0 0.0
      %2163 = vmatprep.subr.mxu0 0.0
      %2164 = vmatpush1.msra.mxu0 0.0
      %2165 = vmatprep.subr.mxu0 0.0
      %2166 = vmatpush1.msra.mxu0 0.0
      %2167 = vmatprep.subr.mxu0 0.0
      %2168 = vmatpush1.msra.mxu0 0.0
      %2169 = vmatprep.subr.mxu0 0.0
      %2170 = vmatpush1.msra.mxu0 0.0
      %2171 = vmatprep.subr.mxu0 0.0
      %2172 = vmatpush1.msra.mxu0 0.0
      %2173 = vmatprep.subr.mxu0 0.0
      %2174 = vmatpush1.msra.mxu0 0.0
      %2175 = vmatprep.subr.mxu0 0.0
      %2176 = vmatpush1.msra.mxu0 0.0
      %2177 = vmatprep.subr.mxu0 0.0
      %2178 = vmatpush1.msra.mxu0 0.0
      %2179 = vmatprep.subr.mxu0 0.0
      %2180 = vmatpush1.msra.mxu0 0.0
      %2181 = vmatprep.subr.mxu0 0.0
      %2182 = vmatpush1.msra.mxu0 0.0
      %2183 = vmatprep.subr.mxu0 0.0
      %2184 = vmatpush1.msra.mxu0 0.0
      %2185 = vmatprep.subr.mxu0 0.0
      %2186 = vmatpush1.msra.mxu0 0.0
      %2187 = vmatprep.subr.mxu0 0.0
      %2188 = vmatpush1.msra.mxu0 0.0
      %2189 = vmatprep.mubr.f32.mxu0 0.0
      %2190 = vmatmul.mubr.f32.gmra.mrb[0].mxu0 %v332
      %v2191 = vpop.f32.mrb[0].mxu0
      %v2192 = vadd.f32 %v323, %v2191
      %v2193 = vpop.f32.mrb[0].mxu0
      %v2194 = vadd.f32 %v323, %v2193
      %2195 = vmatprep.mubr.f32.mxu0 0.0
      %2196 = vmatmul.mubr.f32.gmra.mrb[0].mxu0 %v335
      %v2197 = vpop.f32.mrb[0].mxu0
      %v2198 = vadd.f32 %v328, %v2197
      %v2199 = vpop.f32.mrb[0].mxu0
      %v2200 = vadd.f32 %v328, %v2199
      %2201 = vdwg.mxu0
      %2202 = vmatprep.subr.mxu0 %v2096
      %2203 = vmatpush1.msra.mxu0 %v2095
      %2204 = vmatprep.subr.mxu0 %v2100
      %2205 = vmatpush1.msra.mxu0 %v2099
      %2206 = vmatprep.subr.mxu0 %v2104
      %2207 = vmatpush1.msra.mxu0 %v2103
      %2208 = vmatprep.subr.mxu0 %v2108
      %2209 = vmatpush1.msra.mxu0 %v2107
      %2210 = vmatprep.subr.mxu0 %v2112
      %2211 = vmatpush1.msra.mxu0 %v2111
      %2212 = vmatprep.subr.mxu0 %v2116
      %2213 = vmatpush1.msra.mxu0 %v2115
      %2214 = vmatprep.subr.mxu0 %v2120
      %2215 = vmatpush1.msra.mxu0 %v2119
      %2216 = vmatprep.subr.mxu0 %v2124
      %2217 = vmatpush1.msra.mxu0 %v2123
      %2218 = vmatprep.subr.mxu0 0.0
      %2219 = vmatpush1.msra.mxu0 0.0
      %2220 = vmatprep.subr.mxu0 0.0
      %2221 = vmatpush1.msra.mxu0 0.0
      %2222 = vmatprep.subr.mxu0 0.0
      %2223 = vmatpush1.msra.mxu0 0.0
      %2224 = vmatprep.subr.mxu0 0.0
      %2225 = vmatpush1.msra.mxu0 0.0
      %2226 = vmatprep.subr.mxu0 0.0
      %2227 = vmatpush1.msra.mxu0 0.0
      %2228 = vmatprep.subr.mxu0 0.0
      %2229 = vmatpush1.msra.mxu0 0.0
      %2230 = vmatprep.subr.mxu0 0.0
      %2231 = vmatpush1.msra.mxu0 0.0
      %2232 = vmatprep.subr.mxu0 0.0
      %2233 = vmatpush1.msra.mxu0 0.0
      %2234 = vmatprep.subr.mxu0 0.0
      %2235 = vmatpush1.msra.mxu0 0.0
      %2236 = vmatprep.subr.mxu0 0.0
      %2237 = vmatpush1.msra.mxu0 0.0
      %2238 = vmatprep.subr.mxu0 0.0
      %2239 = vmatpush1.msra.mxu0 0.0
      %2240 = vmatprep.subr.mxu0 0.0
      %2241 = vmatpush1.msra.mxu0 0.0
      %2242 = vmatprep.subr.mxu0 0.0
      %2243 = vmatpush1.msra.mxu0 0.0
      %2244 = vmatprep.subr.mxu0 0.0
      %2245 = vmatpush1.msra.mxu0 0.0
      %2246 = vmatprep.subr.mxu0 0.0
      %2247 = vmatpush1.msra.mxu0 0.0
      %2248 = vmatprep.subr.mxu0 0.0
      %2249 = vmatpush1.msra.mxu0 0.0
      %2250 = vmatprep.subr.mxu0 0.0
      %2251 = vmatpush1.msra.mxu0 0.0
      %2252 = vmatprep.subr.mxu0 0.0
      %2253 = vmatpush1.msra.mxu0 0.0
      %2254 = vmatprep.subr.mxu0 0.0
      %2255 = vmatpush1.msra.mxu0 0.0
      %2256 = vmatprep.subr.mxu0 0.0
      %2257 = vmatpush1.msra.mxu0 0.0
      %2258 = vmatprep.subr.mxu0 0.0
      %2259 = vmatpush1.msra.mxu0 0.0
      %2260 = vmatprep.subr.mxu0 0.0
      %2261 = vmatpush1.msra.mxu0 0.0
      %2262 = vmatprep.subr.mxu0 0.0
      %2263 = vmatpush1.msra.mxu0 0.0
      %2264 = vmatprep.subr.mxu0 0.0
      %2265 = vmatpush1.msra.mxu0 0.0
      %2266 = vmatprep.mubr.f32.mxu0 0.0
      %2267 = vmatmul.mubr.f32.gmra.mrb[0].mxu0 %v332
      %v2268 = vpop.f32.mrb[0].mxu0
      %v2269 = vadd.f32 %v323, %v2268
      %v2270 = vpop.f32.mrb[0].mxu0
      %v2271 = vadd.f32 %v323, %v2270
      %2272 = vmatprep.mubr.f32.mxu0 0.0
      %2273 = vmatmul.mubr.f32.gmra.mrb[0].mxu0 %v335
      %v2274 = vpop.f32.mrb[0].mxu0
      %v2275 = vadd.f32 %v328, %v2274
      %v2276 = vpop.f32.mrb[0].mxu0
      %v2277 = vadd.f32 %v328, %v2276
      %2278 = vdwg.mxu0
      %v2279 = vmax.f32 %v2192, 0.0
      %v2280 = vmax.f32 %v2194, 0.0
      %v2281 = vmax.f32 %v2269, 0.0
      %v2282 = vmax.f32 %v2271, 0.0
      %v2283 = vmax.f32 %v2198, 0.0
      %v2284 = vmax.f32 %v2200, 0.0
      %v2285 = vmax.f32 %v2275, 0.0
      %v2286 = vmax.f32 %v2277, 0.0
      %2291 = vrot.lane.b32.xlu0 %v2279, 28
      %v2292 = vpop.permute.xlu0 %2291
      %2293 = vrot.lane.b32.xlu0 %v2280, 28
      %v2294 = vpop.permute.xlu0 %2293
      %2295 = vrot.lane.b32.xlu0 %v2283, 28
      %v2296 = vpop.permute.xlu0 %2295
      %2297 = vrot.lane.b32.xlu0 %v2284, 28
      %v2298 = vpop.permute.xlu0 %2297
      %v2299 = vsel %vm511, %v2292, %v2294
      %v2300 = vsel %vm511, %v2296, %v2298
      %2303 = vrot.lane.b32.xlu0 %v2279, 127
      %v2304 = vpop.permute.xlu0 %2303
      %2305 = vrot.lane.b32.xlu0 %v2283, 127
      %v2306 = vpop.permute.xlu0 %2305
      %2309 = vrot.lane.b32.xlu0 %v2279, 27
      %v2310 = vpop.permute.xlu0 %2309
      %2311 = vrot.lane.b32.xlu0 %v2280, 27
      %v2312 = vpop.permute.xlu0 %2311
      %2313 = vrot.lane.b32.xlu0 %v2283, 27
      %v2314 = vpop.permute.xlu0 %2313
      %2315 = vrot.lane.b32.xlu0 %v2284, 27
      %v2316 = vpop.permute.xlu0 %2315
      %v2317 = vsel %vm530, %v2310, %v2312
      %v2318 = vsel %vm530, %v2314, %v2316
      %2323 = vrot.lane.b32.xlu0 %v2280, 56
      %v2324 = vpop.permute.xlu0 %2323
      %2325 = vrot.lane.b32.xlu0 %v2281, 56
      %v2326 = vpop.permute.xlu0 %2325
      %2327 = vrot.lane.b32.xlu0 %v2284, 56
      %v2328 = vpop.permute.xlu0 %2327
      %2329 = vrot.lane.b32.xlu0 %v2285, 56
      %v2330 = vpop.permute.xlu0 %2329
      %v2331 = vsel %vm545, %v2324, %v2326
      %v2332 = vsel %vm545, %v2328, %v2330
      %2337 = vrot.lane.b32.xlu0 %v2281, 84
      %v2338 = vpop.permute.xlu0 %2337
      %2339 = vrot.lane.b32.xlu0 %v2282, 84
      %v2340 = vpop.permute.xlu0 %2339
      %2341 = vrot.lane.b32.xlu0 %v2285, 84
      %v2342 = vpop.permute.xlu0 %2341
      %2343 = vrot.lane.b32.xlu0 %v2286, 84
      %v2344 = vpop.permute.xlu0 %2343
      %v2345 = vsel %vm560, %v2338, %v2340
      %v2346 = vsel %vm560, %v2342, %v2344
      %2349 = vrot.lane.b32.xlu0 %v2280, 55
      %v2350 = vpop.permute.xlu0 %2349
      %2351 = vrot.lane.b32.xlu0 %v2281, 55
      %v2352 = vpop.permute.xlu0 %2351
      %2353 = vrot.lane.b32.xlu0 %v2284, 55
      %v2354 = vpop.permute.xlu0 %2353
      %2355 = vrot.lane.b32.xlu0 %v2285, 55
      %v2356 = vpop.permute.xlu0 %2355
      %v2357 = vsel %vm573, %v2350, %v2352
      %v2358 = vsel %vm573, %v2354, %v2356
      %2361 = vrot.lane.b32.xlu0 %v2281, 83
      %v2362 = vpop.permute.xlu0 %2361
      %2363 = vrot.lane.b32.xlu0 %v2282, 83
      %v2364 = vpop.permute.xlu0 %2363
      %2365 = vrot.lane.b32.xlu0 %v2285, 83
      %v2366 = vpop.permute.xlu0 %2365
      %2367 = vrot.lane.b32.xlu0 %v2286, 83
      %v2368 = vpop.permute.xlu0 %2367
      %v2369 = vsel %vm586, %v2362, %v2364
      %v2370 = vsel %vm586, %v2366, %v2368
      %2373 = vrot.lane.b32.xlu0 %v2279, 118
      %v2374 = vpop.permute.xlu0 %2373
      %2375 = vrot.lane.b32.xlu0 %v2283, 118
      %v2376 = vpop.permute.xlu0 %2375
      %2379 = vrot.lane.b32.xlu0 %v2279, 18
      %v2380 = vpop.permute.xlu0 %2379
      %2381 = vrot.lane.b32.xlu0 %v2280, 18
      %v2382 = vpop.permute.xlu0 %2381
      %2383 = vrot.lane.b32.xlu0 %v2283, 18
      %v2384 = vpop.permute.xlu0 %2383
      %2385 = vrot.lane.b32.xlu0 %v2284, 18
      %v2386 = vpop.permute.xlu0 %2385
      %v2387 = vsel %vm605, %v2380, %v2382
      %v2388 = vsel %vm605, %v2384, %v2386
      %2391 = vrot.lane.b32.xlu0 %v2279, 117
      %v2392 = vpop.permute.xlu0 %2391
      %2393 = vrot.lane.b32.xlu0 %v2283, 117
      %v2394 = vpop.permute.xlu0 %2393
      %2397 = vrot.lane.b32.xlu0 %v2279, 17
      %v2398 = vpop.permute.xlu0 %2397
      %2399 = vrot.lane.b32.xlu0 %v2280, 17
      %v2400 = vpop.permute.xlu0 %2399
      %2401 = vrot.lane.b32.xlu0 %v2283, 17
      %v2402 = vpop.permute.xlu0 %2401
      %2403 = vrot.lane.b32.xlu0 %v2284, 17
      %v2404 = vpop.permute.xlu0 %2403
      %v2405 = vsel %vm624, %v2398, %v2400
      %v2406 = vsel %vm624, %v2402, %v2404
      %2409 = vrot.lane.b32.xlu0 %v2280, 46
      %v2410 = vpop.permute.xlu0 %2409
      %2411 = vrot.lane.b32.xlu0 %v2281, 46
      %v2412 = vpop.permute.xlu0 %2411
      %2413 = vrot.lane.b32.xlu0 %v2284, 46
      %v2414 = vpop.permute.xlu0 %2413
      %2415 = vrot.lane.b32.xlu0 %v2285, 46
      %v2416 = vpop.permute.xlu0 %2415
      %v2417 = vsel %vm637, %v2410, %v2412
      %v2418 = vsel %vm637, %v2414, %v2416
      %2421 = vrot.lane.b32.xlu0 %v2281, 74
      %v2422 = vpop.permute.xlu0 %2421
      %2423 = vrot.lane.b32.xlu0 %v2282, 74
      %v2424 = vpop.permute.xlu0 %2423
      %2425 = vrot.lane.b32.xlu0 %v2285, 74
      %v2426 = vpop.permute.xlu0 %2425
      %2427 = vrot.lane.b32.xlu0 %v2286, 74
      %v2428 = vpop.permute.xlu0 %2427
      %v2429 = vsel %vm650, %v2422, %v2424
      %v2430 = vsel %vm650, %v2426, %v2428
      %2433 = vrot.lane.b32.xlu0 %v2280, 45
      %v2434 = vpop.permute.xlu0 %2433
      %2435 = vrot.lane.b32.xlu0 %v2281, 45
      %v2436 = vpop.permute.xlu0 %2435
      %2437 = vrot.lane.b32.xlu0 %v2284, 45
      %v2438 = vpop.permute.xlu0 %2437
      %2439 = vrot.lane.b32.xlu0 %v2285, 45
      %v2440 = vpop.permute.xlu0 %2439
      %v2441 = vsel %vm663, %v2434, %v2436
      %v2442 = vsel %vm663, %v2438, %v2440
      %2445 = vrot.lane.b32.xlu0 %v2281, 73
      %v2446 = vpop.permute.xlu0 %2445
      %2447 = vrot.lane.b32.xlu0 %v2282, 73
      %v2448 = vpop.permute.xlu0 %2447
      %2449 = vrot.lane.b32.xlu0 %v2285, 73
      %v2450 = vpop.permute.xlu0 %2449
      %2451 = vrot.lane.b32.xlu0 %v2286, 73
      %v2452 = vpop.permute.xlu0 %2451
      %v2453 = vsel %vm676, %v2446, %v2448
      %v2454 = vsel %vm676, %v2450, %v2452
      %2457 = vmatprep.subr.mxu0 0.0
      %2458 = vmatpush1.msra.mxu0 %v2279
      %2459 = vmatprep.subr.mxu0 0.0
      %2460 = vmatpush1.msra.mxu0 %v2283
      %2461 = vmatprep.subr.mxu0 0.0
      %2462 = vmatpush1.msra.mxu0 %v2299
      %2463 = vmatprep.subr.mxu0 0.0
      %2464 = vmatpush1.msra.mxu0 %v2300
      %2465 = vmatprep.subr.mxu0 0.0
      %2466 = vmatpush1.msra.mxu0 %v2304
      %2467 = vmatprep.subr.mxu0 0.0
      %2468 = vmatpush1.msra.mxu0 %v2306
      %2469 = vmatprep.subr.mxu0 0.0
      %2470 = vmatpush1.msra.mxu0 %v2317
      %2471 = vmatprep.subr.mxu0 0.0
      %2472 = vmatpush1.msra.mxu0 %v2318
      %2473 = vmatprep.subr.mxu0 0.0
      %2474 = vmatpush1.msra.mxu0 %v2331
      %2475 = vmatprep.subr.mxu0 0.0
      %2476 = vmatpush1.msra.mxu0 %v2332
      %2477 = vmatprep.subr.mxu0 0.0
      %2478 = vmatpush1.msra.mxu0 %v2345
      %2479 = vmatprep.subr.mxu0 0.0
      %2480 = vmatpush1.msra.mxu0 %v2346
      %2481 = vmatprep.subr.mxu0 0.0
      %2482 = vmatpush1.msra.mxu0 %v2357
      %2483 = vmatprep.subr.mxu0 0.0
      %2484 = vmatpush1.msra.mxu0 %v2358
      %2485 = vmatprep.subr.mxu0 0.0
      %2486 = vmatpush1.msra.mxu0 %v2369
      %2487 = vmatprep.subr.mxu0 0.0
      %2488 = vmatpush1.msra.mxu0 %v2370
      %2489 = vmatprep.subr.mxu0 0.0
      %2490 = vmatpush1.msra.mxu0 %v2374
      %2491 = vmatprep.subr.mxu0 0.0
      %2492 = vmatpush1.msra.mxu0 %v2376
      %2493 = vmatprep.subr.mxu0 0.0
      %2494 = vmatpush1.msra.mxu0 %v2387
      %2495 = vmatprep.subr.mxu0 0.0
      %2496 = vmatpush1.msra.mxu0 %v2388
      %2497 = vmatprep.subr.mxu0 0.0
      %2498 = vmatpush1.msra.mxu0 %v2392
      %2499 = vmatprep.subr.mxu0 0.0
      %2500 = vmatpush1.msra.mxu0 %v2394
      %2501 = vmatprep.subr.mxu0 0.0
      %2502 = vmatpush1.msra.mxu0 %v2405
      %2503 = vmatprep.subr.mxu0 0.0
      %2504 = vmatpush1.msra.mxu0 %v2406
      %2505 = vmatprep.subr.mxu0 0.0
      %2506 = vmatpush1.msra.mxu0 %v2417
      %2507 = vmatprep.subr.mxu0 0.0
      %2508 = vmatpush1.msra.mxu0 %v2418
      %2509 = vmatprep.subr.mxu0 0.0
      %2510 = vmatpush1.msra.mxu0 %v2429
      %2511 = vmatprep.subr.mxu0 0.0
      %2512 = vmatpush1.msra.mxu0 %v2430
      %2513 = vmatprep.subr.mxu0 0.0
      %2514 = vmatpush1.msra.mxu0 %v2441
      %2515 = vmatprep.subr.mxu0 0.0
      %2516 = vmatpush1.msra.mxu0 %v2442
      %2517 = vmatprep.subr.mxu0 0.0
      %2518 = vmatpush1.msra.mxu0 %v2453
      %2519 = vmatprep.subr.mxu0 0.0
      %2520 = vmatpush1.msra.mxu0 %v2454
      %2521 = vmatprep.mubr.f32.mxu0 %v682
      %2522 = vmatmul.mubr.f32.gmra.mrb[0].mxu0 %v681
      %v2523 = vpop.f32.mrb[0].mxu0
      %v2524 = vadd.f32 %v696, %v2523
      %v2525 = vpop.f32.mrb[0].mxu0
      %2526 = vmatprep.mubr.f32.mxu0 %v684
      %2527 = vmatmul.mubr.f32.gmra.mrb[0].mxu0 %v683
      %v2528 = vpop.f32.mrb[0].mxu0
      %v2529 = vadd.f32 %v701, %v2528
      %v2530 = vpop.f32.mrb[0].mxu0
      %2531 = vmatprep.mubr.f32.mxu0 %v686
      %2532 = vmatmul.mubr.f32.gmra.mrb[0].mxu0 %v685
      %v2533 = vpop.f32.mrb[0].mxu0
      %v2534 = vadd.f32 %v706, %v2533
      %v2535 = vpop.f32.mrb[0].mxu0
      %2536 = vmatprep.mubr.f32.mxu0 %v688
      %2537 = vmatmul.mubr.f32.gmra.mrb[0].mxu0 %v687
      %v2538 = vpop.f32.mrb[0].mxu0
      %v2539 = vadd.f32 %v711, %v2538
      %v2540 = vpop.f32.mrb[0].mxu0
      %2541 = vdwg.mxu0
      %v2542 = vmax.f32 %v2524, 0.0
      %v2543 = vmax.f32 %v2529, 0.0
      %v2544 = vmax.f32 %v2534, 0.0
      %v2545 = vmax.f32 %v2539, 0.0
      %v2546 = vmul.f32 %v802, %v2542
      %v2547 = vmul.f32 %v803, %v2543
      %v2548 = vmul.f32 %v804, %v2544
      %v2549 = vmul.f32 %v805, %v2545
      %v2550 = vmul.f32 %v806, %v2542
      %v2551 = vmul.f32 %v807, %v2543
      %v2552 = vmul.f32 %v808, %v2544
      %v2553 = vmul.f32 %v809, %v2545
      %v2554 = vmul.f32 %v810, %v2542
      %v2555 = vmul.f32 %v811, %v2543
      %v2556 = vmul.f32 %v812, %v2544
      %v2557 = vmul.f32 %v813, %v2545
      %v2558 = vmul.f32 %v814, %v2542
      %v2559 = vmul.f32 %v815, %v2543
      %v2560 = vmul.f32 %v816, %v2544
      %v2561 = vmul.f32 %v817, %v2545
      %v2562 = vsel %vm834, %v2546, 0.0
      %v2563 = vsel %vm834, %v2547, 0.0
      %v2564 = vadd.f32 %v2562, %v2563
      %v2565 = vsel %vm834, %v2548, 0.0
      %v2566 = vadd.f32 %v2564, %v2565
      %v2567 = vsel %vm834, %v2549, 0.0
      %v2568 = vadd.f32 %v2566, %v2567
      %v2569 = vrot.slane %v2568, 4
      %v2570 = vadd.f32 %v2568, %v2569
      %v2571 = vrot.slane %v2570, 2
      %v2572 = vadd.f32 %v2570, %v2571
      %v2573 = vrot.slane %v2572, 1
      %v2574 = vadd.f32 %v2572, %v2573
      %v2575 = vsel %vm834, %v2550, 0.0
      %v2576 = vsel %vm834, %v2551, 0.0
      %v2577 = vadd.f32 %v2575, %v2576
      %v2578 = vsel %vm834, %v2552, 0.0
      %v2579 = vadd.f32 %v2577, %v2578
      %v2580 = vsel %vm834, %v2553, 0.0
      %v2581 = vadd.f32 %v2579, %v2580
      %v2582 = vrot.slane %v2581, 4
      %v2583 = vadd.f32 %v2581, %v2582
      %v2584 = vrot.slane %v2583, 2
      %v2585 = vadd.f32 %v2583, %v2584
      %v2586 = vrot.slane %v2585, 1
      %v2587 = vadd.f32 %v2585, %v2586
      %v2588 = vsel %vm834, %v2554, 0.0
      %v2589 = vsel %vm834, %v2555, 0.0
      %v2590 = vadd.f32 %v2588, %v2589
      %v2591 = vsel %vm834, %v2556, 0.0
      %v2592 = vadd.f32 %v2590, %v2591
      %v2593 = vsel %vm834, %v2557, 0.0
      %v2594 = vadd.f32 %v2592, %v2593
      %v2595 = vrot.slane %v2594, 4
      %v2596 = vadd.f32 %v2594, %v2595
      %v2597 = vrot.slane %v2596, 2
      %v2598 = vadd.f32 %v2596, %v2597
      %v2599 = vrot.slane %v2598, 1
      %v2600 = vadd.f32 %v2598, %v2599
      %v2601 = vsel %vm834, %v2558, 0.0
      %v2602 = vsel %vm834, %v2559, 0.0
      %v2603 = vadd.f32 %v2601, %v2602
      %v2604 = vsel %vm834, %v2560, 0.0
      %v2605 = vadd.f32 %v2603, %v2604
      %v2606 = vsel %vm834, %v2561, 0.0
      %v2607 = vadd.f32 %v2605, %v2606
      %v2608 = vrot.slane %v2607, 4
      %v2609 = vadd.f32 %v2607, %v2608
      %v2610 = vrot.slane %v2609, 2
      %v2611 = vadd.f32 %v2609, %v2610
      %v2612 = vrot.slane %v2611, 1
      %v2613 = vadd.f32 %v2611, %v2612
      %v2614 = vsel %vm888, %v2574, 0.0
      %2615 = vadd.xlane.f32.xlu0 %v2614
      %v2616 = vpop.xlane.xlu0 %2615
      %v2617 = vrot.slane %v2616, 4
      %v2618 = vadd.f32 %v2616, %v2617
      %v2619 = vrot.slane %v2618, 2
      %v2620 = vadd.f32 %v2618, %v2619
      %v2621 = vrot.slane %v2620, 1
      %v2622 = vadd.f32 %v2620, %v2621
      %s2623 = vtos %v2622
      %v2624 = vstv %s2623
      %v2625 = vsel %vm887, %v2624, 0.0
      %v2626 = vadd.f32 %v2625, 0.0
      %v2627 = vsel %vm888, %v2587, 0.0
      %2628 = vadd.xlane.f32.xlu0 %v2627
      %v2629 = vpop.xlane.xlu0 %2628
      %v2630 = vrot.slane %v2629, 4
      %v2631 = vadd.f32 %v2629, %v2630
      %v2632 = vrot.slane %v2631, 2
      %v2633 = vadd.f32 %v2631, %v2632
      %v2634 = vrot.slane %v2633, 1
      %v2635 = vadd.f32 %v2633, %v2634
      %s2636 = vtos %v2635
      %v2637 = vstv %s2636
      %v2638 = vsel %vm902, %v2637, 0.0
      %v2639 = vadd.f32 %v2626, %v2638
      %v2640 = vsel %vm888, %v2600, 0.0
      %2641 = vadd.xlane.f32.xlu0 %v2640
      %v2642 = vpop.xlane.xlu0 %2641
      %v2643 = vrot.slane %v2642, 4
      %v2644 = vadd.f32 %v2642, %v2643
      %v2645 = vrot.slane %v2644, 2
      %v2646 = vadd.f32 %v2644, %v2645
      %v2647 = vrot.slane %v2646, 1
      %v2648 = vadd.f32 %v2646, %v2647
      %s2649 = vtos %v2648
      %v2650 = vstv %s2649
      %v2651 = vsel %vm916, %v2650, 0.0
      %v2652 = vadd.f32 %v2639, %v2651
      %v2653 = vsel %vm888, %v2613, 0.0
      %2654 = vadd.xlane.f32.xlu0 %v2653
      %v2655 = vpop.xlane.xlu0 %2654
      %v2656 = vrot.slane %v2655, 4
      %v2657 = vadd.f32 %v2655, %v2656
      %v2658 = vrot.slane %v2657, 2
      %v2659 = vadd.f32 %v2657, %v2658
      %v2660 = vrot.slane %v2659, 1
      %v2661 = vadd.f32 %v2659, %v2660
      %s2662 = vtos %v2661
      %v2663 = vstv %s2662
      %v2664 = vsel %vm930, %v2663, 0.0
      %v2665 = vadd.f32 %v2652, %v2664
      %vm2666 = vcmask 1040384
      %v2667 = vsel %vm2666, %v943, %v1517
      %vm2668 = vcmask 1041408
      %v2669 = vsel %vm2668, %v2667, %v2091
      %vm2670 = vcmask 1042432
      %v2671 = vsel %vm2670, %v2669, %v2665
      %v2672 = vld [vmem:[%s6] sm:$0x1]
      %v2674 = vlaneseq
      %v2675 = vshrl.u32 %v2674, 7
      %v2676 = vsub.s32 0, %v2675
      %v2677 = vrot.slane %v2672, %v2676
      %v2679 = vadd.f32 %v2671, %v2677
      %vm2680 = vcmask 27648
      %2681 = vst.msk [vmem:[%s281] sm:$0xf] %vm2680, %v2679
      %p2682 = scmp.lt.s32.totalorder %s18, 1
      %s2683 = scalar_select %p2682, %s18, 1
      %s2684 = smul.addr %s2683, 4
      %s2685 = scalar_lea.vmem %s7, %s2684
      // Predicated region
      $region49: #{conv_net_forward.1} parent=47 // pred_check
        %p2686 = pneg %p188
      $region50: #{conv_net_forward.1} parent=47 // pred_check_branch
        %2688 = sbr.rel (%p2686) target = $region52
      $region51: #{conv_net_forward.1} parent=47 // pred_region
        _
      $region52: #{conv_net_forward.1} parent=47 // pred_fallthru
        _
    $region48: #{conv_net_forward.1} parent=5 // pred_fallthru
      _
    %p2689 = scmp.le.s32.totalorder 2, %s13
    // Predicated region
    $region53: #{conv_net_forward.1} parent=5 // pred_check
      %p2690 = pneg %p2689
    $region54: #{conv_net_forward.1} parent=5 // pred_check_branch
      %2692 = sbr.rel (%p2690) target = $region56
    $region55: #{conv_net_forward.1} parent=5 // pred_region
      %s2693 = ssub.s32 %s13, 2
      // Predicated region
      $region57: #{conv_net_forward.1} parent=55 // pred_check
        %p2694 = pneg %p194
      $region58: #{conv_net_forward.1} parent=55 // pred_check_branch
        %2696 = sbr.rel (%p2694) target = $region60
      $region59: #{conv_net_forward.1} parent=55 // pred_region
        %p2697 = scmp.lt.s32.totalorder %s19, 1
        %s2698 = scalar_select %p2697, %s19, 1
        %s2699 = smul.addr %s2698, 4
        %s2700 = scalar_lea.vmem %s7, %s2699
      $region60: #{conv_net_forward.1} parent=55 // pred_fallthru
        _
    $region56: #{conv_net_forward.1} parent=5 // pred_fallthru
      _
  $region6: #{conv_net_forward.1} parent=0 // loop_footer
    %s17 = sadd.s32 1, %s13
  $region7: #{conv_net_forward.1} parent=0 // loop_footer_branch
    %12 = sbr.rel target = $region3
  $region8: #{conv_net_forward.1} parent=0 // loop_exit
    _

</llo_original>
